<compile_context>
chip_gen: v7x
topology: tpu7x:2x2x1
jax: 0.10.0
libtpu: 0.0.40
codegen_flags: <defaults>
</compile_context>

<pallas_src>
import math
import jax
import jax.numpy as jnp
from jax import lax
from jax.experimental import pallas as pl
from jax.experimental.pallas import tpu as pltpu


# ---------------- config (mirrors the AMGSRN `opt` dict) ----------------
CFG = dict(
    n_grids=4,
    n_features=4,
    n_dims=3,
    n_outputs=1,
    nodes_per_layer=32,
    n_layers=2,
    feature_grid_shape=(8, 8, 8),   # (D, H, W)
    data_min=-1.0,
    data_max=1.0,
    use_bias=True,
    requires_padded_feats=False,
    error_volume=False,
)


# ---------------- parameter construction (plain-JAX glue) ----------------
def quaternion_to_rotation_matrix(q):
    # q: [G, 4] in (x, y, z, w) order, assumed normalized
    x, y, z, w = q[:, 0], q[:, 1], q[:, 2], q[:, 3]
    r0 = jnp.stack([1 - 2 * (y * y + z * z), 2 * (x * y - z * w), 2 * (x * z + y * w)], -1)
    r1 = jnp.stack([2 * (x * y + z * w), 1 - 2 * (x * x + z * z), 2 * (y * z - x * w)], -1)
    r2 = jnp.stack([2 * (x * z - y * w), 2 * (y * z + x * w), 1 - 2 * (x * x + y * y)], -1)
    return jnp.stack([r0, r1, r2], axis=-2)  # [G, 3, 3]


def create_transformation_matrices(rotations, scales, translations):
    # M = [[diag(S) @ R, t], [0, 0, 0, 1]]   (S*R*T order as used in AMGSRN.transform)
    G = rotations.shape[0]
    R = quaternion_to_rotation_matrix(rotations)
    SR = scales[:, :, None] * R
    top = jnp.concatenate([SR, translations[:, :, None]], axis=-1)          # [G, 3, 4]
    bottom = jnp.broadcast_to(jnp.array([[0., 0., 0., 1.]], jnp.float32), (G, 1, 4))
    return jnp.concatenate([top, bottom], axis=-2)                          # [G, 4, 4]


def init_params(key, cfg):
    G, F = cfg['n_grids'], cfg['n_features']
    D, H, W = cfg['feature_grid_shape']
    nd = cfg['n_dims']
    hidden = cfg['nodes_per_layer']
    n_out = cfg['n_outputs']
    n_layers = cfg['n_layers']

    ks = jax.random.split(key, 4 + 2 * (n_layers + 1))

    # randomize_grids (default grid_initialization branch); scales property = exp(log(s)) = s
    s = 1.0 - jax.random.uniform(ks[0], (G, nd), jnp.float32) * 0.05
    r = jnp.zeros((G, 4), jnp.float32).at[:, -1].set(1.0)                   # quaternion (x,y,z,w)
    r = r / jnp.linalg.norm(r, axis=-1, keepdims=True)                      # rotation_activation
    t = jax.random.uniform(ks[1], (G, nd), jnp.float32) * 0.1 - 0.05
    tmats = create_transformation_matrices(r, s, t)                         # [G, 4, 4]

    # feature grids ~ U(-1e-4, 1e-4) as in reset_parameters()
    feature_grids = jax.random.uniform(ks[2], (G, F, D, H, W), jnp.float32,
                                       minval=-1e-4, maxval=1e-4)

    # decoder: ReLULayer(in,hid), ReLULayer(hid,hid)*(n_layers-1), Linear(hid, n_out)
    in_dim = G * F
    sizes = [(in_dim, hidden)] + [(hidden, hidden)] * (n_layers - 1) + [(hidden, n_out)]
    ws, bs = [], []
    for li, (fi, fo) in enumerate(sizes):
        kw, kb = ks[3 + 2 * li], ks[4 + 2 * li]
        std = math.sqrt(2.0 / (fi + fo))                                    # xavier_normal_
        ws.append(jax.random.normal(kw, (fi, fo), jnp.float32) * std)
        bs.append(jax.random.normal(kb, (1, fo), jnp.float32) * 0.001)      # Normal(0, 0.001)
    return tmats, feature_grids, ws, bs


# ---------------- Pallas kernel ----------------
def amgsrn_pallas_forward(x, tmats, feature_grids, ws, bs, cfg, tile_b=256):
    B, nd = x.shape
    G, F = cfg['n_grids'], cfg['n_features']
    D, H, W = cfg['feature_grid_shape']
    DHW = D * H * W
    hidden = cfg['nodes_per_layer']
    n_out = cfg['n_outputs']
    assert nd == 3
    assert tile_b % 128 == 0

    # ---- batch padding (handles B not a multiple of tile_b); batch goes to lanes ----
    n_tiles = pl.cdiv(B, tile_b)
    Bp = n_tiles * tile_b
    xT = x.T                                                                # [3, B]
    if Bp != B:
        xT = jnp.pad(xT, ((0, 0), (0, Bp - B)))                             # [3, Bp]

    # ---- fold first decoder layer into the (channels-last, flattened) grids ----
    # g_proj[g, h, i] = sum_f grid[g, i(z,y,x flat), f] * W0[g*F + f, h]   (bf16 for the MXU)
    grids_flat = jnp.transpose(feature_grids, (0, 2, 3, 4, 1)).reshape(G, DHW, F)
    w0 = ws[0].reshape(G, F, hidden)
    g_proj = jnp.einsum('gif,gfh->ghi', grids_flat, w0).astype(jnp.bfloat16)   # [G, hidden, DHW]

    # ---- fold per-grid affine transform AND pixel-index scaling into 48 SMEM scalars ----
    # lattice coord of grid g, axis j (0->x/W, 1->y/H, 2->z/D):
    #   c = a0*x + a1*y + a2*z + b       with  a = A_g[j,:]*sc_j,  b = (t_g[j]+1)*sc_j
    A = tmats[:, :3, :3]                                                    # [G, 3, 3]
    tvec = tmats[:, :3, 3]                                                  # [G, 3]
    axis_scale = jnp.array([(W - 1) * 0.5, (H - 1) * 0.5, (D - 1) * 0.5], jnp.float32)
    coef = A * axis_scale[None, :, None]                                    # [G, 3, 3]
    bias = (tvec + 1.0) * axis_scale[None, :]                               # [G, 3]
    xfm_flat = jnp.concatenate([coef, bias[..., None]], axis=-1).reshape(-1)  # [G*3*4] f32

    # ---- fold output range scaling into the last decoder layer; transpose to [out, in] ----
    vmin, vmax = float(cfg['data_min']), float(cfg['data_max'])
    if cfg.get('error_volume', False):
        scale, offset = max(abs(vmin), abs(vmax)), 0.0
    else:
        scale, offset = (vmax - vmin), vmin
    b0T = bs[0].T                                                           # [hidden, 1]
    wT_rest = [w.T for w in ws[1:]]                                         # [out, in]
    bT_rest = [b.T for b in bs[1:]]                                         # [out, 1]
    wT_rest[-1] = wT_rest[-1] * scale
    bT_rest[-1] = bT_rest[-1] * scale + offset

    def kernel(xfm_ref, x_ref, gproj_ref, b0_ref, *rest):
        o_ref = rest[-1]
        wb = rest[:-1]                       # (w1T, b1, ..., w_lastT, b_last)

        x0 = x_ref[0:1, :]                                        # [1, TB]
        x1 = x_ref[1:2, :]
        x2 = x_ref[2:3, :]

        # lattice index patterns along sublanes (hoisted; reused by all grids)
        iw = lax.broadcasted_iota(jnp.int32, (W, tile_b), 0).astype(jnp.float32)
        ih = lax.broadcasted_iota(jnp.int32, (H, tile_b), 0).astype(jnp.float32)
        idp = lax.broadcasted_iota(jnp.int32, (D, tile_b), 0).astype(jnp.float32)

        h = None
        for g in range(G):
            o = 12 * g
            # per-grid lattice-space coordinates (scalar SMEM coeffs * batch rows), f32
            cx = xfm_ref[o + 0] * x0 + xfm_ref[o + 1] * x1 + xfm_ref[o + 2] * x2 + xfm_ref[o + 3]
            cy = xfm_ref[o + 4] * x0 + xfm_ref[o + 5] * x1 + xfm_ref[o + 6] * x2 + xfm_ref[o + 7]
            cz = xfm_ref[o + 8] * x0 + xfm_ref[o + 9] * x1 + xfm_ref[o + 10] * x2 + xfm_ref[o + 11]

            # separable trilinear "tent" weights (== grid_sample align_corners=True, zeros pad):
            # out-of-range coordinates get zero weight per axis automatically.
            wx = jnp.maximum(1.0 - jnp.abs(iw - cx), 0.0)         # [W, TB]
            wy = jnp.maximum(1.0 - jnp.abs(ih - cy), 0.0)         # [H, TB]
            wz = jnp.maximum(1.0 - jnp.abs(idp - cz), 0.0)        # [D, TB]
            wyx = (wy[:, None, :] * wx[None, :, :]).reshape(H * W, tile_b)     # [H*W, TB]
            wmat = (wz[:, None, :] * wyx[None, :, :]).reshape(DHW, tile_b)     # [DHW, TB]

            # fused grid-sample + first decoder layer, one K=DHW bf16 MXU matmul per grid,
            # accumulated into the [hidden, TB] activation (no concat, small live set)
            part = jnp.dot(gproj_ref[g], wmat.astype(jnp.bfloat16),
                           preferred_element_type=jnp.float32)    # [hidden, TB]
            h = part if h is None else h + part

        h = jnp.maximum(h + b0_ref[...], 0.0)                     # ReLULayer 0 (matmul folded)

        n_rest = len(wb) // 2
        for li in range(n_rest):
            w_l = wb[2 * li][...]                                 # [out, in]
            b_l = wb[2 * li + 1][...]                             # [out, 1]
            h = jnp.dot(w_l, h, preferred_element_type=jnp.float32) + b_l
            if li < n_rest - 1:                                   # hidden ReLULayers
                h = jnp.maximum(h, 0.0)

        # range scaling already folded into the last layer; lane-dense [n_out, TB] store
        o_ref[...] = h

    in_specs = [
        pl.BlockSpec(memory_space=pltpu.MemorySpace.SMEM),        # 48 affine scalars
        pl.BlockSpec((3, tile_b), lambda i: (0, i)),              # x^T tile
        pl.BlockSpec((G, hidden, DHW), lambda i: (0, 0, 0)),      # folded grids (bf16)
        pl.BlockSpec((hidden, 1), lambda i: (0, 0)),              # bias of layer 0
    ]
    args = [xfm_flat, xT, g_proj, b0T]
    for w, b in zip(wT_rest, bT_rest):
        in_specs.append(pl.BlockSpec(w.shape, lambda i: (0, 0)))
        in_specs.append(pl.BlockSpec(b.shape, lambda i: (0, 0)))
        args += [w, b]

    n_hidden_layers = max(len(ws) - 2, 0)
    flops = 2 * Bp * (G * DHW * hidden + n_hidden_layers * hidden * hidden + hidden * n_out)
    bytes_accessed = (Bp * 3 * 4 + G * DHW * hidden * 2
                      + n_hidden_layers * hidden * hidden * 4 + hidden * n_out * 4
                      + Bp * n_out * 4)
    cost = pl.CostEstimate(flops=flops, transcendentals=0, bytes_accessed=int(bytes_accessed))

    out = pl.pallas_call(
        kernel,
        grid=(n_tiles,),
        in_specs=in_specs,
        out_specs=pl.BlockSpec((n_out, tile_b), lambda i: (0, i)),
        out_shape=jax.ShapeDtypeStruct((n_out, Bp), jnp.float32),
        compiler_params=pltpu.CompilerParams(dimension_semantics=("parallel",)),
        cost_estimate=cost,
    )(*args)
    return out[:, :B].T                                           # [B, n_out]


# ---------------- pure-JAX reference (for verification) ----------------
def amgsrn_reference_forward(x, tmats, feature_grids, ws, bs, cfg):
    G, F, D, H, W = feature_grids.shape
    vmin, vmax = float(cfg['data_min']), float(cfg['data_max'])
    A = tmats[:, :3, :3]
    t = tmats[:, :3, 3]
    local = jnp.einsum('gjk,bk->gbj', A, x) + t[:, None, :]     # [G, B, 3]
    ix = (local[..., 0] + 1.0) * 0.5 * (W - 1)
    iy = (local[..., 1] + 1.0) * 0.5 * (H - 1)
    iz = (local[..., 2] + 1.0) * 0.5 * (D - 1)
    ix0 = jnp.floor(ix); iy0 = jnp.floor(iy); iz0 = jnp.floor(iz)
    fx = ix - ix0; fy = iy - iy0; fz = iz - iz0
    g_idx = jnp.arange(G)[:, None]
    feats = jnp.zeros((G, x.shape[0], F), jnp.float32)
    for dz in (0, 1):
        for dy in (0, 1):
            for dx in (0, 1):
                cx = ix0 + dx; cy = iy0 + dy; cz = iz0 + dz
                wc = ((fx if dx else 1.0 - fx) *
                      (fy if dy else 1.0 - fy) *
                      (fz if dz else 1.0 - fz))
                valid = ((cx >= 0) & (cx <= W - 1) &
                         (cy >= 0) & (cy <= H - 1) &
                         (cz >= 0) & (cz <= D - 1))
                cxi = jnp.clip(cx, 0, W - 1).astype(jnp.int32)
                cyi = jnp.clip(cy, 0, H - 1).astype(jnp.int32)
                czi = jnp.clip(cz, 0, D - 1).astype(jnp.int32)
                vals = feature_grids[g_idx, :, czi, cyi, cxi]   # [G, B, F]
                feats = feats + jnp.where(valid[..., None], wc[..., None] * vals, 0.0)
    h = jnp.transpose(feats, (1, 0, 2)).reshape(x.shape[0], G * F)
    for li in range(len(ws)):
        h = h @ ws[li] + bs[li]
        if li < len(ws) - 1:
            h = jnp.maximum(h, 0.0)
    return h * (vmax - vmin) + vmin


if __name__ == "__main__":
    key = jax.random.PRNGKey(0)
    k_param, k_x = jax.random.split(key)
    tmats, feature_grids, ws, bs = init_params(k_param, CFG)

    B = 500   # deliberately NOT a multiple of tile_b: exercises the padded-tail path
    x = jax.random.uniform(k_x, (B, CFG['n_dims']), jnp.float32, minval=-1.0, maxval=1.0)

    y = amgsrn_pallas_forward(x, tmats, feature_grids, ws, bs, CFG, tile_b=256)
    y = jax.block_until_ready(y)

    y_ref = jax.block_until_ready(
        amgsrn_reference_forward(x, tmats, feature_grids, ws, bs, CFG))

    assert y.shape == (B, CFG['n_outputs'])
    err = float(jnp.max(jnp.abs(y - y_ref)))
    assert err < 1e-3, f"mismatch vs reference: max abs err = {err}"
    print("KERNEL_OK")
</pallas_src>

<mosaic_0001>
module attributes {stable_mosaic.version = 11 : i64} {
  func.func @kernel(%arg0: i32, %arg1: memref<48xf32, #tpu.memory_space<smem>>, %arg2: memref<3x256xf32, #tpu.memory_space<vmem>>, %arg3: memref<4x32x512xbf16, #tpu.memory_space<vmem>>, %arg4: memref<32x1xf32, #tpu.memory_space<vmem>>, %arg5: memref<32x32xf32, #tpu.memory_space<vmem>>, %arg6: memref<32x1xf32, #tpu.memory_space<vmem>>, %arg7: memref<1x32xf32, #tpu.memory_space<vmem>>, %arg8: memref<1x1xf32, #tpu.memory_space<vmem>>, %arg9: memref<1x256xf32, #tpu.memory_space<vmem>>) attributes {dimension_semantics = [#tpu.dimension_semantics<parallel>], iteration_bounds = array<i64: 2>, scalar_prefetch = 0 : i64, scratch_operands = 0 : i64, tpu.core_type = #tpu.core_type<tc>, window_params = [{transform_indices = @transform_0, window_bounds = array<i64: 48>}, {transform_indices = @transform_1, window_bounds = array<i64: 3, 256>}, {pipeline_mode = #tpu.pipeline_mode<synchronous>, transform_indices = @transform_2, window_bounds = array<i64: 4, 32, 512>}, {pipeline_mode = #tpu.pipeline_mode<synchronous>, transform_indices = @transform_3, window_bounds = array<i64: 32, 1>}, {pipeline_mode = #tpu.pipeline_mode<synchronous>, transform_indices = @transform_4, window_bounds = array<i64: 32, 32>}, {pipeline_mode = #tpu.pipeline_mode<synchronous>, transform_indices = @transform_5, window_bounds = array<i64: 32, 1>}, {pipeline_mode = #tpu.pipeline_mode<synchronous>, transform_indices = @transform_6, window_bounds = array<i64: 1, 32>}, {pipeline_mode = #tpu.pipeline_mode<synchronous>, transform_indices = @transform_7, window_bounds = array<i64: 1, 1>}, {transform_indices = @transform_8, window_bounds = array<i64: 1, 256>}]} {
    %c0 = arith.constant 0 : index
    %c0_0 = arith.constant 0 : index
    %0 = vector.load %arg2[%c0, %c0_0] : memref<3x256xf32, #tpu.memory_space<vmem>>, vector<1x256xf32>
    %c1 = arith.constant 1 : index
    %c0_1 = arith.constant 0 : index
    %1 = vector.load %arg2[%c1, %c0_1] : memref<3x256xf32, #tpu.memory_space<vmem>>, vector<1x256xf32>
    %c2 = arith.constant 2 : index
    %c0_2 = arith.constant 0 : index
    %2 = vector.load %arg2[%c2, %c0_2] : memref<3x256xf32, #tpu.memory_space<vmem>>, vector<1x256xf32>
    %3 = tpu.iota {dimensions = array<i32: 0>} : vector<8x256xi32>
    %4 = arith.sitofp %3 : vector<8x256xi32> to vector<8x256xf32>
    %5 = tpu.iota {dimensions = array<i32: 0>} : vector<8x256xi32>
    %6 = arith.sitofp %5 : vector<8x256xi32> to vector<8x256xf32>
    %7 = tpu.iota {dimensions = array<i32: 0>} : vector<8x256xi32>
    %8 = arith.sitofp %7 : vector<8x256xi32> to vector<8x256xf32>
    %c0_3 = arith.constant 0 : index
    %9 = memref.load %arg1[%c0_3] : memref<48xf32, #tpu.memory_space<smem>>
    %10 = vector.broadcast %9 : f32 to vector<1x256xf32>
    %11 = arith.mulf %10, %0 : vector<1x256xf32>
    %c1_4 = arith.constant 1 : index
    %12 = memref.load %arg1[%c1_4] : memref<48xf32, #tpu.memory_space<smem>>
    %13 = vector.broadcast %12 : f32 to vector<1x256xf32>
    %14 = arith.mulf %13, %1 : vector<1x256xf32>
    %15 = arith.addf %11, %14 : vector<1x256xf32>
    %c2_5 = arith.constant 2 : index
    %16 = memref.load %arg1[%c2_5] : memref<48xf32, #tpu.memory_space<smem>>
    %17 = vector.broadcast %16 : f32 to vector<1x256xf32>
    %18 = arith.mulf %17, %2 : vector<1x256xf32>
    %19 = arith.addf %15, %18 : vector<1x256xf32>
    %c3 = arith.constant 3 : index
    %20 = memref.load %arg1[%c3] : memref<48xf32, #tpu.memory_space<smem>>
    %21 = vector.broadcast %20 : f32 to vector<1x256xf32>
    %22 = arith.addf %19, %21 : vector<1x256xf32>
    %c4 = arith.constant 4 : index
    %23 = memref.load %arg1[%c4] : memref<48xf32, #tpu.memory_space<smem>>
    %24 = vector.broadcast %23 : f32 to vector<1x256xf32>
    %25 = arith.mulf %24, %0 : vector<1x256xf32>
    %c5 = arith.constant 5 : index
    %26 = memref.load %arg1[%c5] : memref<48xf32, #tpu.memory_space<smem>>
    %27 = vector.broadcast %26 : f32 to vector<1x256xf32>
    %28 = arith.mulf %27, %1 : vector<1x256xf32>
    %29 = arith.addf %25, %28 : vector<1x256xf32>
    %c6 = arith.constant 6 : index
    %30 = memref.load %arg1[%c6] : memref<48xf32, #tpu.memory_space<smem>>
    %31 = vector.broadcast %30 : f32 to vector<1x256xf32>
    %32 = arith.mulf %31, %2 : vector<1x256xf32>
    %33 = arith.addf %29, %32 : vector<1x256xf32>
    %c7 = arith.constant 7 : index
    %34 = memref.load %arg1[%c7] : memref<48xf32, #tpu.memory_space<smem>>
    %35 = vector.broadcast %34 : f32 to vector<1x256xf32>
    %36 = arith.addf %33, %35 : vector<1x256xf32>
    %c8 = arith.constant 8 : index
    %37 = memref.load %arg1[%c8] : memref<48xf32, #tpu.memory_space<smem>>
    %38 = vector.broadcast %37 : f32 to vector<1x256xf32>
    %39 = arith.mulf %38, %0 : vector<1x256xf32>
    %c9 = arith.constant 9 : index
    %40 = memref.load %arg1[%c9] : memref<48xf32, #tpu.memory_space<smem>>
    %41 = vector.broadcast %40 : f32 to vector<1x256xf32>
    %42 = arith.mulf %41, %1 : vector<1x256xf32>
    %43 = arith.addf %39, %42 : vector<1x256xf32>
    %c10 = arith.constant 10 : index
    %44 = memref.load %arg1[%c10] : memref<48xf32, #tpu.memory_space<smem>>
    %45 = vector.broadcast %44 : f32 to vector<1x256xf32>
    %46 = arith.mulf %45, %2 : vector<1x256xf32>
    %47 = arith.addf %43, %46 : vector<1x256xf32>
    %c11 = arith.constant 11 : index
    %48 = memref.load %arg1[%c11] : memref<48xf32, #tpu.memory_space<smem>>
    %49 = vector.broadcast %48 : f32 to vector<1x256xf32>
    %50 = arith.addf %47, %49 : vector<1x256xf32>
    %51 = vector.broadcast %22 : vector<1x256xf32> to vector<8x256xf32>
    %52 = arith.subf %4, %51 : vector<8x256xf32>
    %53 = math.absf %52 : vector<8x256xf32>
    %cst = arith.constant 1.000000e+00 : f32
    %54 = vector.broadcast %cst : f32 to vector<8x256xf32>
    %55 = arith.subf %54, %53 : vector<8x256xf32>
    %cst_6 = arith.constant 0.000000e+00 : f32
    %56 = vector.broadcast %cst_6 : f32 to vector<8x256xf32>
    %57 = arith.maximumf %55, %56 : vector<8x256xf32>
    %58 = vector.broadcast %36 : vector<1x256xf32> to vector<8x256xf32>
    %59 = arith.subf %6, %58 : vector<8x256xf32>
    %60 = math.absf %59 : vector<8x256xf32>
    %cst_7 = arith.constant 1.000000e+00 : f32
    %61 = vector.broadcast %cst_7 : f32 to vector<8x256xf32>
    %62 = arith.subf %61, %60 : vector<8x256xf32>
    %cst_8 = arith.constant 0.000000e+00 : f32
    %63 = vector.broadcast %cst_8 : f32 to vector<8x256xf32>
    %64 = arith.maximumf %62, %63 : vector<8x256xf32>
    %65 = vector.broadcast %50 : vector<1x256xf32> to vector<8x256xf32>
    %66 = arith.subf %8, %65 : vector<8x256xf32>
    %67 = math.absf %66 : vector<8x256xf32>
    %cst_9 = arith.constant 1.000000e+00 : f32
    %68 = vector.broadcast %cst_9 : f32 to vector<8x256xf32>
    %69 = arith.subf %68, %67 : vector<8x256xf32>
    %cst_10 = arith.constant 0.000000e+00 : f32
    %70 = vector.broadcast %cst_10 : f32 to vector<8x256xf32>
    %71 = arith.maximumf %69, %70 : vector<8x256xf32>
    %72 = vector.shape_cast %64 : vector<8x256xf32> to vector<8x1x256xf32>
    %73 = vector.shape_cast %57 : vector<8x256xf32> to vector<1x8x256xf32>
    %74 = vector.broadcast %72 : vector<8x1x256xf32> to vector<8x8x256xf32>
    %75 = vector.broadcast %73 : vector<1x8x256xf32> to vector<8x8x256xf32>
    %76 = arith.mulf %74, %75 : vector<8x8x256xf32>
    %77 = vector.shape_cast %76 : vector<8x8x256xf32> to vector<64x256xf32>
    %78 = vector.shape_cast %71 : vector<8x256xf32> to vector<8x1x256xf32>
    %79 = vector.shape_cast %77 : vector<64x256xf32> to vector<1x64x256xf32>
    %80 = vector.broadcast %78 : vector<8x1x256xf32> to vector<8x64x256xf32>
    %81 = vector.broadcast %79 : vector<1x64x256xf32> to vector<8x64x256xf32>
    %82 = arith.mulf %80, %81 : vector<8x64x256xf32>
    %83 = vector.shape_cast %82 : vector<8x64x256xf32> to vector<512x256xf32>
    %c0_11 = arith.constant 0 : index
    %c0_12 = arith.constant 0 : index
    %c0_13 = arith.constant 0 : index
    %84 = vector.load %arg3[%c0_11, %c0_12, %c0_13] : memref<4x32x512xbf16, #tpu.memory_space<vmem>>, vector<1x32x512xbf16>
    %85 = vector.shape_cast %84 : vector<1x32x512xbf16> to vector<32x512xbf16>
    %86 = arith.truncf %83 : vector<512x256xf32> to vector<512x256xbf16>
    %cst_14 = arith.constant dense<0.000000e+00> : vector<32x256xf32>
    %87 = tpu.matmul %85, %86, %cst_14 {dimension_numbers = #tpu.dot_dimension_numbers<[1], [0], [0], [1], [0, 0, 1, 1], [], []>} : vector<32x512xbf16>, vector<512x256xbf16>, vector<32x256xf32> -> vector<32x256xf32>
    %c12 = arith.constant 12 : index
    %88 = memref.load %arg1[%c12] : memref<48xf32, #tpu.memory_space<smem>>
    %89 = vector.broadcast %88 : f32 to vector<1x256xf32>
    %90 = arith.mulf %89, %0 : vector<1x256xf32>
    %c13 = arith.constant 13 : index
    %91 = memref.load %arg1[%c13] : memref<48xf32, #tpu.memory_space<smem>>
    %92 = vector.broadcast %91 : f32 to vector<1x256xf32>
    %93 = arith.mulf %92, %1 : vector<1x256xf32>
    %94 = arith.addf %90, %93 : vector<1x256xf32>
    %c14 = arith.constant 14 : index
    %95 = memref.load %arg1[%c14] : memref<48xf32, #tpu.memory_space<smem>>
    %96 = vector.broadcast %95 : f32 to vector<1x256xf32>
    %97 = arith.mulf %96, %2 : vector<1x256xf32>
    %98 = arith.addf %94, %97 : vector<1x256xf32>
    %c15 = arith.constant 15 : index
    %99 = memref.load %arg1[%c15] : memref<48xf32, #tpu.memory_space<smem>>
    %100 = vector.broadcast %99 : f32 to vector<1x256xf32>
    %101 = arith.addf %98, %100 : vector<1x256xf32>
    %c16 = arith.constant 16 : index
    %102 = memref.load %arg1[%c16] : memref<48xf32, #tpu.memory_space<smem>>
    %103 = vector.broadcast %102 : f32 to vector<1x256xf32>
    %104 = arith.mulf %103, %0 : vector<1x256xf32>
    %c17 = arith.constant 17 : index
    %105 = memref.load %arg1[%c17] : memref<48xf32, #tpu.memory_space<smem>>
    %106 = vector.broadcast %105 : f32 to vector<1x256xf32>
    %107 = arith.mulf %106, %1 : vector<1x256xf32>
    %108 = arith.addf %104, %107 : vector<1x256xf32>
    %c18 = arith.constant 18 : index
    %109 = memref.load %arg1[%c18] : memref<48xf32, #tpu.memory_space<smem>>
    %110 = vector.broadcast %109 : f32 to vector<1x256xf32>
    %111 = arith.mulf %110, %2 : vector<1x256xf32>
    %112 = arith.addf %108, %111 : vector<1x256xf32>
    %c19 = arith.constant 19 : index
    %113 = memref.load %arg1[%c19] : memref<48xf32, #tpu.memory_space<smem>>
    %114 = vector.broadcast %113 : f32 to vector<1x256xf32>
    %115 = arith.addf %112, %114 : vector<1x256xf32>
    %c20 = arith.constant 20 : index
    %116 = memref.load %arg1[%c20] : memref<48xf32, #tpu.memory_space<smem>>
    %117 = vector.broadcast %116 : f32 to vector<1x256xf32>
    %118 = arith.mulf %117, %0 : vector<1x256xf32>
    %c21 = arith.constant 21 : index
    %119 = memref.load %arg1[%c21] : memref<48xf32, #tpu.memory_space<smem>>
    %120 = vector.broadcast %119 : f32 to vector<1x256xf32>
    %121 = arith.mulf %120, %1 : vector<1x256xf32>
    %122 = arith.addf %118, %121 : vector<1x256xf32>
    %c22 = arith.constant 22 : index
    %123 = memref.load %arg1[%c22] : memref<48xf32, #tpu.memory_space<smem>>
    %124 = vector.broadcast %123 : f32 to vector<1x256xf32>
    %125 = arith.mulf %124, %2 : vector<1x256xf32>
    %126 = arith.addf %122, %125 : vector<1x256xf32>
    %c23 = arith.constant 23 : index
    %127 = memref.load %arg1[%c23] : memref<48xf32, #tpu.memory_space<smem>>
    %128 = vector.broadcast %127 : f32 to vector<1x256xf32>
    %129 = arith.addf %126, %128 : vector<1x256xf32>
    %130 = vector.broadcast %101 : vector<1x256xf32> to vector<8x256xf32>
    %131 = arith.subf %4, %130 : vector<8x256xf32>
    %132 = math.absf %131 : vector<8x256xf32>
    %cst_15 = arith.constant 1.000000e+00 : f32
    %133 = vector.broadcast %cst_15 : f32 to vector<8x256xf32>
    %134 = arith.subf %133, %132 : vector<8x256xf32>
    %cst_16 = arith.constant 0.000000e+00 : f32
    %135 = vector.broadcast %cst_16 : f32 to vector<8x256xf32>
    %136 = arith.maximumf %134, %135 : vector<8x256xf32>
    %137 = vector.broadcast %115 : vector<1x256xf32> to vector<8x256xf32>
    %138 = arith.subf %6, %137 : vector<8x256xf32>
    %139 = math.absf %138 : vector<8x256xf32>
    %cst_17 = arith.constant 1.000000e+00 : f32
    %140 = vector.broadcast %cst_17 : f32 to vector<8x256xf32>
    %141 = arith.subf %140, %139 : vector<8x256xf32>
    %cst_18 = arith.constant 0.000000e+00 : f32
    %142 = vector.broadcast %cst_18 : f32 to vector<8x256xf32>
    %143 = arith.maximumf %141, %142 : vector<8x256xf32>
    %144 = vector.broadcast %129 : vector<1x256xf32> to vector<8x256xf32>
    %145 = arith.subf %8, %144 : vector<8x256xf32>
    %146 = math.absf %145 : vector<8x256xf32>
    %cst_19 = arith.constant 1.000000e+00 : f32
    %147 = vector.broadcast %cst_19 : f32 to vector<8x256xf32>
    %148 = arith.subf %147, %146 : vector<8x256xf32>
    %cst_20 = arith.constant 0.000000e+00 : f32
    %149 = vector.broadcast %cst_20 : f32 to vector<8x256xf32>
    %150 = arith.maximumf %148, %149 : vector<8x256xf32>
    %151 = vector.shape_cast %143 : vector<8x256xf32> to vector<8x1x256xf32>
    %152 = vector.shape_cast %136 : vector<8x256xf32> to vector<1x8x256xf32>
    %153 = vector.broadcast %151 : vector<8x1x256xf32> to vector<8x8x256xf32>
    %154 = vector.broadcast %152 : vector<1x8x256xf32> to vector<8x8x256xf32>
    %155 = arith.mulf %153, %154 : vector<8x8x256xf32>
    %156 = vector.shape_cast %155 : vector<8x8x256xf32> to vector<64x256xf32>
    %157 = vector.shape_cast %150 : vector<8x256xf32> to vector<8x1x256xf32>
    %158 = vector.shape_cast %156 : vector<64x256xf32> to vector<1x64x256xf32>
    %159 = vector.broadcast %157 : vector<8x1x256xf32> to vector<8x64x256xf32>
    %160 = vector.broadcast %158 : vector<1x64x256xf32> to vector<8x64x256xf32>
    %161 = arith.mulf %159, %160 : vector<8x64x256xf32>
    %162 = vector.shape_cast %161 : vector<8x64x256xf32> to vector<512x256xf32>
    %c1_21 = arith.constant 1 : index
    %c0_22 = arith.constant 0 : index
    %c0_23 = arith.constant 0 : index
    %163 = vector.load %arg3[%c1_21, %c0_22, %c0_23] : memref<4x32x512xbf16, #tpu.memory_space<vmem>>, vector<1x32x512xbf16>
    %164 = vector.shape_cast %163 : vector<1x32x512xbf16> to vector<32x512xbf16>
    %165 = arith.truncf %162 : vector<512x256xf32> to vector<512x256xbf16>
    %cst_24 = arith.constant dense<0.000000e+00> : vector<32x256xf32>
    %166 = tpu.matmul %164, %165, %cst_24 {dimension_numbers = #tpu.dot_dimension_numbers<[1], [0], [0], [1], [0, 0, 1, 1], [], []>} : vector<32x512xbf16>, vector<512x256xbf16>, vector<32x256xf32> -> vector<32x256xf32>
    %167 = arith.addf %87, %166 : vector<32x256xf32>
    %c24 = arith.constant 24 : index
    %168 = memref.load %arg1[%c24] : memref<48xf32, #tpu.memory_space<smem>>
    %169 = vector.broadcast %168 : f32 to vector<1x256xf32>
    %170 = arith.mulf %169, %0 : vector<1x256xf32>
    %c25 = arith.constant 25 : index
    %171 = memref.load %arg1[%c25] : memref<48xf32, #tpu.memory_space<smem>>
    %172 = vector.broadcast %171 : f32 to vector<1x256xf32>
    %173 = arith.mulf %172, %1 : vector<1x256xf32>
    %174 = arith.addf %170, %173 : vector<1x256xf32>
    %c26 = arith.constant 26 : index
    %175 = memref.load %arg1[%c26] : memref<48xf32, #tpu.memory_space<smem>>
    %176 = vector.broadcast %175 : f32 to vector<1x256xf32>
    %177 = arith.mulf %176, %2 : vector<1x256xf32>
    %178 = arith.addf %174, %177 : vector<1x256xf32>
    %c27 = arith.constant 27 : index
    %179 = memref.load %arg1[%c27] : memref<48xf32, #tpu.memory_space<smem>>
    %180 = vector.broadcast %179 : f32 to vector<1x256xf32>
    %181 = arith.addf %178, %180 : vector<1x256xf32>
    %c28 = arith.constant 28 : index
    %182 = memref.load %arg1[%c28] : memref<48xf32, #tpu.memory_space<smem>>
    %183 = vector.broadcast %182 : f32 to vector<1x256xf32>
    %184 = arith.mulf %183, %0 : vector<1x256xf32>
    %c29 = arith.constant 29 : index
    %185 = memref.load %arg1[%c29] : memref<48xf32, #tpu.memory_space<smem>>
    %186 = vector.broadcast %185 : f32 to vector<1x256xf32>
    %187 = arith.mulf %186, %1 : vector<1x256xf32>
    %188 = arith.addf %184, %187 : vector<1x256xf32>
    %c30 = arith.constant 30 : index
    %189 = memref.load %arg1[%c30] : memref<48xf32, #tpu.memory_space<smem>>
    %190 = vector.broadcast %189 : f32 to vector<1x256xf32>
    %191 = arith.mulf %190, %2 : vector<1x256xf32>
    %192 = arith.addf %188, %191 : vector<1x256xf32>
    %c31 = arith.constant 31 : index
    %193 = memref.load %arg1[%c31] : memref<48xf32, #tpu.memory_space<smem>>
    %194 = vector.broadcast %193 : f32 to vector<1x256xf32>
    %195 = arith.addf %192, %194 : vector<1x256xf32>
    %c32 = arith.constant 32 : index
    %196 = memref.load %arg1[%c32] : memref<48xf32, #tpu.memory_space<smem>>
    %197 = vector.broadcast %196 : f32 to vector<1x256xf32>
    %198 = arith.mulf %197, %0 : vector<1x256xf32>
    %c33 = arith.constant 33 : index
    %199 = memref.load %arg1[%c33] : memref<48xf32, #tpu.memory_space<smem>>
    %200 = vector.broadcast %199 : f32 to vector<1x256xf32>
    %201 = arith.mulf %200, %1 : vector<1x256xf32>
    %202 = arith.addf %198, %201 : vector<1x256xf32>
    %c34 = arith.constant 34 : index
    %203 = memref.load %arg1[%c34] : memref<48xf32, #tpu.memory_space<smem>>
    %204 = vector.broadcast %203 : f32 to vector<1x256xf32>
    %205 = arith.mulf %204, %2 : vector<1x256xf32>
    %206 = arith.addf %202, %205 : vector<1x256xf32>
    %c35 = arith.constant 35 : index
    %207 = memref.load %arg1[%c35] : memref<48xf32, #tpu.memory_space<smem>>
    %208 = vector.broadcast %207 : f32 to vector<1x256xf32>
    %209 = arith.addf %206, %208 : vector<1x256xf32>
    %210 = vector.broadcast %181 : vector<1x256xf32> to vector<8x256xf32>
    %211 = arith.subf %4, %210 : vector<8x256xf32>
    %212 = math.absf %211 : vector<8x256xf32>
    %cst_25 = arith.constant 1.000000e+00 : f32
    %213 = vector.broadcast %cst_25 : f32 to vector<8x256xf32>
    %214 = arith.subf %213, %212 : vector<8x256xf32>
    %cst_26 = arith.constant 0.000000e+00 : f32
    %215 = vector.broadcast %cst_26 : f32 to vector<8x256xf32>
    %216 = arith.maximumf %214, %215 : vector<8x256xf32>
    %217 = vector.broadcast %195 : vector<1x256xf32> to vector<8x256xf32>
    %218 = arith.subf %6, %217 : vector<8x256xf32>
    %219 = math.absf %218 : vector<8x256xf32>
    %cst_27 = arith.constant 1.000000e+00 : f32
    %220 = vector.broadcast %cst_27 : f32 to vector<8x256xf32>
    %221 = arith.subf %220, %219 : vector<8x256xf32>
    %cst_28 = arith.constant 0.000000e+00 : f32
    %222 = vector.broadcast %cst_28 : f32 to vector<8x256xf32>
    %223 = arith.maximumf %221, %222 : vector<8x256xf32>
    %224 = vector.broadcast %209 : vector<1x256xf32> to vector<8x256xf32>
    %225 = arith.subf %8, %224 : vector<8x256xf32>
    %226 = math.absf %225 : vector<8x256xf32>
    %cst_29 = arith.constant 1.000000e+00 : f32
    %227 = vector.broadcast %cst_29 : f32 to vector<8x256xf32>
    %228 = arith.subf %227, %226 : vector<8x256xf32>
    %cst_30 = arith.constant 0.000000e+00 : f32
    %229 = vector.broadcast %cst_30 : f32 to vector<8x256xf32>
    %230 = arith.maximumf %228, %229 : vector<8x256xf32>
    %231 = vector.shape_cast %223 : vector<8x256xf32> to vector<8x1x256xf32>
    %232 = vector.shape_cast %216 : vector<8x256xf32> to vector<1x8x256xf32>
    %233 = vector.broadcast %231 : vector<8x1x256xf32> to vector<8x8x256xf32>
    %234 = vector.broadcast %232 : vector<1x8x256xf32> to vector<8x8x256xf32>
    %235 = arith.mulf %233, %234 : vector<8x8x256xf32>
    %236 = vector.shape_cast %235 : vector<8x8x256xf32> to vector<64x256xf32>
    %237 = vector.shape_cast %230 : vector<8x256xf32> to vector<8x1x256xf32>
    %238 = vector.shape_cast %236 : vector<64x256xf32> to vector<1x64x256xf32>
    %239 = vector.broadcast %237 : vector<8x1x256xf32> to vector<8x64x256xf32>
    %240 = vector.broadcast %238 : vector<1x64x256xf32> to vector<8x64x256xf32>
    %241 = arith.mulf %239, %240 : vector<8x64x256xf32>
    %242 = vector.shape_cast %241 : vector<8x64x256xf32> to vector<512x256xf32>
    %c2_31 = arith.constant 2 : index
    %c0_32 = arith.constant 0 : index
    %c0_33 = arith.constant 0 : index
    %243 = vector.load %arg3[%c2_31, %c0_32, %c0_33] : memref<4x32x512xbf16, #tpu.memory_space<vmem>>, vector<1x32x512xbf16>
    %244 = vector.shape_cast %243 : vector<1x32x512xbf16> to vector<32x512xbf16>
    %245 = arith.truncf %242 : vector<512x256xf32> to vector<512x256xbf16>
    %cst_34 = arith.constant dense<0.000000e+00> : vector<32x256xf32>
    %246 = tpu.matmul %244, %245, %cst_34 {dimension_numbers = #tpu.dot_dimension_numbers<[1], [0], [0], [1], [0, 0, 1, 1], [], []>} : vector<32x512xbf16>, vector<512x256xbf16>, vector<32x256xf32> -> vector<32x256xf32>
    %247 = arith.addf %167, %246 : vector<32x256xf32>
    %c36 = arith.constant 36 : index
    %248 = memref.load %arg1[%c36] : memref<48xf32, #tpu.memory_space<smem>>
    %249 = vector.broadcast %248 : f32 to vector<1x256xf32>
    %250 = arith.mulf %249, %0 : vector<1x256xf32>
    %c37 = arith.constant 37 : index
    %251 = memref.load %arg1[%c37] : memref<48xf32, #tpu.memory_space<smem>>
    %252 = vector.broadcast %251 : f32 to vector<1x256xf32>
    %253 = arith.mulf %252, %1 : vector<1x256xf32>
    %254 = arith.addf %250, %253 : vector<1x256xf32>
    %c38 = arith.constant 38 : index
    %255 = memref.load %arg1[%c38] : memref<48xf32, #tpu.memory_space<smem>>
    %256 = vector.broadcast %255 : f32 to vector<1x256xf32>
    %257 = arith.mulf %256, %2 : vector<1x256xf32>
    %258 = arith.addf %254, %257 : vector<1x256xf32>
    %c39 = arith.constant 39 : index
    %259 = memref.load %arg1[%c39] : memref<48xf32, #tpu.memory_space<smem>>
    %260 = vector.broadcast %259 : f32 to vector<1x256xf32>
    %261 = arith.addf %258, %260 : vector<1x256xf32>
    %c40 = arith.constant 40 : index
    %262 = memref.load %arg1[%c40] : memref<48xf32, #tpu.memory_space<smem>>
    %263 = vector.broadcast %262 : f32 to vector<1x256xf32>
    %264 = arith.mulf %263, %0 : vector<1x256xf32>
    %c41 = arith.constant 41 : index
    %265 = memref.load %arg1[%c41] : memref<48xf32, #tpu.memory_space<smem>>
    %266 = vector.broadcast %265 : f32 to vector<1x256xf32>
    %267 = arith.mulf %266, %1 : vector<1x256xf32>
    %268 = arith.addf %264, %267 : vector<1x256xf32>
    %c42 = arith.constant 42 : index
    %269 = memref.load %arg1[%c42] : memref<48xf32, #tpu.memory_space<smem>>
    %270 = vector.broadcast %269 : f32 to vector<1x256xf32>
    %271 = arith.mulf %270, %2 : vector<1x256xf32>
    %272 = arith.addf %268, %271 : vector<1x256xf32>
    %c43 = arith.constant 43 : index
    %273 = memref.load %arg1[%c43] : memref<48xf32, #tpu.memory_space<smem>>
    %274 = vector.broadcast %273 : f32 to vector<1x256xf32>
    %275 = arith.addf %272, %274 : vector<1x256xf32>
    %c44 = arith.constant 44 : index
    %276 = memref.load %arg1[%c44] : memref<48xf32, #tpu.memory_space<smem>>
    %277 = vector.broadcast %276 : f32 to vector<1x256xf32>
    %278 = arith.mulf %277, %0 : vector<1x256xf32>
    %c45 = arith.constant 45 : index
    %279 = memref.load %arg1[%c45] : memref<48xf32, #tpu.memory_space<smem>>
    %280 = vector.broadcast %279 : f32 to vector<1x256xf32>
    %281 = arith.mulf %280, %1 : vector<1x256xf32>
    %282 = arith.addf %278, %281 : vector<1x256xf32>
    %c46 = arith.constant 46 : index
    %283 = memref.load %arg1[%c46] : memref<48xf32, #tpu.memory_space<smem>>
    %284 = vector.broadcast %283 : f32 to vector<1x256xf32>
    %285 = arith.mulf %284, %2 : vector<1x256xf32>
    %286 = arith.addf %282, %285 : vector<1x256xf32>
    %c47 = arith.constant 47 : index
    %287 = memref.load %arg1[%c47] : memref<48xf32, #tpu.memory_space<smem>>
    %288 = vector.broadcast %287 : f32 to vector<1x256xf32>
    %289 = arith.addf %286, %288 : vector<1x256xf32>
    %290 = vector.broadcast %261 : vector<1x256xf32> to vector<8x256xf32>
    %291 = arith.subf %4, %290 : vector<8x256xf32>
    %292 = math.absf %291 : vector<8x256xf32>
    %cst_35 = arith.constant 1.000000e+00 : f32
    %293 = vector.broadcast %cst_35 : f32 to vector<8x256xf32>
    %294 = arith.subf %293, %292 : vector<8x256xf32>
    %cst_36 = arith.constant 0.000000e+00 : f32
    %295 = vector.broadcast %cst_36 : f32 to vector<8x256xf32>
    %296 = arith.maximumf %294, %295 : vector<8x256xf32>
    %297 = vector.broadcast %275 : vector<1x256xf32> to vector<8x256xf32>
    %298 = arith.subf %6, %297 : vector<8x256xf32>
    %299 = math.absf %298 : vector<8x256xf32>
    %cst_37 = arith.constant 1.000000e+00 : f32
    %300 = vector.broadcast %cst_37 : f32 to vector<8x256xf32>
    %301 = arith.subf %300, %299 : vector<8x256xf32>
    %cst_38 = arith.constant 0.000000e+00 : f32
    %302 = vector.broadcast %cst_38 : f32 to vector<8x256xf32>
    %303 = arith.maximumf %301, %302 : vector<8x256xf32>
    %304 = vector.broadcast %289 : vector<1x256xf32> to vector<8x256xf32>
    %305 = arith.subf %8, %304 : vector<8x256xf32>
    %306 = math.absf %305 : vector<8x256xf32>
    %cst_39 = arith.constant 1.000000e+00 : f32
    %307 = vector.broadcast %cst_39 : f32 to vector<8x256xf32>
    %308 = arith.subf %307, %306 : vector<8x256xf32>
    %cst_40 = arith.constant 0.000000e+00 : f32
    %309 = vector.broadcast %cst_40 : f32 to vector<8x256xf32>
    %310 = arith.maximumf %308, %309 : vector<8x256xf32>
    %311 = vector.shape_cast %303 : vector<8x256xf32> to vector<8x1x256xf32>
    %312 = vector.shape_cast %296 : vector<8x256xf32> to vector<1x8x256xf32>
    %313 = vector.broadcast %311 : vector<8x1x256xf32> to vector<8x8x256xf32>
    %314 = vector.broadcast %312 : vector<1x8x256xf32> to vector<8x8x256xf32>
    %315 = arith.mulf %313, %314 : vector<8x8x256xf32>
    %316 = vector.shape_cast %315 : vector<8x8x256xf32> to vector<64x256xf32>
    %317 = vector.shape_cast %310 : vector<8x256xf32> to vector<8x1x256xf32>
    %318 = vector.shape_cast %316 : vector<64x256xf32> to vector<1x64x256xf32>
    %319 = vector.broadcast %317 : vector<8x1x256xf32> to vector<8x64x256xf32>
    %320 = vector.broadcast %318 : vector<1x64x256xf32> to vector<8x64x256xf32>
    %321 = arith.mulf %319, %320 : vector<8x64x256xf32>
    %322 = vector.shape_cast %321 : vector<8x64x256xf32> to vector<512x256xf32>
    %c3_41 = arith.constant 3 : index
    %c0_42 = arith.constant 0 : index
    %c0_43 = arith.constant 0 : index
    %323 = vector.load %arg3[%c3_41, %c0_42, %c0_43] : memref<4x32x512xbf16, #tpu.memory_space<vmem>>, vector<1x32x512xbf16>
    %324 = vector.shape_cast %323 : vector<1x32x512xbf16> to vector<32x512xbf16>
    %325 = arith.truncf %322 : vector<512x256xf32> to vector<512x256xbf16>
    %cst_44 = arith.constant dense<0.000000e+00> : vector<32x256xf32>
    %326 = tpu.matmul %324, %325, %cst_44 {dimension_numbers = #tpu.dot_dimension_numbers<[1], [0], [0], [1], [0, 0, 1, 1], [], []>} : vector<32x512xbf16>, vector<512x256xbf16>, vector<32x256xf32> -> vector<32x256xf32>
    %327 = arith.addf %247, %326 : vector<32x256xf32>
    %c0_45 = arith.constant 0 : index
    %c0_46 = arith.constant 0 : index
    %328 = vector.load %arg4[%c0_45, %c0_46] : memref<32x1xf32, #tpu.memory_space<vmem>>, vector<32x1xf32>
    %329 = vector.broadcast %328 : vector<32x1xf32> to vector<32x256xf32>
    %330 = arith.addf %327, %329 : vector<32x256xf32>
    %cst_47 = arith.constant 0.000000e+00 : f32
    %331 = vector.broadcast %cst_47 : f32 to vector<32x256xf32>
    %332 = arith.maximumf %330, %331 : vector<32x256xf32>
    %c0_48 = arith.constant 0 : index
    %c0_49 = arith.constant 0 : index
    %333 = vector.load %arg5[%c0_48, %c0_49] : memref<32x32xf32, #tpu.memory_space<vmem>>, vector<32x32xf32>
    %c0_50 = arith.constant 0 : index
    %c0_51 = arith.constant 0 : index
    %334 = vector.load %arg6[%c0_50, %c0_51] : memref<32x1xf32, #tpu.memory_space<vmem>>, vector<32x1xf32>
    %cst_52 = arith.constant dense<0.000000e+00> : vector<32x256xf32>
    %335 = tpu.matmul %333, %332, %cst_52 {dimension_numbers = #tpu.dot_dimension_numbers<[1], [0], [0], [1], [0, 0, 1, 1], [], []>} : vector<32x32xf32>, vector<32x256xf32>, vector<32x256xf32> -> vector<32x256xf32>
    %336 = vector.broadcast %334 : vector<32x1xf32> to vector<32x256xf32>
    %337 = arith.addf %335, %336 : vector<32x256xf32>
    %cst_53 = arith.constant 0.000000e+00 : f32
    %338 = vector.broadcast %cst_53 : f32 to vector<32x256xf32>
    %339 = arith.maximumf %337, %338 : vector<32x256xf32>
    %c0_54 = arith.constant 0 : index
    %c0_55 = arith.constant 0 : index
    %340 = vector.load %arg7[%c0_54, %c0_55] : memref<1x32xf32, #tpu.memory_space<vmem>>, vector<1x32xf32>
    %c0_56 = arith.constant 0 : index
    %c0_57 = arith.constant 0 : index
    %341 = vector.load %arg8[%c0_56, %c0_57] : memref<1x1xf32, #tpu.memory_space<vmem>>, vector<1x1xf32>
    %cst_58 = arith.constant dense<0.000000e+00> : vector<1x256xf32>
    %342 = tpu.matmul %340, %339, %cst_58 {dimension_numbers = #tpu.dot_dimension_numbers<[1], [0], [0], [1], [0, 0, 1, 1], [], []>} : vector<1x32xf32>, vector<32x256xf32>, vector<1x256xf32> -> vector<1x256xf32>
    %343 = vector.broadcast %341 : vector<1x1xf32> to vector<1x256xf32>
    %344 = arith.addf %342, %343 : vector<1x256xf32>
    %c0_59 = arith.constant 0 : index
    %c0_60 = arith.constant 0 : index
    %345 = vector.load %arg9[%c0_59, %c0_60] : memref<1x256xf32, #tpu.memory_space<vmem>>, vector<1x256xf32>
    tpu.vector_store %arg9[%c0_59, %c0_60], %344 {strides = array<i32>} : memref<1x256xf32, #tpu.memory_space<vmem>>, vector<1x256xf32>,
    return
  }
  func.func @transform_0(%arg0: i32) -> i32 {
    %c0_i32 = arith.constant 0 : i32
    %c0_i32_0 = arith.constant 0 : i32
    return %c0_i32 : i32
  }
  func.func @transform_1(%arg0: i32) -> (i32, i32) {
    %c0_i32 = arith.constant 0 : i32
    %c0_i32_0 = arith.constant 0 : i32
    return %c0_i32, %arg0 : i32, i32
  }
  func.func @transform_2(%arg0: i32) -> (i32, i32, i32) {
    %c0_i32 = arith.constant 0 : i32
    %c0_i32_0 = arith.constant 0 : i32
    %c0_i32_1 = arith.constant 0 : i32
    %c0_i32_2 = arith.constant 0 : i32
    return %c0_i32, %c0_i32_0, %c0_i32_1 : i32, i32, i32
  }
  func.func @transform_3(%arg0: i32) -> (i32, i32) {
    %c0_i32 = arith.constant 0 : i32
    %c0_i32_0 = arith.constant 0 : i32
    %c0_i32_1 = arith.constant 0 : i32
    return %c0_i32, %c0_i32_0 : i32, i32
  }
  func.func @transform_4(%arg0: i32) -> (i32, i32) {
    %c0_i32 = arith.constant 0 : i32
    %c0_i32_0 = arith.constant 0 : i32
    %c0_i32_1 = arith.constant 0 : i32
    return %c0_i32, %c0_i32_0 : i32, i32
  }
  func.func @transform_5(%arg0: i32) -> (i32, i32) {
    %c0_i32 = arith.constant 0 : i32
    %c0_i32_0 = arith.constant 0 : i32
    %c0_i32_1 = arith.constant 0 : i32
    return %c0_i32, %c0_i32_0 : i32, i32
  }
  func.func @transform_6(%arg0: i32) -> (i32, i32) {
    %c0_i32 = arith.constant 0 : i32
    %c0_i32_0 = arith.constant 0 : i32
    %c0_i32_1 = arith.constant 0 : i32
    return %c0_i32, %c0_i32_0 : i32, i32
  }
  func.func @transform_7(%arg0: i32) -> (i32, i32) {
    %c0_i32 = arith.constant 0 : i32
    %c0_i32_0 = arith.constant 0 : i32
    %c0_i32_1 = arith.constant 0 : i32
    return %c0_i32, %c0_i32_0 : i32, i32
  }
  func.func @transform_8(%arg0: i32) -> (i32, i32) {
    %c0_i32 = arith.constant 0 : i32
    %c0_i32_0 = arith.constant 0 : i32
    return %c0_i32, %arg0 : i32, i32
  }
}

</mosaic_0001>

<llo_original>
// kernel: tpu_custom_call.1
$region0: #{tpu_custom_call.1}
  #allocation0 [shape = 'u32[]', space=smem, size = 0x4, offset = 0x4, fixed_abs, tag = 'smem constant byte address 0x4 - core index']
  #allocation1 [shape = 'u32[144,128]{1,0:T(1,128)}', space=vmem, size = 0x12000, scoped, tag = 'internal scratch']
  #allocation2 [shape = 'f32[1,1]{1,0:T(1,128)S(1)}', space=vmem, size = 0x200, scoped, tag = 'scoped memory for tpu_custom_call.1']
  %s0 = inlined_call_operand.vmem [shape: f32[48], index: 0, kind: input, shape index: {}]
  %s1 = inlined_call_operand.vmem [shape: f32[3,512], index: 1, kind: input, shape index: {}]
  %s2 = inlined_call_operand.hbm [shape: bf16[4,32,512], index: 2, kind: input, shape index: {}]
  %s3 = inlined_call_operand.vmem [shape: f32[32,1], index: 3, kind: input, shape index: {}]
  %s4 = inlined_call_operand.vmem [shape: f32[32,32], index: 4, kind: input, shape index: {}]
  %s5 = inlined_call_operand.vmem [shape: f32[32,1], index: 5, kind: input, shape index: {}]
  %s6 = inlined_call_operand.vmem [shape: f32[1,32], index: 6, kind: input, shape index: {}]
  %s7 = inlined_call_operand.<no memory space> [shape: f32[1,1], index: 7, kind: input, shape index: {}]
  %s8 = inlined_call_operand.hbm [shape: f32[1,512], index: 8, kind: output, shape index: {}]
  %s9 = sld [smem:[#allocation0]]
  $region73: #{tpu_custom_call.1} parent=0
    _
  %s11 = ssub.s32 1, %s9
  %s12 = scalar_select 0, %s11, %s9
  %v13 = vstv %s7
  %14 = vst [vmem:[#allocation2] sm:$0x1] %v13
  $region1: #{tpu_custom_call.1} parent=0
    #allocation3 [shape = 'u8[512]{0}', space=smem, size = 0x200, scoped, tag = 'input window, operand 0, single buffered']
    #allocation4 [shape = 's32[2]{0}', space=sflag, size = 0x8, scoped, tag = 'scoped memory for tpu_custom_call.1']
    #allocation5 [shape = 's32[2]{0}', space=sflag, size = 0x8, scoped, tag = 'scoped memory for tpu_custom_call.1']
    #allocation6 [shape = 's32[2]{0}', space=sflag, size = 0x8, scoped, tag = 'scoped memory for tpu_custom_call.1']
    #allocation7 [shape = 'u8[131072]{0}', space=vmem, size = 0x20000, scoped, tag = 'input window, operand 2, single buffered']
    #allocation8 [shape = 'u8[2048]{0}', space=vmem, size = 0x800, scoped, tag = 'output window, operand 0']
    %15 = vsyncpa [#allocation6], 0
    %16 = vsyncpa [#allocation4], 0
    %17 = vsyncpa [#allocation5], 0
    %s18 = scalar_lea.sflag [#allocation5], 1
    %19 = vsyncpa %s18, 0
    loop: start=0, step=1, limit=4
    $region2: #{tpu_custom_call.1} parent=1 // loop_pre_header
      _
    $region3: #{tpu_custom_call.1} parent=1 // loop_header
      %s21 = sphi 0, %s25
      %p22 = scmp.ge.s32.totalorder %s21, 4
      %s29 = sphi 0, %s29
      %s31 = sphi 0, %s29
      %s32 = sphi 0, %s31
      %s46 = sphi 0, %s32
      %s52 = sphi 0, %s54
      %s55 = sphi 0, %s52
      %s56 = sphi 0, %s55
      %s72 = sphi 0, %s56
      %s76 = sphi 0, %s76
      %s78 = sphi 0, %s76
      %s79 = sphi 0, %s78
      %s93 = sphi 0, %s79
      %s97 = sphi 0, %s97
      %s99 = sphi 0, %s97
      %s100 = sphi 0, %s99
      %s114 = sphi 0, %s100
      %s118 = sphi 0, %s118
      %s120 = sphi 0, %s118
      %s121 = sphi 0, %s120
      %s135 = sphi 0, %s121
      %s139 = sphi 0, %s139
      %s141 = sphi 0, %s139
      %s142 = sphi 0, %s141
      %s156 = sphi 0, %s142
      %s160 = sphi 0, %s160
      %s162 = sphi 0, %s160
      %s163 = sphi 0, %s162
      %s177 = sphi 0, %s163
      %s181 = sphi 0, %s181
      %s183 = sphi 0, %s181
      %s184 = sphi 0, %s183
      %s198 = sphi 0, %s184
      %s204 = sphi 0, %s206
      %s207 = sphi 0, %s204
      %s208 = sphi 0, %s207
      %s224 = sphi 0, %s208
    $region4: #{tpu_custom_call.1} parent=1 // loop_header_branch
      %24 = sbr.rel (%p22) target = $region8
    $region5: #{tpu_custom_call.1} parent=1 // loop_body
      %s26 = ssub.s32 %s21, 1
      %s27 = ssub.s32 %s21, 2
      %s28 = sadd.s32 %s21, 1
      %s30 = sadd.s32 %s29, 1
      %p33 = scmp.eq.s32.totalorder %s21, 1
      %p34 = scmp.ne.s32.totalorder %s29, %s31
      %p35 = scmp.eq.s32.totalorder %s21, 0
      %p36 = por %p34, %p35
      %p37 = scmp.ne.s32.totalorder %s29, %s31
      %p38 = scmp.eq.s32.totalorder %s26, 1
      %p39 = por %p37, %p38
      %p40 = scmp.ne.s32.totalorder %s31, %s32
      %p41 = scmp.eq.s32.totalorder %s26, 0
      %p42 = por %p40, %p41
      %p43 = scmp.ne.s32.totalorder %s31, %s32
      %p44 = scmp.eq.s32.totalorder %s27, 1
      %p45 = por %p43, %p44
      %p47 = scmp.ne.s32.totalorder %s32, %s46
      %p48 = scmp.eq.s32.totalorder %s27, 0
      %p49 = por %p47, %p48
      %s50 = ssub.s32 %s21, %s28
      %p51 = scmp.eq.s32.totalorder %s50, 0
      %s53 = sadd.s32 %s52, 1
      %s54 = scalar_select %p51, %s52, %s53
      %p57 = pneg %p51
      %p58 = scmp.eq.s32.totalorder %s21, 1
      %p59 = por %p57, %p58
      %p60 = scmp.ne.s32.totalorder %s52, %s55
      %p61 = scmp.eq.s32.totalorder %s21, 0
      %p62 = por %p60, %p61
      %p63 = scmp.ne.s32.totalorder %s52, %s55
      %p64 = scmp.eq.s32.totalorder %s26, 1
      %p65 = por %p63, %p64
      %p66 = scmp.ne.s32.totalorder %s55, %s56
      %p67 = scmp.eq.s32.totalorder %s26, 0
      %p68 = por %p66, %p67
      %p69 = scmp.ne.s32.totalorder %s55, %s56
      %p70 = scmp.eq.s32.totalorder %s27, 1
      %p71 = por %p69, %p70
      %p73 = scmp.ne.s32.totalorder %s56, %s72
      %p74 = scmp.eq.s32.totalorder %s27, 0
      %p75 = por %p73, %p74
      %s77 = sadd.s32 %s76, 1
      %p80 = scmp.eq.s32.totalorder %s21, 1
      %p81 = scmp.ne.s32.totalorder %s76, %s78
      %p82 = scmp.eq.s32.totalorder %s21, 0
      %p83 = por %p81, %p82
      %p84 = scmp.ne.s32.totalorder %s76, %s78
      %p85 = scmp.eq.s32.totalorder %s26, 1
      %p86 = por %p84, %p85
      %p87 = scmp.ne.s32.totalorder %s78, %s79
      %p88 = scmp.eq.s32.totalorder %s26, 0
      %p89 = por %p87, %p88
      %p90 = scmp.ne.s32.totalorder %s78, %s79
      %p91 = scmp.eq.s32.totalorder %s27, 1
      %p92 = por %p90, %p91
      %p94 = scmp.ne.s32.totalorder %s79, %s93
      %p95 = scmp.eq.s32.totalorder %s27, 0
      %p96 = por %p94, %p95
      %s98 = sadd.s32 %s97, 1
      %p101 = scmp.eq.s32.totalorder %s21, 1
      %p102 = scmp.ne.s32.totalorder %s97, %s99
      %p103 = scmp.eq.s32.totalorder %s21, 0
      %p104 = por %p102, %p103
      %p105 = scmp.ne.s32.totalorder %s97, %s99
      %p106 = scmp.eq.s32.totalorder %s26, 1
      %p107 = por %p105, %p106
      %p108 = scmp.ne.s32.totalorder %s99, %s100
      %p109 = scmp.eq.s32.totalorder %s26, 0
      %p110 = por %p108, %p109
      %p111 = scmp.ne.s32.totalorder %s99, %s100
      %p112 = scmp.eq.s32.totalorder %s27, 1
      %p113 = por %p111, %p112
      %p115 = scmp.ne.s32.totalorder %s100, %s114
      %p116 = scmp.eq.s32.totalorder %s27, 0
      %p117 = por %p115, %p116
      %s119 = sadd.s32 %s118, 1
      %p122 = scmp.eq.s32.totalorder %s21, 1
      %p123 = scmp.ne.s32.totalorder %s118, %s120
      %p124 = scmp.eq.s32.totalorder %s21, 0
      %p125 = por %p123, %p124
      %p126 = scmp.ne.s32.totalorder %s118, %s120
      %p127 = scmp.eq.s32.totalorder %s26, 1
      %p128 = por %p126, %p127
      %p129 = scmp.ne.s32.totalorder %s120, %s121
      %p130 = scmp.eq.s32.totalorder %s26, 0
      %p131 = por %p129, %p130
      %p132 = scmp.ne.s32.totalorder %s120, %s121
      %p133 = scmp.eq.s32.totalorder %s27, 1
      %p134 = por %p132, %p133
      %p136 = scmp.ne.s32.totalorder %s121, %s135
      %p137 = scmp.eq.s32.totalorder %s27, 0
      %p138 = por %p136, %p137
      %s140 = sadd.s32 %s139, 1
      %p143 = scmp.eq.s32.totalorder %s21, 1
      %p144 = scmp.ne.s32.totalorder %s139, %s141
      %p145 = scmp.eq.s32.totalorder %s21, 0
      %p146 = por %p144, %p145
      %p147 = scmp.ne.s32.totalorder %s139, %s141
      %p148 = scmp.eq.s32.totalorder %s26, 1
      %p149 = por %p147, %p148
      %p150 = scmp.ne.s32.totalorder %s141, %s142
      %p151 = scmp.eq.s32.totalorder %s26, 0
      %p152 = por %p150, %p151
      %p153 = scmp.ne.s32.totalorder %s141, %s142
      %p154 = scmp.eq.s32.totalorder %s27, 1
      %p155 = por %p153, %p154
      %p157 = scmp.ne.s32.totalorder %s142, %s156
      %p158 = scmp.eq.s32.totalorder %s27, 0
      %p159 = por %p157, %p158
      %s161 = sadd.s32 %s160, 1
      %p164 = scmp.eq.s32.totalorder %s21, 1
      %p165 = scmp.ne.s32.totalorder %s160, %s162
      %p166 = scmp.eq.s32.totalorder %s21, 0
      %p167 = por %p165, %p166
      %p168 = scmp.ne.s32.totalorder %s160, %s162
      %p169 = scmp.eq.s32.totalorder %s26, 1
      %p170 = por %p168, %p169
      %p171 = scmp.ne.s32.totalorder %s162, %s163
      %p172 = scmp.eq.s32.totalorder %s26, 0
      %p173 = por %p171, %p172
      %p174 = scmp.ne.s32.totalorder %s162, %s163
      %p175 = scmp.eq.s32.totalorder %s27, 1
      %p176 = por %p174, %p175
      %p178 = scmp.ne.s32.totalorder %s163, %s177
      %p179 = scmp.eq.s32.totalorder %s27, 0
      %p180 = por %p178, %p179
      %s182 = sadd.s32 %s181, 1
      %p185 = scmp.eq.s32.totalorder %s21, 1
      %p186 = scmp.ne.s32.totalorder %s181, %s183
      %p187 = scmp.eq.s32.totalorder %s21, 0
      %p188 = por %p186, %p187
      %p189 = scmp.ne.s32.totalorder %s181, %s183
      %p190 = scmp.eq.s32.totalorder %s26, 1
      %p191 = por %p189, %p190
      %p192 = scmp.ne.s32.totalorder %s183, %s184
      %p193 = scmp.eq.s32.totalorder %s26, 0
      %p194 = por %p192, %p193
      %p195 = scmp.ne.s32.totalorder %s183, %s184
      %p196 = scmp.eq.s32.totalorder %s27, 1
      %p197 = por %p195, %p196
      %p199 = scmp.ne.s32.totalorder %s184, %s198
      %p200 = scmp.eq.s32.totalorder %s27, 0
      %p201 = por %p199, %p200
      %s202 = ssub.s32 %s21, %s28
      %p203 = scmp.eq.s32.totalorder %s202, 0
      %s205 = sadd.s32 %s204, 1
      %s206 = scalar_select %p203, %s204, %s205
      %p209 = pneg %p203
      %p210 = scmp.eq.s32.totalorder %s21, 1
      %p211 = por %p209, %p210
      %p212 = scmp.ne.s32.totalorder %s204, %s207
      %p213 = scmp.eq.s32.totalorder %s21, 0
      %p214 = por %p212, %p213
      %p215 = scmp.ne.s32.totalorder %s204, %s207
      %p216 = scmp.eq.s32.totalorder %s26, 1
      %p217 = por %p215, %p216
      %p218 = scmp.ne.s32.totalorder %s207, %s208
      %p219 = scmp.eq.s32.totalorder %s26, 0
      %p220 = por %p218, %p219
      %p221 = scmp.ne.s32.totalorder %s207, %s208
      %p222 = scmp.eq.s32.totalorder %s27, 1
      %p223 = por %p221, %p222
      %p225 = scmp.ne.s32.totalorder %s208, %s224
      %p226 = scmp.eq.s32.totalorder %s27, 0
      %p227 = por %p225, %p226
      %p228 = scmp.le.s32.totalorder 1, %s21
      %p229 = scmp.lt.s32.totalorder %s21, 3
      %p230 = pnand %p228, %p229
      %p231 = pneg %p230
      // Predicated region
      $region9: #{tpu_custom_call.1} parent=5 // pred_check
        _
      $region10: #{tpu_custom_call.1} parent=5 // pred_check_branch
        %233 = sbr.rel (%p230) target = $region12
      $region11: #{tpu_custom_call.1} parent=5 // pred_region
        %s234 = ssub.s32 %s21, 1
        // Predicated region
        $region13: #{tpu_custom_call.1} parent=11 // pred_check
          %p235 = pneg %p42
        $region14: #{tpu_custom_call.1} parent=11 // pred_check_branch
          %237 = sbr.rel (%p235) target = $region16
        $region15: #{tpu_custom_call.1} parent=11 // pred_region
          %s239 = ssub.s32 16, 16
          %240 = vsyncadd [#allocation6], %s239
          %s242 = sshll.u32 %s0, 4
          %s243 = int_to_ptr.vmem [resolvable:$true] %s242
          %245 = dma.vmem_to_smem %s243, 16, [#allocation3], [#allocation6]
        $region16: #{tpu_custom_call.1} parent=11 // pred_fallthru
          _
        // Predicated region
        $region17: #{tpu_custom_call.1} parent=11 // pred_check
          %p246 = pneg %p89
        $region18: #{tpu_custom_call.1} parent=11 // pred_check_branch
          %248 = sbr.rel (%p246) target = $region20
        $region19: #{tpu_custom_call.1} parent=11 // pred_region
          %s250 = ssub.s32 4096, 4096
          %251 = vsyncadd [#allocation4], %s250
          %s252 = sshll.u32 [#allocation7], 4
          %s253 = int_to_ptr.vmem [resolvable:$true] %s252
          %258 = dma.hbm_to_vmem [thread:$0]  %s2, 4096, %s253, [#allocation4], 256, 256, 16
        $region20: #{tpu_custom_call.1} parent=11 // pred_fallthru
          _
        // Predicated region
        $region21: #{tpu_custom_call.1} parent=11 // pred_check
          %p259 = pneg %p110
        $region22: #{tpu_custom_call.1} parent=11 // pred_check_branch
          %261 = sbr.rel (%p259) target = $region24
        $region23: #{tpu_custom_call.1} parent=11 // pred_region
          _
        $region24: #{tpu_custom_call.1} parent=11 // pred_fallthru
          _
        // Predicated region
        $region25: #{tpu_custom_call.1} parent=11 // pred_check
          %p262 = pneg %p131
        $region26: #{tpu_custom_call.1} parent=11 // pred_check_branch
          %264 = sbr.rel (%p262) target = $region28
        $region27: #{tpu_custom_call.1} parent=11 // pred_region
          _
        $region28: #{tpu_custom_call.1} parent=11 // pred_fallthru
          _
        // Predicated region
        $region29: #{tpu_custom_call.1} parent=11 // pred_check
          %p265 = pneg %p152
        $region30: #{tpu_custom_call.1} parent=11 // pred_check_branch
          %267 = sbr.rel (%p265) target = $region32
        $region31: #{tpu_custom_call.1} parent=11 // pred_region
          _
        $region32: #{tpu_custom_call.1} parent=11 // pred_fallthru
          _
        // Predicated region
        $region33: #{tpu_custom_call.1} parent=11 // pred_check
          %p268 = pneg %p173
        $region34: #{tpu_custom_call.1} parent=11 // pred_check_branch
          %270 = sbr.rel (%p268) target = $region36
        $region35: #{tpu_custom_call.1} parent=11 // pred_region
          _
        $region36: #{tpu_custom_call.1} parent=11 // pred_fallthru
          _
        // Predicated region
        $region37: #{tpu_custom_call.1} parent=11 // pred_check
          %p271 = pneg %p194
        $region38: #{tpu_custom_call.1} parent=11 // pred_check_branch
          %273 = sbr.rel (%p271) target = $region40
        $region39: #{tpu_custom_call.1} parent=11 // pred_region
          _
        $region40: #{tpu_custom_call.1} parent=11 // pred_fallthru
          _
      $region12: #{tpu_custom_call.1} parent=5 // pred_fallthru
        _
      %p274 = scmp.lt.s32.totalorder %s21, 2
      // Predicated region
      $region41: #{tpu_custom_call.1} parent=5 // pred_check
        %p275 = pneg %p274
      $region42: #{tpu_custom_call.1} parent=5 // pred_check_branch
        %277 = sbr.rel (%p275) target = $region44
      $region43: #{tpu_custom_call.1} parent=5 // pred_region
        // Predicated region
        $region45: #{tpu_custom_call.1} parent=43 // pred_check
          %p278 = pneg %p62
        $region46: #{tpu_custom_call.1} parent=43 // pred_check_branch
          %280 = sbr.rel (%p278) target = $region48
        $region47: #{tpu_custom_call.1} parent=43 // pred_region
          %s281 = smul.u32 2, %s21
          %p282 = scmp.lt.s32.totalorder %s281, 3
          %s283 = scalar_select %p282, %s281, 3
          %s284 = smul.addr %s283, 4
          %s285 = scalar_lea.vmem %s1, %s284
          %s286 = smul.u32 2, %s21
        $region48: #{tpu_custom_call.1} parent=43 // pred_fallthru
          _
      $region44: #{tpu_custom_call.1} parent=5 // pred_fallthru
        _
      %p287 = scmp.le.s32.totalorder 1, %s21
      %p288 = scmp.lt.s32.totalorder %s21, 3
      %p289 = pnand %p287, %p288
      %p290 = pneg %p289
      // Predicated region
      $region49: #{tpu_custom_call.1} parent=5 // pred_check
        _
      $region50: #{tpu_custom_call.1} parent=5 // pred_check_branch
        %292 = sbr.rel (%p289) target = $region52
      $region51: #{tpu_custom_call.1} parent=5 // pred_region
        %s293 = ssub.s32 %s21, 1
        // Predicated region
        $region53: #{tpu_custom_call.1} parent=51 // pred_check
          %p294 = pneg %p42
        $region54: #{tpu_custom_call.1} parent=51 // pred_check_branch
          %296 = sbr.rel (%p294) target = $region56
        $region55: #{tpu_custom_call.1} parent=51 // pred_region
          %297 = dma.done [#allocation6], 16
        $region56: #{tpu_custom_call.1} parent=51 // pred_fallthru
          _
        // Predicated region
        $region57: #{tpu_custom_call.1} parent=51 // pred_check
          %p298 = pneg %p89
        $region58: #{tpu_custom_call.1} parent=51 // pred_check_branch
          %300 = sbr.rel (%p298) target = $region60
        $region59: #{tpu_custom_call.1} parent=51 // pred_region
          %301 = dma.done [#allocation4], 4096
        $region60: #{tpu_custom_call.1} parent=51 // pred_fallthru
          _
        %302 = sfence
        %p303 = pneg %p42
        %p304 = pneg %p39
        %s305 = smul.u32 2, %s26
        %p306 = scmp.lt.s32.totalorder %s305, 3
        %s307 = scalar_select %p306, %s305, 3
        %s308 = smul.addr %s307, 4
        %s309 = scalar_lea.vmem %s1, %s308
        %p310 = pneg %p68
        %p311 = pneg %p65
        %p312 = pneg %p89
        %p313 = pneg %p86
        %p314 = pneg %p110
        %p315 = pneg %p107
        %p316 = pneg %p131
        %p317 = pneg %p128
        %p318 = pneg %p152
        %p319 = pneg %p149
        %p320 = pneg %p173
        %p321 = pneg %p170
        %p322 = pneg %p194
        %p323 = pneg %p191
        %p324 = pneg %p220
        %p325 = pneg %p217
        %s326 = sand.u32 %s207, 1
        %s327 = scalar_lea.sflag [#allocation5], %s326
        %s328 = sand.u32 %s207, 1
        %s329 = smul.addr %s328, 2
        %s330 = scalar_lea.vmem [#allocation8], %s329
        %s331 = smul.u32 2, %s26
        %p332 = scmp.lt.s32.totalorder %s331, 3
        %s333 = scalar_select %p332, %s331, 3
        %s334 = smul.addr %s333, 4
        %s335 = scalar_lea.vmem %s1, %s334
        %s336 = smul.u32 2, %s26
        %s337 = smul.u32 2, %s26
        %v338 = vld [vmem:[%s335] ss:$4 sm:$0x3]
        %s339 = scalar_lea.vmem %s335, 1
        %v340 = vld [vmem:[%s339] ss:$4 sm:$0x3]
        %s341 = scalar_lea.vmem %s335, 2
        %v342 = vld [vmem:[%s341] ss:$4 sm:$0x3]
        %v343 = vlaneseq
        %v344 = vshrl.u32 %v343, 7
        %v345 = vcvt.s32.f32 %v344
        %s346 = sld [smem:[#allocation3]]
        %v347 = vstv %s346
        %v348 = vmul.f32 %v347, %v338
        %s349 = sld [smem:[#allocation3 + $0x1]]
        %v350 = vstv %s349
        %v351 = vmul.f32 %v350, %v340
        %v352 = vadd.f32 %v348, %v351
        %s353 = sld [smem:[#allocation3 + $0x2]]
        %v354 = vstv %s353
        %v355 = vmul.f32 %v354, %v342
        %v356 = vadd.f32 %v352, %v355
        %s357 = sld [smem:[#allocation3 + $0x3]]
        %v358 = vstv %s357
        %v359 = vadd.f32 %v356, %v358
        %s360 = sld [smem:[#allocation3 + $0x4]]
        %v361 = vstv %s360
        %v362 = vmul.f32 %v361, %v338
        %s363 = sld [smem:[#allocation3 + $0x5]]
        %v364 = vstv %s363
        %v365 = vmul.f32 %v364, %v340
        %v366 = vadd.f32 %v362, %v365
        %s367 = sld [smem:[#allocation3 + $0x6]]
        %v368 = vstv %s367
        %v369 = vmul.f32 %v368, %v342
        %v370 = vadd.f32 %v366, %v369
        %s371 = sld [smem:[#allocation3 + $0x7]]
        %v372 = vstv %s371
        %v373 = vadd.f32 %v370, %v372
        %s374 = sld [smem:[#allocation3 + $0x8]]
        %v375 = vstv %s374
        %v376 = vmul.f32 %v375, %v338
        %s377 = sld [smem:[#allocation3 + $0x9]]
        %v378 = vstv %s377
        %v379 = vmul.f32 %v378, %v340
        %v380 = vadd.f32 %v376, %v379
        %s381 = sld [smem:[#allocation3 + $0xa]]
        %v382 = vstv %s381
        %v383 = vmul.f32 %v382, %v342
        %v384 = vadd.f32 %v380, %v383
        %s385 = sld [smem:[#allocation3 + $0xb]]
        %v386 = vstv %s385
        %v387 = vadd.f32 %v384, %v386
        %v389 = vlaneseq
        %v390 = vshrl.u32 %v389, 7
        %v391 = vsub.s32 0, %v390
        %v392 = vrot.slane %v359, %v391
        %v393 = vlaneseq
        %v394 = vshrl.u32 %v393, 7
        %v395 = vsub.s32 1, %v394
        %v396 = vrot.slane %v359, %v395
        %v399 = vsub.f32 %v345, %v392
        %v400 = vsub.f32 %v345, %v396
        %v401 = vand.u32 2147483647, %v399
        %v402 = vand.u32 2147483647, %v400
        %v403 = vsub.f32 1.0, %v401
        %v404 = vsub.f32 1.0, %v402
        %v405 = vmax.f32 %v403, 0.0
        %v406 = vmax.f32 %v404, 0.0
        %v408 = vlaneseq
        %v409 = vshrl.u32 %v408, 7
        %v410 = vsub.s32 0, %v409
        %v411 = vrot.slane %v373, %v410
        %v412 = vlaneseq
        %v413 = vshrl.u32 %v412, 7
        %v414 = vsub.s32 1, %v413
        %v415 = vrot.slane %v373, %v414
        %v418 = vsub.f32 %v345, %v411
        %v419 = vsub.f32 %v345, %v415
        %v420 = vand.u32 2147483647, %v418
        %v421 = vand.u32 2147483647, %v419
        %v422 = vsub.f32 1.0, %v420
        %v423 = vsub.f32 1.0, %v421
        %v424 = vmax.f32 %v422, 0.0
        %v425 = vmax.f32 %v423, 0.0
        %v427 = vlaneseq
        %v428 = vshrl.u32 %v427, 7
        %v429 = vsub.s32 0, %v428
        %v430 = vrot.slane %v387, %v429
        %v431 = vlaneseq
        %v432 = vshrl.u32 %v431, 7
        %v433 = vsub.s32 1, %v432
        %v434 = vrot.slane %v387, %v433
        %v437 = vsub.f32 %v345, %v430
        %v438 = vsub.f32 %v345, %v434
        %v439 = vand.u32 2147483647, %v437
        %v440 = vand.u32 2147483647, %v438
        %v441 = vsub.f32 1.0, %v439
        %v442 = vsub.f32 1.0, %v440
        %v443 = vmax.f32 %v441, 0.0
        %v444 = vmax.f32 %v442, 0.0
        %v447 = vcombine.low %v424, %v425
        %v448 = vcombine.high %v424, %v425
        %v450 = vunpack.c.l.s4 1966171168
        %v451 = vunpack.c.0.s8 %v450
        %v452 = vlaneseq
        %v453 = vshrl.u32 %v452, 7
        %v454 = vsub.s32 %v451, %v453
        %v455 = vrot.slane %v447, %v454
        %v457 = vunpack.c.l.s4 1966171168
        %v458 = vunpack.c.0.s8 %v457
        %v459 = vlaneseq
        %v460 = vshrl.u32 %v459, 7
        %v461 = vsub.s32 %v458, %v460
        %v462 = vrot.slane %v448, %v461
        %v463 = vcombine.high %v455, %v455
        %v464 = vcombine.high %v462, %v462
        %v466 = vunpack.c.l.s4 1966171168
        %v467 = vunpack.c.0.s8 %v466
        %v468 = vlaneseq
        %v469 = vshrl.u32 %v468, 7
        %v470 = vsub.s32 %v467, %v469
        %v471 = vrot.slane %v455, %v470
        %v473 = vunpack.c.l.s4 1966171168
        %v474 = vunpack.c.0.s8 %v473
        %v475 = vlaneseq
        %v476 = vshrl.u32 %v475, 7
        %v477 = vsub.s32 %v474, %v476
        %v478 = vrot.slane %v462, %v477
        %v480 = vunpack.c.l.s4 1966171168
        %v481 = vunpack.c.0.s8 %v480
        %v482 = vlaneseq
        %v483 = vshrl.u32 %v482, 7
        %v484 = vsub.s32 %v481, %v483
        %v485 = vrot.slane %v463, %v484
        %v487 = vunpack.c.l.s4 1966171168
        %v488 = vunpack.c.0.s8 %v487
        %v489 = vlaneseq
        %v490 = vshrl.u32 %v489, 7
        %v491 = vsub.s32 %v488, %v490
        %v492 = vrot.slane %v464, %v491
        %v493 = vcombine.high %v471, %v471
        %v494 = vcombine.high %v478, %v478
        %v495 = vcombine.high %v485, %v485
        %v496 = vcombine.high %v492, %v492
        %v497 = vlaneseq
        %v498 = vshrl.u32 %v497, 7
        %v499 = vsub.s32 0, %v498
        %v500 = vrot.slane %v471, %v499
        %v501 = vlaneseq
        %v502 = vshrl.u32 %v501, 7
        %v503 = vsub.s32 1, %v502
        %v504 = vrot.slane %v471, %v503
        %v505 = vlaneseq
        %v506 = vshrl.u32 %v505, 7
        %v507 = vsub.s32 0, %v506
        %v508 = vrot.slane %v485, %v507
        %v509 = vlaneseq
        %v510 = vshrl.u32 %v509, 7
        %v511 = vsub.s32 1, %v510
        %v512 = vrot.slane %v485, %v511
        %v513 = vlaneseq
        %v514 = vshrl.u32 %v513, 7
        %v515 = vsub.s32 0, %v514
        %v516 = vrot.slane %v493, %v515
        %v517 = vlaneseq
        %v518 = vshrl.u32 %v517, 7
        %v519 = vsub.s32 1, %v518
        %v520 = vrot.slane %v493, %v519
        %v521 = vlaneseq
        %v522 = vshrl.u32 %v521, 7
        %v523 = vsub.s32 0, %v522
        %v524 = vrot.slane %v495, %v523
        %v525 = vlaneseq
        %v526 = vshrl.u32 %v525, 7
        %v527 = vsub.s32 1, %v526
        %v528 = vrot.slane %v495, %v527
        %v529 = vlaneseq
        %v530 = vshrl.u32 %v529, 7
        %v531 = vsub.s32 0, %v530
        %v532 = vrot.slane %v478, %v531
        %v533 = vlaneseq
        %v534 = vshrl.u32 %v533, 7
        %v535 = vsub.s32 1, %v534
        %v536 = vrot.slane %v478, %v535
        %v537 = vlaneseq
        %v538 = vshrl.u32 %v537, 7
        %v539 = vsub.s32 0, %v538
        %v540 = vrot.slane %v492, %v539
        %v541 = vlaneseq
        %v542 = vshrl.u32 %v541, 7
        %v543 = vsub.s32 1, %v542
        %v544 = vrot.slane %v492, %v543
        %v545 = vlaneseq
        %v546 = vshrl.u32 %v545, 7
        %v547 = vsub.s32 0, %v546
        %v548 = vrot.slane %v494, %v547
        %v549 = vlaneseq
        %v550 = vshrl.u32 %v549, 7
        %v551 = vsub.s32 1, %v550
        %v552 = vrot.slane %v494, %v551
        %v553 = vlaneseq
        %v554 = vshrl.u32 %v553, 7
        %v555 = vsub.s32 0, %v554
        %v556 = vrot.slane %v496, %v555
        %v557 = vlaneseq
        %v558 = vshrl.u32 %v557, 7
        %v559 = vsub.s32 1, %v558
        %v560 = vrot.slane %v496, %v559
        %v577 = vmul.f32 %v500, %v405
        %v578 = vmul.f32 %v504, %v406
        %v579 = vmul.f32 %v508, %v405
        %v580 = vmul.f32 %v512, %v406
        %v581 = vmul.f32 %v516, %v405
        %v582 = vmul.f32 %v520, %v406
        %v583 = vmul.f32 %v524, %v405
        %v584 = vmul.f32 %v528, %v406
        %v585 = vmul.f32 %v532, %v405
        %v586 = vmul.f32 %v536, %v406
        %v587 = vmul.f32 %v540, %v405
        %v588 = vmul.f32 %v544, %v406
        %v589 = vmul.f32 %v548, %v405
        %v590 = vmul.f32 %v552, %v406
        %v591 = vmul.f32 %v556, %v405
        %v592 = vmul.f32 %v560, %v406
        %v595 = vcombine.low %v443, %v444
        %v596 = vcombine.high %v443, %v444
        %v598 = vunpack.c.l.s4 1966171168
        %v599 = vunpack.c.0.s8 %v598
        %v600 = vlaneseq
        %v601 = vshrl.u32 %v600, 7
        %v602 = vsub.s32 %v599, %v601
        %v603 = vrot.slane %v595, %v602
        %v605 = vunpack.c.l.s4 1966171168
        %v606 = vunpack.c.0.s8 %v605
        %v607 = vlaneseq
        %v608 = vshrl.u32 %v607, 7
        %v609 = vsub.s32 %v606, %v608
        %v610 = vrot.slane %v596, %v609
        %v611 = vcombine.high %v603, %v603
        %v612 = vcombine.high %v610, %v610
        %v614 = vunpack.c.l.s4 1966171168
        %v615 = vunpack.c.0.s8 %v614
        %v616 = vlaneseq
        %v617 = vshrl.u32 %v616, 7
        %v618 = vsub.s32 %v615, %v617
        %v619 = vrot.slane %v603, %v618
        %v621 = vunpack.c.l.s4 1966171168
        %v622 = vunpack.c.0.s8 %v621
        %v623 = vlaneseq
        %v624 = vshrl.u32 %v623, 7
        %v625 = vsub.s32 %v622, %v624
        %v626 = vrot.slane %v610, %v625
        %v628 = vunpack.c.l.s4 1966171168
        %v629 = vunpack.c.0.s8 %v628
        %v630 = vlaneseq
        %v631 = vshrl.u32 %v630, 7
        %v632 = vsub.s32 %v629, %v631
        %v633 = vrot.slane %v611, %v632
        %v635 = vunpack.c.l.s4 1966171168
        %v636 = vunpack.c.0.s8 %v635
        %v637 = vlaneseq
        %v638 = vshrl.u32 %v637, 7
        %v639 = vsub.s32 %v636, %v638
        %v640 = vrot.slane %v612, %v639
        %v641 = vcombine.high %v619, %v619
        %v642 = vcombine.high %v626, %v626
        %v643 = vcombine.high %v633, %v633
        %v644 = vcombine.high %v640, %v640
        %v645 = vlaneseq
        %v646 = vshrl.u32 %v645, 7
        %v647 = vsub.s32 0, %v646
        %v648 = vrot.slane %v619, %v647
        %v649 = vlaneseq
        %v650 = vshrl.u32 %v649, 7
        %v651 = vsub.s32 1, %v650
        %v652 = vrot.slane %v619, %v651
        %v653 = vlaneseq
        %v654 = vshrl.u32 %v653, 7
        %v655 = vsub.s32 0, %v654
        %v656 = vrot.slane %v633, %v655
        %v657 = vlaneseq
        %v658 = vshrl.u32 %v657, 7
        %v659 = vsub.s32 1, %v658
        %v660 = vrot.slane %v633, %v659
        %v661 = vlaneseq
        %v662 = vshrl.u32 %v661, 7
        %v663 = vsub.s32 0, %v662
        %v664 = vrot.slane %v641, %v663
        %v665 = vlaneseq
        %v666 = vshrl.u32 %v665, 7
        %v667 = vsub.s32 1, %v666
        %v668 = vrot.slane %v641, %v667
        %v669 = vlaneseq
        %v670 = vshrl.u32 %v669, 7
        %v671 = vsub.s32 0, %v670
        %v672 = vrot.slane %v643, %v671
        %v673 = vlaneseq
        %v674 = vshrl.u32 %v673, 7
        %v675 = vsub.s32 1, %v674
        %v676 = vrot.slane %v643, %v675
        %v677 = vlaneseq
        %v678 = vshrl.u32 %v677, 7
        %v679 = vsub.s32 0, %v678
        %v680 = vrot.slane %v626, %v679
        %v681 = vlaneseq
        %v682 = vshrl.u32 %v681, 7
        %v683 = vsub.s32 1, %v682
        %v684 = vrot.slane %v626, %v683
        %v685 = vlaneseq
        %v686 = vshrl.u32 %v685, 7
        %v687 = vsub.s32 0, %v686
        %v688 = vrot.slane %v640, %v687
        %v689 = vlaneseq
        %v690 = vshrl.u32 %v689, 7
        %v691 = vsub.s32 1, %v690
        %v692 = vrot.slane %v640, %v691
        %v693 = vlaneseq
        %v694 = vshrl.u32 %v693, 7
        %v695 = vsub.s32 0, %v694
        %v696 = vrot.slane %v642, %v695
        %v697 = vlaneseq
        %v698 = vshrl.u32 %v697, 7
        %v699 = vsub.s32 1, %v698
        %v700 = vrot.slane %v642, %v699
        %v701 = vlaneseq
        %v702 = vshrl.u32 %v701, 7
        %v703 = vsub.s32 0, %v702
        %v704 = vrot.slane %v644, %v703
        %v705 = vlaneseq
        %v706 = vshrl.u32 %v705, 7
        %v707 = vsub.s32 1, %v706
        %v708 = vrot.slane %v644, %v707
        %v725 = vmul.f32 %v648, %v577
        %v726 = vmul.f32 %v652, %v578
        %v727 = vmul.f32 %v648, %v579
        %v728 = vmul.f32 %v652, %v580
        %v729 = vmul.f32 %v648, %v581
        %v730 = vmul.f32 %v652, %v582
        %v731 = vmul.f32 %v648, %v583
        %v732 = vmul.f32 %v652, %v584
        %v733 = vmul.f32 %v648, %v585
        %v734 = vmul.f32 %v652, %v586
        %v735 = vmul.f32 %v648, %v587
        %v736 = vmul.f32 %v652, %v588
        %v737 = vmul.f32 %v648, %v589
        %v738 = vmul.f32 %v652, %v590
        %v739 = vmul.f32 %v648, %v591
        %v740 = vmul.f32 %v652, %v592
        %v741 = vmul.f32 %v656, %v577
        %v742 = vmul.f32 %v660, %v578
        %v743 = vmul.f32 %v656, %v579
        %v744 = vmul.f32 %v660, %v580
        %v745 = vmul.f32 %v656, %v581
        %v746 = vmul.f32 %v660, %v582
        %v747 = vmul.f32 %v656, %v583
        %v748 = vmul.f32 %v660, %v584
        %v749 = vmul.f32 %v656, %v585
        %v750 = vmul.f32 %v660, %v586
        %v751 = vmul.f32 %v656, %v587
        %v752 = vmul.f32 %v660, %v588
        %v753 = vmul.f32 %v656, %v589
        %v754 = vmul.f32 %v660, %v590
        %v755 = vmul.f32 %v656, %v591
        %v756 = vmul.f32 %v660, %v592
        %v757 = vmul.f32 %v664, %v577
        %v758 = vmul.f32 %v668, %v578
        %v759 = vmul.f32 %v664, %v579
        %v760 = vmul.f32 %v668, %v580
        %v761 = vmul.f32 %v664, %v581
        %v762 = vmul.f32 %v668, %v582
        %v763 = vmul.f32 %v664, %v583
        %v764 = vmul.f32 %v668, %v584
        %v765 = vmul.f32 %v664, %v585
        %v766 = vmul.f32 %v668, %v586
        %v767 = vmul.f32 %v664, %v587
        %v768 = vmul.f32 %v668, %v588
        %v769 = vmul.f32 %v664, %v589
        %v770 = vmul.f32 %v668, %v590
        %v771 = vmul.f32 %v664, %v591
        %v772 = vmul.f32 %v668, %v592
        %v773 = vmul.f32 %v672, %v577
        %v774 = vmul.f32 %v676, %v578
        %v775 = vmul.f32 %v672, %v579
        %v776 = vmul.f32 %v676, %v580
        %v777 = vmul.f32 %v672, %v581
        %v778 = vmul.f32 %v676, %v582
        %v779 = vmul.f32 %v672, %v583
        %v780 = vmul.f32 %v676, %v584
        %v781 = vmul.f32 %v672, %v585
        %v782 = vmul.f32 %v676, %v586
        %v783 = vmul.f32 %v672, %v587
        %v784 = vmul.f32 %v676, %v588
        %v785 = vmul.f32 %v672, %v589
        %v786 = vmul.f32 %v676, %v590
        %v787 = vmul.f32 %v672, %v591
        %v788 = vmul.f32 %v676, %v592
        %v789 = vmul.f32 %v680, %v577
        %v790 = vmul.f32 %v684, %v578
        %v791 = vmul.f32 %v680, %v579
        %v792 = vmul.f32 %v684, %v580
        %v793 = vmul.f32 %v680, %v581
        %v794 = vmul.f32 %v684, %v582
        %v795 = vmul.f32 %v680, %v583
        %v796 = vmul.f32 %v684, %v584
        %v797 = vmul.f32 %v680, %v585
        %v798 = vmul.f32 %v684, %v586
        %v799 = vmul.f32 %v680, %v587
        %v800 = vmul.f32 %v684, %v588
        %v801 = vmul.f32 %v680, %v589
        %v802 = vmul.f32 %v684, %v590
        %v803 = vmul.f32 %v680, %v591
        %v804 = vmul.f32 %v684, %v592
        %v805 = vmul.f32 %v688, %v577
        %v806 = vmul.f32 %v692, %v578
        %v807 = vmul.f32 %v688, %v579
        %v808 = vmul.f32 %v692, %v580
        %v809 = vmul.f32 %v688, %v581
        %v810 = vmul.f32 %v692, %v582
        %v811 = vmul.f32 %v688, %v583
        %v812 = vmul.f32 %v692, %v584
        %v813 = vmul.f32 %v688, %v585
        %v814 = vmul.f32 %v692, %v586
        %v815 = vmul.f32 %v688, %v587
        %v816 = vmul.f32 %v692, %v588
        %v817 = vmul.f32 %v688, %v589
        %v818 = vmul.f32 %v692, %v590
        %v819 = vmul.f32 %v688, %v591
        %v820 = vmul.f32 %v692, %v592
        %v821 = vmul.f32 %v696, %v577
        %v822 = vmul.f32 %v700, %v578
        %v823 = vmul.f32 %v696, %v579
        %v824 = vmul.f32 %v700, %v580
        %v825 = vmul.f32 %v696, %v581
        %v826 = vmul.f32 %v700, %v582
        %v827 = vmul.f32 %v696, %v583
        %v828 = vmul.f32 %v700, %v584
        %v829 = vmul.f32 %v696, %v585
        %v830 = vmul.f32 %v700, %v586
        %v831 = vmul.f32 %v696, %v587
        %v832 = vmul.f32 %v700, %v588
        %v833 = vmul.f32 %v696, %v589
        %v834 = vmul.f32 %v700, %v590
        %v835 = vmul.f32 %v696, %v591
        %v836 = vmul.f32 %v700, %v592
        %v837 = vmul.f32 %v704, %v577
        %v838 = vmul.f32 %v708, %v578
        %v839 = vmul.f32 %v704, %v579
        %v840 = vmul.f32 %v708, %v580
        %v841 = vmul.f32 %v704, %v581
        %v842 = vmul.f32 %v708, %v582
        %v843 = vmul.f32 %v704, %v583
        %v844 = vmul.f32 %v708, %v584
        %v845 = vmul.f32 %v704, %v585
        %v846 = vmul.f32 %v708, %v586
        %v847 = vmul.f32 %v704, %v587
        %v848 = vmul.f32 %v708, %v588
        %v849 = vmul.f32 %v704, %v589
        %v850 = vmul.f32 %v708, %v590
        %v851 = vmul.f32 %v704, %v591
        %v852 = vmul.f32 %v708, %v592
        %v853 = vld [vmem:[#allocation7] sm:$0xff]
        %v854 = vld [vmem:[#allocation7 + $0x8] sm:$0xff]
        %v855 = vld [vmem:[#allocation7 + $0x10] sm:$0xff]
        %v856 = vld [vmem:[#allocation7 + $0x18] sm:$0xff]
        %v857 = vld [vmem:[#allocation7 + $0x20] sm:$0xff]
        %v858 = vld [vmem:[#allocation7 + $0x28] sm:$0xff]
        %v859 = vld [vmem:[#allocation7 + $0x30] sm:$0xff]
        %v860 = vld [vmem:[#allocation7 + $0x38] sm:$0xff]
        %v861 = vpack.c.bf16 %v727, %v725
        %v862 = vpack.c.bf16 %v728, %v726
        %v863 = vpack.c.bf16 %v731, %v729
        %v864 = vpack.c.bf16 %v732, %v730
        %v865 = vpack.c.bf16 %v735, %v733
        %v866 = vpack.c.bf16 %v736, %v734
        %v867 = vpack.c.bf16 %v739, %v737
        %v868 = vpack.c.bf16 %v740, %v738
        %v869 = vpack.c.bf16 %v743, %v741
        %v870 = vpack.c.bf16 %v744, %v742
        %v871 = vpack.c.bf16 %v747, %v745
        %v872 = vpack.c.bf16 %v748, %v746
        %v873 = vpack.c.bf16 %v751, %v749
        %v874 = vpack.c.bf16 %v752, %v750
        %v875 = vpack.c.bf16 %v755, %v753
        %v876 = vpack.c.bf16 %v756, %v754
        %v877 = vpack.c.bf16 %v759, %v757
        %v878 = vpack.c.bf16 %v760, %v758
        %v879 = vpack.c.bf16 %v763, %v761
        %v880 = vpack.c.bf16 %v764, %v762
        %v881 = vpack.c.bf16 %v767, %v765
        %v882 = vpack.c.bf16 %v768, %v766
        %v883 = vpack.c.bf16 %v771, %v769
        %v884 = vpack.c.bf16 %v772, %v770
        %v885 = vpack.c.bf16 %v775, %v773
        %v886 = vpack.c.bf16 %v776, %v774
        %v887 = vpack.c.bf16 %v779, %v777
        %v888 = vpack.c.bf16 %v780, %v778
        %v889 = vpack.c.bf16 %v783, %v781
        %v890 = vpack.c.bf16 %v784, %v782
        %v891 = vpack.c.bf16 %v787, %v785
        %v892 = vpack.c.bf16 %v788, %v786
        %v893 = vpack.c.bf16 %v791, %v789
        %v894 = vpack.c.bf16 %v792, %v790
        %v895 = vpack.c.bf16 %v795, %v793
        %v896 = vpack.c.bf16 %v796, %v794
        %v897 = vpack.c.bf16 %v799, %v797
        %v898 = vpack.c.bf16 %v800, %v798
        %v899 = vpack.c.bf16 %v803, %v801
        %v900 = vpack.c.bf16 %v804, %v802
        %v901 = vpack.c.bf16 %v807, %v805
        %v902 = vpack.c.bf16 %v808, %v806
        %v903 = vpack.c.bf16 %v811, %v809
        %v904 = vpack.c.bf16 %v812, %v810
        %v905 = vpack.c.bf16 %v815, %v813
        %v906 = vpack.c.bf16 %v816, %v814
        %v907 = vpack.c.bf16 %v819, %v817
        %v908 = vpack.c.bf16 %v820, %v818
        %v909 = vpack.c.bf16 %v823, %v821
        %v910 = vpack.c.bf16 %v824, %v822
        %v911 = vpack.c.bf16 %v827, %v825
        %v912 = vpack.c.bf16 %v828, %v826
        %v913 = vpack.c.bf16 %v831, %v829
        %v914 = vpack.c.bf16 %v832, %v830
        %v915 = vpack.c.bf16 %v835, %v833
        %v916 = vpack.c.bf16 %v836, %v834
        %v917 = vpack.c.bf16 %v839, %v837
        %v918 = vpack.c.bf16 %v840, %v838
        %v919 = vpack.c.bf16 %v843, %v841
        %v920 = vpack.c.bf16 %v844, %v842
        %v921 = vpack.c.bf16 %v847, %v845
        %v922 = vpack.c.bf16 %v848, %v846
        %v923 = vpack.c.bf16 %v851, %v849
        %v924 = vpack.c.bf16 %v852, %v850
        %s925 = sld [smem:[#allocation3 + $0xc]]
        %v926 = vstv %s925
        %v927 = vmul.f32 %v926, %v338
        %s928 = sld [smem:[#allocation3 + $0xd]]
        %v929 = vstv %s928
        %v930 = vmul.f32 %v929, %v340
        %v931 = vadd.f32 %v927, %v930
        %s932 = sld [smem:[#allocation3 + $0xe]]
        %v933 = vstv %s932
        %v934 = vmul.f32 %v933, %v342
        %v935 = vadd.f32 %v931, %v934
        %s936 = sld [smem:[#allocation3 + $0xf]]
        %v937 = vstv %s936
        %v938 = vadd.f32 %v935, %v937
        %s939 = sld [smem:[#allocation3 + $0x10]]
        %v940 = vstv %s939
        %v941 = vmul.f32 %v940, %v338
        %s942 = sld [smem:[#allocation3 + $0x11]]
        %v943 = vstv %s942
        %v944 = vmul.f32 %v943, %v340
        %v945 = vadd.f32 %v941, %v944
        %s946 = sld [smem:[#allocation3 + $0x12]]
        %v947 = vstv %s946
        %v948 = vmul.f32 %v947, %v342
        %v949 = vadd.f32 %v945, %v948
        %s950 = sld [smem:[#allocation3 + $0x13]]
        %v951 = vstv %s950
        %v952 = vadd.f32 %v949, %v951
        %s953 = sld [smem:[#allocation3 + $0x14]]
        %v954 = vstv %s953
        %v955 = vmul.f32 %v954, %v338
        %s956 = sld [smem:[#allocation3 + $0x15]]
        %v957 = vstv %s956
        %v958 = vmul.f32 %v957, %v340
        %v959 = vadd.f32 %v955, %v958
        %s960 = sld [smem:[#allocation3 + $0x16]]
        %v961 = vstv %s960
        %v962 = vmul.f32 %v961, %v342
        %v963 = vadd.f32 %v959, %v962
        %s964 = sld [smem:[#allocation3 + $0x17]]
        %v965 = vstv %s964
        %v966 = vadd.f32 %v963, %v965
        %v968 = vlaneseq
        %v969 = vshrl.u32 %v968, 7
        %v970 = vsub.s32 0, %v969
        %v971 = vrot.slane %v938, %v970
        %v972 = vlaneseq
        %v973 = vshrl.u32 %v972, 7
        %v974 = vsub.s32 1, %v973
        %v975 = vrot.slane %v938, %v974
        %v978 = vsub.f32 %v345, %v971
        %v979 = vsub.f32 %v345, %v975
        %v980 = vand.u32 2147483647, %v978
        %v981 = vand.u32 2147483647, %v979
        %v982 = vsub.f32 1.0, %v980
        %v983 = vsub.f32 1.0, %v981
        %v984 = vmax.f32 %v982, 0.0
        %v985 = vmax.f32 %v983, 0.0
        %v987 = vlaneseq
        %v988 = vshrl.u32 %v987, 7
        %v989 = vsub.s32 0, %v988
        %v990 = vrot.slane %v952, %v989
        %v991 = vlaneseq
        %v992 = vshrl.u32 %v991, 7
        %v993 = vsub.s32 1, %v992
        %v994 = vrot.slane %v952, %v993
        %v997 = vsub.f32 %v345, %v990
        %v998 = vsub.f32 %v345, %v994
        %v999 = vand.u32 2147483647, %v997
        %v1000 = vand.u32 2147483647, %v998
        %v1001 = vsub.f32 1.0, %v999
        %v1002 = vsub.f32 1.0, %v1000
        %v1003 = vmax.f32 %v1001, 0.0
        %v1004 = vmax.f32 %v1002, 0.0
        %v1006 = vlaneseq
        %v1007 = vshrl.u32 %v1006, 7
        %v1008 = vsub.s32 0, %v1007
        %v1009 = vrot.slane %v966, %v1008
        %v1010 = vlaneseq
        %v1011 = vshrl.u32 %v1010, 7
        %v1012 = vsub.s32 1, %v1011
        %v1013 = vrot.slane %v966, %v1012
        %v1016 = vsub.f32 %v345, %v1009
        %v1017 = vsub.f32 %v345, %v1013
        %v1018 = vand.u32 2147483647, %v1016
        %v1019 = vand.u32 2147483647, %v1017
        %v1020 = vsub.f32 1.0, %v1018
        %v1021 = vsub.f32 1.0, %v1019
        %v1022 = vmax.f32 %v1020, 0.0
        %v1023 = vmax.f32 %v1021, 0.0
        %v1026 = vcombine.low %v1003, %v1004
        %v1027 = vcombine.high %v1003, %v1004
        %v1029 = vunpack.c.l.s4 1966171168
        %v1030 = vunpack.c.0.s8 %v1029
        %v1031 = vlaneseq
        %v1032 = vshrl.u32 %v1031, 7
        %v1033 = vsub.s32 %v1030, %v1032
        %v1034 = vrot.slane %v1026, %v1033
        %v1036 = vunpack.c.l.s4 1966171168
        %v1037 = vunpack.c.0.s8 %v1036
        %v1038 = vlaneseq
        %v1039 = vshrl.u32 %v1038, 7
        %v1040 = vsub.s32 %v1037, %v1039
        %v1041 = vrot.slane %v1027, %v1040
        %v1042 = vcombine.high %v1034, %v1034
        %v1043 = vcombine.high %v1041, %v1041
        %v1045 = vunpack.c.l.s4 1966171168
        %v1046 = vunpack.c.0.s8 %v1045
        %v1047 = vlaneseq
        %v1048 = vshrl.u32 %v1047, 7
        %v1049 = vsub.s32 %v1046, %v1048
        %v1050 = vrot.slane %v1034, %v1049
        %v1052 = vunpack.c.l.s4 1966171168
        %v1053 = vunpack.c.0.s8 %v1052
        %v1054 = vlaneseq
        %v1055 = vshrl.u32 %v1054, 7
        %v1056 = vsub.s32 %v1053, %v1055
        %v1057 = vrot.slane %v1041, %v1056
        %v1059 = vunpack.c.l.s4 1966171168
        %v1060 = vunpack.c.0.s8 %v1059
        %v1061 = vlaneseq
        %v1062 = vshrl.u32 %v1061, 7
        %v1063 = vsub.s32 %v1060, %v1062
        %v1064 = vrot.slane %v1042, %v1063
        %v1066 = vunpack.c.l.s4 1966171168
        %v1067 = vunpack.c.0.s8 %v1066
        %v1068 = vlaneseq
        %v1069 = vshrl.u32 %v1068, 7
        %v1070 = vsub.s32 %v1067, %v1069
        %v1071 = vrot.slane %v1043, %v1070
        %v1072 = vcombine.high %v1050, %v1050
        %v1073 = vcombine.high %v1057, %v1057
        %v1074 = vcombine.high %v1064, %v1064
        %v1075 = vcombine.high %v1071, %v1071
        %v1076 = vlaneseq
        %v1077 = vshrl.u32 %v1076, 7
        %v1078 = vsub.s32 0, %v1077
        %v1079 = vrot.slane %v1050, %v1078
        %v1080 = vlaneseq
        %v1081 = vshrl.u32 %v1080, 7
        %v1082 = vsub.s32 1, %v1081
        %v1083 = vrot.slane %v1050, %v1082
        %v1084 = vlaneseq
        %v1085 = vshrl.u32 %v1084, 7
        %v1086 = vsub.s32 0, %v1085
        %v1087 = vrot.slane %v1064, %v1086
        %v1088 = vlaneseq
        %v1089 = vshrl.u32 %v1088, 7
        %v1090 = vsub.s32 1, %v1089
        %v1091 = vrot.slane %v1064, %v1090
        %v1092 = vlaneseq
        %v1093 = vshrl.u32 %v1092, 7
        %v1094 = vsub.s32 0, %v1093
        %v1095 = vrot.slane %v1072, %v1094
        %v1096 = vlaneseq
        %v1097 = vshrl.u32 %v1096, 7
        %v1098 = vsub.s32 1, %v1097
        %v1099 = vrot.slane %v1072, %v1098
        %v1100 = vlaneseq
        %v1101 = vshrl.u32 %v1100, 7
        %v1102 = vsub.s32 0, %v1101
        %v1103 = vrot.slane %v1074, %v1102
        %v1104 = vlaneseq
        %v1105 = vshrl.u32 %v1104, 7
        %v1106 = vsub.s32 1, %v1105
        %v1107 = vrot.slane %v1074, %v1106
        %v1108 = vlaneseq
        %v1109 = vshrl.u32 %v1108, 7
        %v1110 = vsub.s32 0, %v1109
        %v1111 = vrot.slane %v1057, %v1110
        %v1112 = vlaneseq
        %v1113 = vshrl.u32 %v1112, 7
        %v1114 = vsub.s32 1, %v1113
        %v1115 = vrot.slane %v1057, %v1114
        %v1116 = vlaneseq
        %v1117 = vshrl.u32 %v1116, 7
        %v1118 = vsub.s32 0, %v1117
        %v1119 = vrot.slane %v1071, %v1118
        %v1120 = vlaneseq
        %v1121 = vshrl.u32 %v1120, 7
        %v1122 = vsub.s32 1, %v1121
        %v1123 = vrot.slane %v1071, %v1122
        %v1124 = vlaneseq
        %v1125 = vshrl.u32 %v1124, 7
        %v1126 = vsub.s32 0, %v1125
        %v1127 = vrot.slane %v1073, %v1126
        %v1128 = vlaneseq
        %v1129 = vshrl.u32 %v1128, 7
        %v1130 = vsub.s32 1, %v1129
        %v1131 = vrot.slane %v1073, %v1130
        %v1132 = vlaneseq
        %v1133 = vshrl.u32 %v1132, 7
        %v1134 = vsub.s32 0, %v1133
        %v1135 = vrot.slane %v1075, %v1134
        %v1136 = vlaneseq
        %v1137 = vshrl.u32 %v1136, 7
        %v1138 = vsub.s32 1, %v1137
        %v1139 = vrot.slane %v1075, %v1138
        %v1156 = vmul.f32 %v1079, %v984
        %v1157 = vmul.f32 %v1083, %v985
        %v1158 = vmul.f32 %v1087, %v984
        %v1159 = vmul.f32 %v1091, %v985
        %v1160 = vmul.f32 %v1095, %v984
        %v1161 = vmul.f32 %v1099, %v985
        %v1162 = vmul.f32 %v1103, %v984
        %v1163 = vmul.f32 %v1107, %v985
        %v1164 = vmul.f32 %v1111, %v984
        %v1165 = vmul.f32 %v1115, %v985
        %v1166 = vmul.f32 %v1119, %v984
        %v1167 = vmul.f32 %v1123, %v985
        %v1168 = vmul.f32 %v1127, %v984
        %v1169 = vmul.f32 %v1131, %v985
        %v1170 = vmul.f32 %v1135, %v984
        %v1171 = vmul.f32 %v1139, %v985
        %v1174 = vcombine.low %v1022, %v1023
        %v1175 = vcombine.high %v1022, %v1023
        %v1177 = vunpack.c.l.s4 1966171168
        %v1178 = vunpack.c.0.s8 %v1177
        %v1179 = vlaneseq
        %v1180 = vshrl.u32 %v1179, 7
        %v1181 = vsub.s32 %v1178, %v1180
        %v1182 = vrot.slane %v1174, %v1181
        %v1184 = vunpack.c.l.s4 1966171168
        %v1185 = vunpack.c.0.s8 %v1184
        %v1186 = vlaneseq
        %v1187 = vshrl.u32 %v1186, 7
        %v1188 = vsub.s32 %v1185, %v1187
        %v1189 = vrot.slane %v1175, %v1188
        %v1190 = vcombine.high %v1182, %v1182
        %v1191 = vcombine.high %v1189, %v1189
        %v1193 = vunpack.c.l.s4 1966171168
        %v1194 = vunpack.c.0.s8 %v1193
        %v1195 = vlaneseq
        %v1196 = vshrl.u32 %v1195, 7
        %v1197 = vsub.s32 %v1194, %v1196
        %v1198 = vrot.slane %v1182, %v1197
        %v1200 = vunpack.c.l.s4 1966171168
        %v1201 = vunpack.c.0.s8 %v1200
        %v1202 = vlaneseq
        %v1203 = vshrl.u32 %v1202, 7
        %v1204 = vsub.s32 %v1201, %v1203
        %v1205 = vrot.slane %v1189, %v1204
        %v1207 = vunpack.c.l.s4 1966171168
        %v1208 = vunpack.c.0.s8 %v1207
        %v1209 = vlaneseq
        %v1210 = vshrl.u32 %v1209, 7
        %v1211 = vsub.s32 %v1208, %v1210
        %v1212 = vrot.slane %v1190, %v1211
        %v1214 = vunpack.c.l.s4 1966171168
        %v1215 = vunpack.c.0.s8 %v1214
        %v1216 = vlaneseq
        %v1217 = vshrl.u32 %v1216, 7
        %v1218 = vsub.s32 %v1215, %v1217
        %v1219 = vrot.slane %v1191, %v1218
        %v1220 = vcombine.high %v1198, %v1198
        %v1221 = vcombine.high %v1205, %v1205
        %v1222 = vcombine.high %v1212, %v1212
        %v1223 = vcombine.high %v1219, %v1219
        %v1224 = vlaneseq
        %v1225 = vshrl.u32 %v1224, 7
        %v1226 = vsub.s32 0, %v1225
        %v1227 = vrot.slane %v1198, %v1226
        %v1228 = vlaneseq
        %v1229 = vshrl.u32 %v1228, 7
        %v1230 = vsub.s32 1, %v1229
        %v1231 = vrot.slane %v1198, %v1230
        %v1232 = vlaneseq
        %v1233 = vshrl.u32 %v1232, 7
        %v1234 = vsub.s32 0, %v1233
        %v1235 = vrot.slane %v1212, %v1234
        %v1236 = vlaneseq
        %v1237 = vshrl.u32 %v1236, 7
        %v1238 = vsub.s32 1, %v1237
        %v1239 = vrot.slane %v1212, %v1238
        %v1240 = vlaneseq
        %v1241 = vshrl.u32 %v1240, 7
        %v1242 = vsub.s32 0, %v1241
        %v1243 = vrot.slane %v1220, %v1242
        %v1244 = vlaneseq
        %v1245 = vshrl.u32 %v1244, 7
        %v1246 = vsub.s32 1, %v1245
        %v1247 = vrot.slane %v1220, %v1246
        %v1248 = vlaneseq
        %v1249 = vshrl.u32 %v1248, 7
        %v1250 = vsub.s32 0, %v1249
        %v1251 = vrot.slane %v1222, %v1250
        %v1252 = vlaneseq
        %v1253 = vshrl.u32 %v1252, 7
        %v1254 = vsub.s32 1, %v1253
        %v1255 = vrot.slane %v1222, %v1254
        %v1256 = vlaneseq
        %v1257 = vshrl.u32 %v1256, 7
        %v1258 = vsub.s32 0, %v1257
        %v1259 = vrot.slane %v1205, %v1258
        %v1260 = vlaneseq
        %v1261 = vshrl.u32 %v1260, 7
        %v1262 = vsub.s32 1, %v1261
        %v1263 = vrot.slane %v1205, %v1262
        %v1264 = vlaneseq
        %v1265 = vshrl.u32 %v1264, 7
        %v1266 = vsub.s32 0, %v1265
        %v1267 = vrot.slane %v1219, %v1266
        %v1268 = vlaneseq
        %v1269 = vshrl.u32 %v1268, 7
        %v1270 = vsub.s32 1, %v1269
        %v1271 = vrot.slane %v1219, %v1270
        %v1272 = vlaneseq
        %v1273 = vshrl.u32 %v1272, 7
        %v1274 = vsub.s32 0, %v1273
        %v1275 = vrot.slane %v1221, %v1274
        %v1276 = vlaneseq
        %v1277 = vshrl.u32 %v1276, 7
        %v1278 = vsub.s32 1, %v1277
        %v1279 = vrot.slane %v1221, %v1278
        %v1280 = vlaneseq
        %v1281 = vshrl.u32 %v1280, 7
        %v1282 = vsub.s32 0, %v1281
        %v1283 = vrot.slane %v1223, %v1282
        %v1284 = vlaneseq
        %v1285 = vshrl.u32 %v1284, 7
        %v1286 = vsub.s32 1, %v1285
        %v1287 = vrot.slane %v1223, %v1286
        %v1304 = vmul.f32 %v1227, %v1156
        %v1305 = vmul.f32 %v1231, %v1157
        %v1306 = vmul.f32 %v1227, %v1158
        %v1307 = vmul.f32 %v1231, %v1159
        %v1308 = vmul.f32 %v1227, %v1160
        %v1309 = vmul.f32 %v1231, %v1161
        %v1310 = vmul.f32 %v1227, %v1162
        %v1311 = vmul.f32 %v1231, %v1163
        %v1312 = vmul.f32 %v1227, %v1164
        %v1313 = vmul.f32 %v1231, %v1165
        %v1314 = vmul.f32 %v1227, %v1166
        %v1315 = vmul.f32 %v1231, %v1167
        %v1316 = vmul.f32 %v1227, %v1168
        %v1317 = vmul.f32 %v1231, %v1169
        %v1318 = vmul.f32 %v1227, %v1170
        %v1319 = vmul.f32 %v1231, %v1171
        %v1320 = vmul.f32 %v1235, %v1156
        %v1321 = vmul.f32 %v1239, %v1157
        %v1322 = vmul.f32 %v1235, %v1158
        %v1323 = vmul.f32 %v1239, %v1159
        %v1324 = vmul.f32 %v1235, %v1160
        %v1325 = vmul.f32 %v1239, %v1161
        %v1326 = vmul.f32 %v1235, %v1162
        %v1327 = vmul.f32 %v1239, %v1163
        %v1328 = vmul.f32 %v1235, %v1164
        %v1329 = vmul.f32 %v1239, %v1165
        %v1330 = vmul.f32 %v1235, %v1166
        %v1331 = vmul.f32 %v1239, %v1167
        %v1332 = vmul.f32 %v1235, %v1168
        %v1333 = vmul.f32 %v1239, %v1169
        %v1334 = vmul.f32 %v1235, %v1170
        %v1335 = vmul.f32 %v1239, %v1171
        %v1336 = vmul.f32 %v1243, %v1156
        %v1337 = vmul.f32 %v1247, %v1157
        %v1338 = vmul.f32 %v1243, %v1158
        %v1339 = vmul.f32 %v1247, %v1159
        %v1340 = vmul.f32 %v1243, %v1160
        %v1341 = vmul.f32 %v1247, %v1161
        %v1342 = vmul.f32 %v1243, %v1162
        %v1343 = vmul.f32 %v1247, %v1163
        %v1344 = vmul.f32 %v1243, %v1164
        %v1345 = vmul.f32 %v1247, %v1165
        %v1346 = vmul.f32 %v1243, %v1166
        %v1347 = vmul.f32 %v1247, %v1167
        %v1348 = vmul.f32 %v1243, %v1168
        %v1349 = vmul.f32 %v1247, %v1169
        %v1350 = vmul.f32 %v1243, %v1170
        %v1351 = vmul.f32 %v1247, %v1171
        %v1352 = vmul.f32 %v1251, %v1156
        %v1353 = vmul.f32 %v1255, %v1157
        %v1354 = vmul.f32 %v1251, %v1158
        %v1355 = vmul.f32 %v1255, %v1159
        %v1356 = vmul.f32 %v1251, %v1160
        %v1357 = vmul.f32 %v1255, %v1161
        %v1358 = vmul.f32 %v1251, %v1162
        %v1359 = vmul.f32 %v1255, %v1163
        %v1360 = vmul.f32 %v1251, %v1164
        %v1361 = vmul.f32 %v1255, %v1165
        %v1362 = vmul.f32 %v1251, %v1166
        %v1363 = vmul.f32 %v1255, %v1167
        %v1364 = vmul.f32 %v1251, %v1168
        %v1365 = vmul.f32 %v1255, %v1169
        %v1366 = vmul.f32 %v1251, %v1170
        %v1367 = vmul.f32 %v1255, %v1171
        %v1368 = vmul.f32 %v1259, %v1156
        %v1369 = vmul.f32 %v1263, %v1157
        %v1370 = vmul.f32 %v1259, %v1158
        %v1371 = vmul.f32 %v1263, %v1159
        %v1372 = vmul.f32 %v1259, %v1160
        %v1373 = vmul.f32 %v1263, %v1161
        %v1374 = vmul.f32 %v1259, %v1162
        %v1375 = vmul.f32 %v1263, %v1163
        %v1376 = vmul.f32 %v1259, %v1164
        %v1377 = vmul.f32 %v1263, %v1165
        %v1378 = vmul.f32 %v1259, %v1166
        %v1379 = vmul.f32 %v1263, %v1167
        %v1380 = vmul.f32 %v1259, %v1168
        %v1381 = vmul.f32 %v1263, %v1169
        %v1382 = vmul.f32 %v1259, %v1170
        %v1383 = vmul.f32 %v1263, %v1171
        %v1384 = vmul.f32 %v1267, %v1156
        %v1385 = vmul.f32 %v1271, %v1157
        %v1386 = vmul.f32 %v1267, %v1158
        %v1387 = vmul.f32 %v1271, %v1159
        %v1388 = vmul.f32 %v1267, %v1160
        %v1389 = vmul.f32 %v1271, %v1161
        %v1390 = vmul.f32 %v1267, %v1162
        %v1391 = vmul.f32 %v1271, %v1163
        %v1392 = vmul.f32 %v1267, %v1164
        %v1393 = vmul.f32 %v1271, %v1165
        %v1394 = vmul.f32 %v1267, %v1166
        %v1395 = vmul.f32 %v1271, %v1167
        %v1396 = vmul.f32 %v1267, %v1168
        %v1397 = vmul.f32 %v1271, %v1169
        %v1398 = vmul.f32 %v1267, %v1170
        %v1399 = vmul.f32 %v1271, %v1171
        %v1400 = vmul.f32 %v1275, %v1156
        %v1401 = vmul.f32 %v1279, %v1157
        %v1402 = vmul.f32 %v1275, %v1158
        %v1403 = vmul.f32 %v1279, %v1159
        %v1404 = vmul.f32 %v1275, %v1160
        %v1405 = vmul.f32 %v1279, %v1161
        %v1406 = vmul.f32 %v1275, %v1162
        %v1407 = vmul.f32 %v1279, %v1163
        %v1408 = vmul.f32 %v1275, %v1164
        %v1409 = vmul.f32 %v1279, %v1165
        %v1410 = vmul.f32 %v1275, %v1166
        %v1411 = vmul.f32 %v1279, %v1167
        %v1412 = vmul.f32 %v1275, %v1168
        %v1413 = vmul.f32 %v1279, %v1169
        %v1414 = vmul.f32 %v1275, %v1170
        %v1415 = vmul.f32 %v1279, %v1171
        %v1416 = vmul.f32 %v1283, %v1156
        %v1417 = vmul.f32 %v1287, %v1157
        %v1418 = vmul.f32 %v1283, %v1158
        %v1419 = vmul.f32 %v1287, %v1159
        %v1420 = vmul.f32 %v1283, %v1160
        %v1421 = vmul.f32 %v1287, %v1161
        %v1422 = vmul.f32 %v1283, %v1162
        %v1423 = vmul.f32 %v1287, %v1163
        %v1424 = vmul.f32 %v1283, %v1164
        %v1425 = vmul.f32 %v1287, %v1165
        %v1426 = vmul.f32 %v1283, %v1166
        %v1427 = vmul.f32 %v1287, %v1167
        %v1428 = vmul.f32 %v1283, %v1168
        %v1429 = vmul.f32 %v1287, %v1169
        %v1430 = vmul.f32 %v1283, %v1170
        %v1431 = vmul.f32 %v1287, %v1171
        %s1432 = scalar_lea.vmem [#allocation7], 64
        %v1433 = vld [vmem:[%s1432] sm:$0xff]
        %v1434 = vld [vmem:[%s1432 + $0x8] sm:$0xff]
        %v1435 = vld [vmem:[%s1432 + $0x10] sm:$0xff]
        %v1436 = vld [vmem:[%s1432 + $0x18] sm:$0xff]
        %v1437 = vld [vmem:[%s1432 + $0x20] sm:$0xff]
        %v1438 = vld [vmem:[%s1432 + $0x28] sm:$0xff]
        %v1439 = vld [vmem:[%s1432 + $0x30] sm:$0xff]
        %v1440 = vld [vmem:[%s1432 + $0x38] sm:$0xff]
        %v1441 = vpack.c.bf16 %v1306, %v1304
        %v1442 = vpack.c.bf16 %v1307, %v1305
        %v1443 = vpack.c.bf16 %v1310, %v1308
        %v1444 = vpack.c.bf16 %v1311, %v1309
        %v1445 = vpack.c.bf16 %v1314, %v1312
        %v1446 = vpack.c.bf16 %v1315, %v1313
        %v1447 = vpack.c.bf16 %v1318, %v1316
        %v1448 = vpack.c.bf16 %v1319, %v1317
        %v1449 = vpack.c.bf16 %v1322, %v1320
        %v1450 = vpack.c.bf16 %v1323, %v1321
        %v1451 = vpack.c.bf16 %v1326, %v1324
        %v1452 = vpack.c.bf16 %v1327, %v1325
        %v1453 = vpack.c.bf16 %v1330, %v1328
        %v1454 = vpack.c.bf16 %v1331, %v1329
        %v1455 = vpack.c.bf16 %v1334, %v1332
        %v1456 = vpack.c.bf16 %v1335, %v1333
        %v1457 = vpack.c.bf16 %v1338, %v1336
        %v1458 = vpack.c.bf16 %v1339, %v1337
        %v1459 = vpack.c.bf16 %v1342, %v1340
        %v1460 = vpack.c.bf16 %v1343, %v1341
        %v1461 = vpack.c.bf16 %v1346, %v1344
        %v1462 = vpack.c.bf16 %v1347, %v1345
        %v1463 = vpack.c.bf16 %v1350, %v1348
        %v1464 = vpack.c.bf16 %v1351, %v1349
        %v1465 = vpack.c.bf16 %v1354, %v1352
        %v1466 = vpack.c.bf16 %v1355, %v1353
        %v1467 = vpack.c.bf16 %v1358, %v1356
        %v1468 = vpack.c.bf16 %v1359, %v1357
        %v1469 = vpack.c.bf16 %v1362, %v1360
        %v1470 = vpack.c.bf16 %v1363, %v1361
        %v1471 = vpack.c.bf16 %v1366, %v1364
        %v1472 = vpack.c.bf16 %v1367, %v1365
        %v1473 = vpack.c.bf16 %v1370, %v1368
        %v1474 = vpack.c.bf16 %v1371, %v1369
        %v1475 = vpack.c.bf16 %v1374, %v1372
        %v1476 = vpack.c.bf16 %v1375, %v1373
        %v1477 = vpack.c.bf16 %v1378, %v1376
        %v1478 = vpack.c.bf16 %v1379, %v1377
        %v1479 = vpack.c.bf16 %v1382, %v1380
        %v1480 = vpack.c.bf16 %v1383, %v1381
        %v1481 = vpack.c.bf16 %v1386, %v1384
        %v1482 = vpack.c.bf16 %v1387, %v1385
        %v1483 = vpack.c.bf16 %v1390, %v1388
        %v1484 = vpack.c.bf16 %v1391, %v1389
        %v1485 = vpack.c.bf16 %v1394, %v1392
        %v1486 = vpack.c.bf16 %v1395, %v1393
        %v1487 = vpack.c.bf16 %v1398, %v1396
        %v1488 = vpack.c.bf16 %v1399, %v1397
        %v1489 = vpack.c.bf16 %v1402, %v1400
        %v1490 = vpack.c.bf16 %v1403, %v1401
        %v1491 = vpack.c.bf16 %v1406, %v1404
        %v1492 = vpack.c.bf16 %v1407, %v1405
        %v1493 = vpack.c.bf16 %v1410, %v1408
        %v1494 = vpack.c.bf16 %v1411, %v1409
        %v1495 = vpack.c.bf16 %v1414, %v1412
        %v1496 = vpack.c.bf16 %v1415, %v1413
        %v1497 = vpack.c.bf16 %v1418, %v1416
        %v1498 = vpack.c.bf16 %v1419, %v1417
        %v1499 = vpack.c.bf16 %v1422, %v1420
        %v1500 = vpack.c.bf16 %v1423, %v1421
        %v1501 = vpack.c.bf16 %v1426, %v1424
        %v1502 = vpack.c.bf16 %v1427, %v1425
        %v1503 = vpack.c.bf16 %v1430, %v1428
        %v1504 = vpack.c.bf16 %v1431, %v1429
        %v1513 = vunpack.c.l.b16 %v1433
        %v1514 = vunpack.c.h.b16 %v1433
        %v1515 = vunpack.c.l.b16 %v1434
        %v1516 = vunpack.c.h.b16 %v1434
        %v1517 = vunpack.c.l.b16 %v1435
        %v1518 = vunpack.c.h.b16 %v1435
        %v1519 = vunpack.c.l.b16 %v1436
        %v1520 = vunpack.c.h.b16 %v1436
        %v1521 = vunpack.c.l.b16 %v1437
        %v1522 = vunpack.c.h.b16 %v1437
        %v1523 = vunpack.c.l.b16 %v1438
        %v1524 = vunpack.c.h.b16 %v1438
        %v1525 = vunpack.c.l.b16 %v1439
        %v1526 = vunpack.c.h.b16 %v1439
        %v1527 = vunpack.c.l.b16 %v1440
        %v1528 = vunpack.c.h.b16 %v1440
        %v1529 = vpack.c.b16 %v1517, %v1513
        %v1530 = vpack.c.b16 %v1518, %v1514
        %v1531 = vpack.c.b16 %v1519, %v1515
        %v1532 = vpack.c.b16 %v1520, %v1516
        %v1533 = vpack.c.b16 %v1525, %v1521
        %v1534 = vpack.c.b16 %v1526, %v1522
        %v1535 = vpack.c.b16 %v1527, %v1523
        %v1536 = vpack.c.b16 %v1528, %v1524
        %1545 = vmatprep.subr.bf16.mxu0 %v1442
        %1546 = vmatpush1.bf16.msra.mxu0 %v1441
        %1547 = vmatprep.subr.bf16.mxu0 %v1444
        %1548 = vmatpush1.bf16.msra.mxu0 %v1443
        %1549 = vmatprep.subr.bf16.mxu0 %v1446
        %1550 = vmatpush1.bf16.msra.mxu0 %v1445
        %1551 = vmatprep.subr.bf16.mxu0 %v1448
        %1552 = vmatpush1.bf16.msra.mxu0 %v1447
        %1553 = vmatprep.subr.bf16.mxu0 %v1450
        %1554 = vmatpush1.bf16.msra.mxu0 %v1449
        %1555 = vmatprep.subr.bf16.mxu0 %v1452
        %1556 = vmatpush1.bf16.msra.mxu0 %v1451
        %1557 = vmatprep.subr.bf16.mxu0 %v1454
        %1558 = vmatpush1.bf16.msra.mxu0 %v1453
        %1559 = vmatprep.subr.bf16.mxu0 %v1456
        %1560 = vmatpush1.bf16.msra.mxu0 %v1455
        %1561 = vmatprep.subr.bf16.mxu0 %v1458
        %1562 = vmatpush1.bf16.msra.mxu0 %v1457
        %1563 = vmatprep.subr.bf16.mxu0 %v1460
        %1564 = vmatpush1.bf16.msra.mxu0 %v1459
        %1565 = vmatprep.subr.bf16.mxu0 %v1462
        %1566 = vmatpush1.bf16.msra.mxu0 %v1461
        %1567 = vmatprep.subr.bf16.mxu0 %v1464
        %1568 = vmatpush1.bf16.msra.mxu0 %v1463
        %1569 = vmatprep.subr.bf16.mxu0 %v1466
        %1570 = vmatpush1.bf16.msra.mxu0 %v1465
        %1571 = vmatprep.subr.bf16.mxu0 %v1468
        %1572 = vmatpush1.bf16.msra.mxu0 %v1467
        %1573 = vmatprep.subr.bf16.mxu0 %v1470
        %1574 = vmatpush1.bf16.msra.mxu0 %v1469
        %1575 = vmatprep.subr.bf16.mxu0 %v1472
        %1576 = vmatpush1.bf16.msra.mxu0 %v1471
        %1577 = vmatprep.mubr.bf16.mxu0 %v1530
        %1578 = vmatmul.mubr.bf16.gmra.mrb[0].mxu0 %v1529
        %v1579 = vpop.f32.mrb[0].mxu0
        %v1580 = vadd.f32 0.0, %v1579
        %v1581 = vpop.f32.mrb[0].mxu0
        %v1582 = vadd.f32 0.0, %v1581
        %v1583 = vpop.f32.mrb[0].mxu0
        %v1584 = vadd.f32 0.0, %v1583
        %v1585 = vpop.f32.mrb[0].mxu0
        %v1586 = vadd.f32 0.0, %v1585
        %1587 = vmatprep.mubr.bf16.mxu0 %v1534
        %1588 = vmatmul.mubr.bf16.gmra.mrb[0].mxu0 %v1533
        %v1589 = vpop.f32.mrb[0].mxu0
        %v1590 = vadd.f32 0.0, %v1589
        %v1591 = vpop.f32.mrb[0].mxu0
        %v1592 = vadd.f32 0.0, %v1591
        %v1593 = vpop.f32.mrb[0].mxu0
        %v1594 = vadd.f32 0.0, %v1593
        %v1595 = vpop.f32.mrb[0].mxu0
        %v1596 = vadd.f32 0.0, %v1595
        %1597 = vdwg.mxu0
        %1598 = vmatprep.subr.bf16.mxu0 %v1474
        %1599 = vmatpush1.bf16.msra.mxu0 %v1473
        %1600 = vmatprep.subr.bf16.mxu0 %v1476
        %1601 = vmatpush1.bf16.msra.mxu0 %v1475
        %1602 = vmatprep.subr.bf16.mxu0 %v1478
        %1603 = vmatpush1.bf16.msra.mxu0 %v1477
        %1604 = vmatprep.subr.bf16.mxu0 %v1480
        %1605 = vmatpush1.bf16.msra.mxu0 %v1479
        %1606 = vmatprep.subr.bf16.mxu0 %v1482
        %1607 = vmatpush1.bf16.msra.mxu0 %v1481
        %1608 = vmatprep.subr.bf16.mxu0 %v1484
        %1609 = vmatpush1.bf16.msra.mxu0 %v1483
        %1610 = vmatprep.subr.bf16.mxu0 %v1486
        %1611 = vmatpush1.bf16.msra.mxu0 %v1485
        %1612 = vmatprep.subr.bf16.mxu0 %v1488
        %1613 = vmatpush1.bf16.msra.mxu0 %v1487
        %1614 = vmatprep.subr.bf16.mxu0 %v1490
        %1615 = vmatpush1.bf16.msra.mxu0 %v1489
        %1616 = vmatprep.subr.bf16.mxu0 %v1492
        %1617 = vmatpush1.bf16.msra.mxu0 %v1491
        %1618 = vmatprep.subr.bf16.mxu0 %v1494
        %1619 = vmatpush1.bf16.msra.mxu0 %v1493
        %1620 = vmatprep.subr.bf16.mxu0 %v1496
        %1621 = vmatpush1.bf16.msra.mxu0 %v1495
        %1622 = vmatprep.subr.bf16.mxu0 %v1498
        %1623 = vmatpush1.bf16.msra.mxu0 %v1497
        %1624 = vmatprep.subr.bf16.mxu0 %v1500
        %1625 = vmatpush1.bf16.msra.mxu0 %v1499
        %1626 = vmatprep.subr.bf16.mxu0 %v1502
        %1627 = vmatpush1.bf16.msra.mxu0 %v1501
        %1628 = vmatprep.subr.bf16.mxu0 %v1504
        %1629 = vmatpush1.bf16.msra.mxu0 %v1503
        %1630 = vmatprep.mubr.bf16.mxu0 %v1532
        %1631 = vmatmul.mubr.bf16.gmra.mrb[0].mxu0 %v1531
        %v1632 = vpop.f32.mrb[0].mxu0
        %v1633 = vadd.f32 %v1580, %v1632
        %v1634 = vpop.f32.mrb[0].mxu0
        %v1635 = vadd.f32 %v1582, %v1634
        %v1636 = vpop.f32.mrb[0].mxu0
        %v1637 = vadd.f32 %v1584, %v1636
        %v1638 = vpop.f32.mrb[0].mxu0
        %v1639 = vadd.f32 %v1586, %v1638
        %1640 = vmatprep.mubr.bf16.mxu0 %v1536
        %1641 = vmatmul.mubr.bf16.gmra.mrb[0].mxu0 %v1535
        %v1642 = vpop.f32.mrb[0].mxu0
        %v1643 = vadd.f32 %v1590, %v1642
        %v1644 = vpop.f32.mrb[0].mxu0
        %v1645 = vadd.f32 %v1592, %v1644
        %v1646 = vpop.f32.mrb[0].mxu0
        %v1647 = vadd.f32 %v1594, %v1646
        %v1648 = vpop.f32.mrb[0].mxu0
        %v1649 = vadd.f32 %v1596, %v1648
        %1650 = vdwg.mxu0
        %v1659 = vunpack.c.l.b16 %v853
        %v1660 = vunpack.c.h.b16 %v853
        %v1661 = vunpack.c.l.b16 %v854
        %v1662 = vunpack.c.h.b16 %v854
        %v1663 = vunpack.c.l.b16 %v855
        %v1664 = vunpack.c.h.b16 %v855
        %v1665 = vunpack.c.l.b16 %v856
        %v1666 = vunpack.c.h.b16 %v856
        %v1667 = vunpack.c.l.b16 %v857
        %v1668 = vunpack.c.h.b16 %v857
        %v1669 = vunpack.c.l.b16 %v858
        %v1670 = vunpack.c.h.b16 %v858
        %v1671 = vunpack.c.l.b16 %v859
        %v1672 = vunpack.c.h.b16 %v859
        %v1673 = vunpack.c.l.b16 %v860
        %v1674 = vunpack.c.h.b16 %v860
        %v1675 = vpack.c.b16 %v1663, %v1659
        %v1676 = vpack.c.b16 %v1664, %v1660
        %v1677 = vpack.c.b16 %v1665, %v1661
        %v1678 = vpack.c.b16 %v1666, %v1662
        %v1679 = vpack.c.b16 %v1671, %v1667
        %v1680 = vpack.c.b16 %v1672, %v1668
        %v1681 = vpack.c.b16 %v1673, %v1669
        %v1682 = vpack.c.b16 %v1674, %v1670
        %1691 = vmatprep.subr.bf16.mxu0 %v862
        %1692 = vmatpush1.bf16.msra.mxu0 %v861
        %1693 = vmatprep.subr.bf16.mxu0 %v864
        %1694 = vmatpush1.bf16.msra.mxu0 %v863
        %1695 = vmatprep.subr.bf16.mxu0 %v866
        %1696 = vmatpush1.bf16.msra.mxu0 %v865
        %1697 = vmatprep.subr.bf16.mxu0 %v868
        %1698 = vmatpush1.bf16.msra.mxu0 %v867
        %1699 = vmatprep.subr.bf16.mxu0 %v870
        %1700 = vmatpush1.bf16.msra.mxu0 %v869
        %1701 = vmatprep.subr.bf16.mxu0 %v872
        %1702 = vmatpush1.bf16.msra.mxu0 %v871
        %1703 = vmatprep.subr.bf16.mxu0 %v874
        %1704 = vmatpush1.bf16.msra.mxu0 %v873
        %1705 = vmatprep.subr.bf16.mxu0 %v876
        %1706 = vmatpush1.bf16.msra.mxu0 %v875
        %1707 = vmatprep.subr.bf16.mxu0 %v878
        %1708 = vmatpush1.bf16.msra.mxu0 %v877
        %1709 = vmatprep.subr.bf16.mxu0 %v880
        %1710 = vmatpush1.bf16.msra.mxu0 %v879
        %1711 = vmatprep.subr.bf16.mxu0 %v882
        %1712 = vmatpush1.bf16.msra.mxu0 %v881
        %1713 = vmatprep.subr.bf16.mxu0 %v884
        %1714 = vmatpush1.bf16.msra.mxu0 %v883
        %1715 = vmatprep.subr.bf16.mxu0 %v886
        %1716 = vmatpush1.bf16.msra.mxu0 %v885
        %1717 = vmatprep.subr.bf16.mxu0 %v888
        %1718 = vmatpush1.bf16.msra.mxu0 %v887
        %1719 = vmatprep.subr.bf16.mxu0 %v890
        %1720 = vmatpush1.bf16.msra.mxu0 %v889
        %1721 = vmatprep.subr.bf16.mxu0 %v892
        %1722 = vmatpush1.bf16.msra.mxu0 %v891
        %1723 = vmatprep.mubr.bf16.mxu0 %v1676
        %1724 = vmatmul.mubr.bf16.gmra.mrb[0].mxu0 %v1675
        %v1725 = vpop.f32.mrb[0].mxu0
        %v1726 = vadd.f32 %v1633, %v1725
        %v1727 = vpop.f32.mrb[0].mxu0
        %v1728 = vadd.f32 %v1635, %v1727
        %v1729 = vpop.f32.mrb[0].mxu0
        %v1730 = vadd.f32 %v1637, %v1729
        %v1731 = vpop.f32.mrb[0].mxu0
        %v1732 = vadd.f32 %v1639, %v1731
        %1733 = vmatprep.mubr.bf16.mxu0 %v1680
        %1734 = vmatmul.mubr.bf16.gmra.mrb[0].mxu0 %v1679
        %v1735 = vpop.f32.mrb[0].mxu0
        %v1736 = vadd.f32 %v1643, %v1735
        %v1737 = vpop.f32.mrb[0].mxu0
        %v1738 = vadd.f32 %v1645, %v1737
        %v1739 = vpop.f32.mrb[0].mxu0
        %v1740 = vadd.f32 %v1647, %v1739
        %v1741 = vpop.f32.mrb[0].mxu0
        %v1742 = vadd.f32 %v1649, %v1741
        %1743 = vdwg.mxu0
        %1744 = vmatprep.subr.bf16.mxu0 %v894
        %1745 = vmatpush1.bf16.msra.mxu0 %v893
        %1746 = vmatprep.subr.bf16.mxu0 %v896
        %1747 = vmatpush1.bf16.msra.mxu0 %v895
        %1748 = vmatprep.subr.bf16.mxu0 %v898
        %1749 = vmatpush1.bf16.msra.mxu0 %v897
        %1750 = vmatprep.subr.bf16.mxu0 %v900
        %1751 = vmatpush1.bf16.msra.mxu0 %v899
        %1752 = vmatprep.subr.bf16.mxu0 %v902
        %1753 = vmatpush1.bf16.msra.mxu0 %v901
        %1754 = vmatprep.subr.bf16.mxu0 %v904
        %1755 = vmatpush1.bf16.msra.mxu0 %v903
        %1756 = vmatprep.subr.bf16.mxu0 %v906
        %1757 = vmatpush1.bf16.msra.mxu0 %v905
        %1758 = vmatprep.subr.bf16.mxu0 %v908
        %1759 = vmatpush1.bf16.msra.mxu0 %v907
        %1760 = vmatprep.subr.bf16.mxu0 %v910
        %1761 = vmatpush1.bf16.msra.mxu0 %v909
        %1762 = vmatprep.subr.bf16.mxu0 %v912
        %1763 = vmatpush1.bf16.msra.mxu0 %v911
        %1764 = vmatprep.subr.bf16.mxu0 %v914
        %1765 = vmatpush1.bf16.msra.mxu0 %v913
        %1766 = vmatprep.subr.bf16.mxu0 %v916
        %1767 = vmatpush1.bf16.msra.mxu0 %v915
        %1768 = vmatprep.subr.bf16.mxu0 %v918
        %1769 = vmatpush1.bf16.msra.mxu0 %v917
        %1770 = vmatprep.subr.bf16.mxu0 %v920
        %1771 = vmatpush1.bf16.msra.mxu0 %v919
        %1772 = vmatprep.subr.bf16.mxu0 %v922
        %1773 = vmatpush1.bf16.msra.mxu0 %v921
        %1774 = vmatprep.subr.bf16.mxu0 %v924
        %1775 = vmatpush1.bf16.msra.mxu0 %v923
        %1776 = vmatprep.mubr.bf16.mxu0 %v1678
        %1777 = vmatmul.mubr.bf16.gmra.mrb[0].mxu0 %v1677
        %v1778 = vpop.f32.mrb[0].mxu0
        %v1779 = vadd.f32 %v1726, %v1778
        %v1780 = vpop.f32.mrb[0].mxu0
        %v1781 = vadd.f32 %v1728, %v1780
        %v1782 = vpop.f32.mrb[0].mxu0
        %v1783 = vadd.f32 %v1730, %v1782
        %v1784 = vpop.f32.mrb[0].mxu0
        %v1785 = vadd.f32 %v1732, %v1784
        %1786 = vmatprep.mubr.bf16.mxu0 %v1682
        %1787 = vmatmul.mubr.bf16.gmra.mrb[0].mxu0 %v1681
        %v1788 = vpop.f32.mrb[0].mxu0
        %v1789 = vadd.f32 %v1736, %v1788
        %v1790 = vpop.f32.mrb[0].mxu0
        %v1791 = vadd.f32 %v1738, %v1790
        %v1792 = vpop.f32.mrb[0].mxu0
        %v1793 = vadd.f32 %v1740, %v1792
        %v1794 = vpop.f32.mrb[0].mxu0
        %v1795 = vadd.f32 %v1742, %v1794
        %1796 = vdwg.mxu0
        %s1797 = sld [smem:[#allocation3 + $0x18]]
        %v1798 = vstv %s1797
        %v1799 = vmul.f32 %v1798, %v338
        %s1800 = sld [smem:[#allocation3 + $0x19]]
        %v1801 = vstv %s1800
        %v1802 = vmul.f32 %v1801, %v340
        %v1803 = vadd.f32 %v1799, %v1802
        %s1804 = sld [smem:[#allocation3 + $0x1a]]
        %v1805 = vstv %s1804
        %v1806 = vmul.f32 %v1805, %v342
        %v1807 = vadd.f32 %v1803, %v1806
        %s1808 = sld [smem:[#allocation3 + $0x1b]]
        %v1809 = vstv %s1808
        %v1810 = vadd.f32 %v1807, %v1809
        %s1811 = sld [smem:[#allocation3 + $0x1c]]
        %v1812 = vstv %s1811
        %v1813 = vmul.f32 %v1812, %v338
        %s1814 = sld [smem:[#allocation3 + $0x1d]]
        %v1815 = vstv %s1814
        %v1816 = vmul.f32 %v1815, %v340
        %v1817 = vadd.f32 %v1813, %v1816
        %s1818 = sld [smem:[#allocation3 + $0x1e]]
        %v1819 = vstv %s1818
        %v1820 = vmul.f32 %v1819, %v342
        %v1821 = vadd.f32 %v1817, %v1820
        %s1822 = sld [smem:[#allocation3 + $0x1f]]
        %v1823 = vstv %s1822
        %v1824 = vadd.f32 %v1821, %v1823
        %s1825 = sld [smem:[#allocation3 + $0x20]]
        %v1826 = vstv %s1825
        %v1827 = vmul.f32 %v1826, %v338
        %s1828 = sld [smem:[#allocation3 + $0x21]]
        %v1829 = vstv %s1828
        %v1830 = vmul.f32 %v1829, %v340
        %v1831 = vadd.f32 %v1827, %v1830
        %s1832 = sld [smem:[#allocation3 + $0x22]]
        %v1833 = vstv %s1832
        %v1834 = vmul.f32 %v1833, %v342
        %v1835 = vadd.f32 %v1831, %v1834
        %s1836 = sld [smem:[#allocation3 + $0x23]]
        %v1837 = vstv %s1836
        %v1838 = vadd.f32 %v1835, %v1837
        %v1840 = vlaneseq
        %v1841 = vshrl.u32 %v1840, 7
        %v1842 = vsub.s32 0, %v1841
        %v1843 = vrot.slane %v1810, %v1842
        %v1844 = vlaneseq
        %v1845 = vshrl.u32 %v1844, 7
        %v1846 = vsub.s32 1, %v1845
        %v1847 = vrot.slane %v1810, %v1846
        %v1850 = vsub.f32 %v345, %v1843
        %v1851 = vsub.f32 %v345, %v1847
        %v1852 = vand.u32 2147483647, %v1850
        %v1853 = vand.u32 2147483647, %v1851
        %v1854 = vsub.f32 1.0, %v1852
        %v1855 = vsub.f32 1.0, %v1853
        %v1856 = vmax.f32 %v1854, 0.0
        %v1857 = vmax.f32 %v1855, 0.0
        %v1859 = vlaneseq
        %v1860 = vshrl.u32 %v1859, 7
        %v1861 = vsub.s32 0, %v1860
        %v1862 = vrot.slane %v1824, %v1861
        %v1863 = vlaneseq
        %v1864 = vshrl.u32 %v1863, 7
        %v1865 = vsub.s32 1, %v1864
        %v1866 = vrot.slane %v1824, %v1865
        %v1869 = vsub.f32 %v345, %v1862
        %v1870 = vsub.f32 %v345, %v1866
        %v1871 = vand.u32 2147483647, %v1869
        %v1872 = vand.u32 2147483647, %v1870
        %v1873 = vsub.f32 1.0, %v1871
        %v1874 = vsub.f32 1.0, %v1872
        %v1875 = vmax.f32 %v1873, 0.0
        %v1876 = vmax.f32 %v1874, 0.0
        %v1878 = vlaneseq
        %v1879 = vshrl.u32 %v1878, 7
        %v1880 = vsub.s32 0, %v1879
        %v1881 = vrot.slane %v1838, %v1880
        %v1882 = vlaneseq
        %v1883 = vshrl.u32 %v1882, 7
        %v1884 = vsub.s32 1, %v1883
        %v1885 = vrot.slane %v1838, %v1884
        %v1888 = vsub.f32 %v345, %v1881
        %v1889 = vsub.f32 %v345, %v1885
        %v1890 = vand.u32 2147483647, %v1888
        %v1891 = vand.u32 2147483647, %v1889
        %v1892 = vsub.f32 1.0, %v1890
        %v1893 = vsub.f32 1.0, %v1891
        %v1894 = vmax.f32 %v1892, 0.0
        %v1895 = vmax.f32 %v1893, 0.0
        %v1898 = vcombine.low %v1875, %v1876
        %v1899 = vcombine.high %v1875, %v1876
        %v1901 = vunpack.c.l.s4 1966171168
        %v1902 = vunpack.c.0.s8 %v1901
        %v1903 = vlaneseq
        %v1904 = vshrl.u32 %v1903, 7
        %v1905 = vsub.s32 %v1902, %v1904
        %v1906 = vrot.slane %v1898, %v1905
        %v1908 = vunpack.c.l.s4 1966171168
        %v1909 = vunpack.c.0.s8 %v1908
        %v1910 = vlaneseq
        %v1911 = vshrl.u32 %v1910, 7
        %v1912 = vsub.s32 %v1909, %v1911
        %v1913 = vrot.slane %v1899, %v1912
        %v1914 = vcombine.high %v1906, %v1906
        %v1915 = vcombine.high %v1913, %v1913
        %v1917 = vunpack.c.l.s4 1966171168
        %v1918 = vunpack.c.0.s8 %v1917
        %v1919 = vlaneseq
        %v1920 = vshrl.u32 %v1919, 7
        %v1921 = vsub.s32 %v1918, %v1920
        %v1922 = vrot.slane %v1906, %v1921
        %v1924 = vunpack.c.l.s4 1966171168
        %v1925 = vunpack.c.0.s8 %v1924
        %v1926 = vlaneseq
        %v1927 = vshrl.u32 %v1926, 7
        %v1928 = vsub.s32 %v1925, %v1927
        %v1929 = vrot.slane %v1913, %v1928
        %v1931 = vunpack.c.l.s4 1966171168
        %v1932 = vunpack.c.0.s8 %v1931
        %v1933 = vlaneseq
        %v1934 = vshrl.u32 %v1933, 7
        %v1935 = vsub.s32 %v1932, %v1934
        %v1936 = vrot.slane %v1914, %v1935
        %v1938 = vunpack.c.l.s4 1966171168
        %v1939 = vunpack.c.0.s8 %v1938
        %v1940 = vlaneseq
        %v1941 = vshrl.u32 %v1940, 7
        %v1942 = vsub.s32 %v1939, %v1941
        %v1943 = vrot.slane %v1915, %v1942
        %v1944 = vcombine.high %v1922, %v1922
        %v1945 = vcombine.high %v1929, %v1929
        %v1946 = vcombine.high %v1936, %v1936
        %v1947 = vcombine.high %v1943, %v1943
        %v1948 = vlaneseq
        %v1949 = vshrl.u32 %v1948, 7
        %v1950 = vsub.s32 0, %v1949
        %v1951 = vrot.slane %v1922, %v1950
        %v1952 = vlaneseq
        %v1953 = vshrl.u32 %v1952, 7
        %v1954 = vsub.s32 1, %v1953
        %v1955 = vrot.slane %v1922, %v1954
        %v1956 = vlaneseq
        %v1957 = vshrl.u32 %v1956, 7
        %v1958 = vsub.s32 0, %v1957
        %v1959 = vrot.slane %v1936, %v1958
        %v1960 = vlaneseq
        %v1961 = vshrl.u32 %v1960, 7
        %v1962 = vsub.s32 1, %v1961
        %v1963 = vrot.slane %v1936, %v1962
        %v1964 = vlaneseq
        %v1965 = vshrl.u32 %v1964, 7
        %v1966 = vsub.s32 0, %v1965
        %v1967 = vrot.slane %v1944, %v1966
        %v1968 = vlaneseq
        %v1969 = vshrl.u32 %v1968, 7
        %v1970 = vsub.s32 1, %v1969
        %v1971 = vrot.slane %v1944, %v1970
        %v1972 = vlaneseq
        %v1973 = vshrl.u32 %v1972, 7
        %v1974 = vsub.s32 0, %v1973
        %v1975 = vrot.slane %v1946, %v1974
        %v1976 = vlaneseq
        %v1977 = vshrl.u32 %v1976, 7
        %v1978 = vsub.s32 1, %v1977
        %v1979 = vrot.slane %v1946, %v1978
        %v1980 = vlaneseq
        %v1981 = vshrl.u32 %v1980, 7
        %v1982 = vsub.s32 0, %v1981
        %v1983 = vrot.slane %v1929, %v1982
        %v1984 = vlaneseq
        %v1985 = vshrl.u32 %v1984, 7
        %v1986 = vsub.s32 1, %v1985
        %v1987 = vrot.slane %v1929, %v1986
        %v1988 = vlaneseq
        %v1989 = vshrl.u32 %v1988, 7
        %v1990 = vsub.s32 0, %v1989
        %v1991 = vrot.slane %v1943, %v1990
        %v1992 = vlaneseq
        %v1993 = vshrl.u32 %v1992, 7
        %v1994 = vsub.s32 1, %v1993
        %v1995 = vrot.slane %v1943, %v1994
        %v1996 = vlaneseq
        %v1997 = vshrl.u32 %v1996, 7
        %v1998 = vsub.s32 0, %v1997
        %v1999 = vrot.slane %v1945, %v1998
        %v2000 = vlaneseq
        %v2001 = vshrl.u32 %v2000, 7
        %v2002 = vsub.s32 1, %v2001
        %v2003 = vrot.slane %v1945, %v2002
        %v2004 = vlaneseq
        %v2005 = vshrl.u32 %v2004, 7
        %v2006 = vsub.s32 0, %v2005
        %v2007 = vrot.slane %v1947, %v2006
        %v2008 = vlaneseq
        %v2009 = vshrl.u32 %v2008, 7
        %v2010 = vsub.s32 1, %v2009
        %v2011 = vrot.slane %v1947, %v2010
        %v2028 = vmul.f32 %v1951, %v1856
        %v2029 = vmul.f32 %v1955, %v1857
        %v2030 = vmul.f32 %v1959, %v1856
        %v2031 = vmul.f32 %v1963, %v1857
        %v2032 = vmul.f32 %v1967, %v1856
        %v2033 = vmul.f32 %v1971, %v1857
        %v2034 = vmul.f32 %v1975, %v1856
        %v2035 = vmul.f32 %v1979, %v1857
        %v2036 = vmul.f32 %v1983, %v1856
        %v2037 = vmul.f32 %v1987, %v1857
        %v2038 = vmul.f32 %v1991, %v1856
        %v2039 = vmul.f32 %v1995, %v1857
        %v2040 = vmul.f32 %v1999, %v1856
        %v2041 = vmul.f32 %v2003, %v1857
        %v2042 = vmul.f32 %v2007, %v1856
        %v2043 = vmul.f32 %v2011, %v1857
        %v2046 = vcombine.low %v1894, %v1895
        %v2047 = vcombine.high %v1894, %v1895
        %v2049 = vunpack.c.l.s4 1966171168
        %v2050 = vunpack.c.0.s8 %v2049
        %v2051 = vlaneseq
        %v2052 = vshrl.u32 %v2051, 7
        %v2053 = vsub.s32 %v2050, %v2052
        %v2054 = vrot.slane %v2046, %v2053
        %v2056 = vunpack.c.l.s4 1966171168
        %v2057 = vunpack.c.0.s8 %v2056
        %v2058 = vlaneseq
        %v2059 = vshrl.u32 %v2058, 7
        %v2060 = vsub.s32 %v2057, %v2059
        %v2061 = vrot.slane %v2047, %v2060
        %v2062 = vcombine.high %v2054, %v2054
        %v2063 = vcombine.high %v2061, %v2061
        %v2065 = vunpack.c.l.s4 1966171168
        %v2066 = vunpack.c.0.s8 %v2065
        %v2067 = vlaneseq
        %v2068 = vshrl.u32 %v2067, 7
        %v2069 = vsub.s32 %v2066, %v2068
        %v2070 = vrot.slane %v2054, %v2069
        %v2072 = vunpack.c.l.s4 1966171168
        %v2073 = vunpack.c.0.s8 %v2072
        %v2074 = vlaneseq
        %v2075 = vshrl.u32 %v2074, 7
        %v2076 = vsub.s32 %v2073, %v2075
        %v2077 = vrot.slane %v2061, %v2076
        %v2079 = vunpack.c.l.s4 1966171168
        %v2080 = vunpack.c.0.s8 %v2079
        %v2081 = vlaneseq
        %v2082 = vshrl.u32 %v2081, 7
        %v2083 = vsub.s32 %v2080, %v2082
        %v2084 = vrot.slane %v2062, %v2083
        %v2086 = vunpack.c.l.s4 1966171168
        %v2087 = vunpack.c.0.s8 %v2086
        %v2088 = vlaneseq
        %v2089 = vshrl.u32 %v2088, 7
        %v2090 = vsub.s32 %v2087, %v2089
        %v2091 = vrot.slane %v2063, %v2090
        %v2092 = vcombine.high %v2070, %v2070
        %v2093 = vcombine.high %v2077, %v2077
        %v2094 = vcombine.high %v2084, %v2084
        %v2095 = vcombine.high %v2091, %v2091
        %v2096 = vlaneseq
        %v2097 = vshrl.u32 %v2096, 7
        %v2098 = vsub.s32 0, %v2097
        %v2099 = vrot.slane %v2070, %v2098
        %v2100 = vlaneseq
        %v2101 = vshrl.u32 %v2100, 7
        %v2102 = vsub.s32 1, %v2101
        %v2103 = vrot.slane %v2070, %v2102
        %v2104 = vlaneseq
        %v2105 = vshrl.u32 %v2104, 7
        %v2106 = vsub.s32 0, %v2105
        %v2107 = vrot.slane %v2084, %v2106
        %v2108 = vlaneseq
        %v2109 = vshrl.u32 %v2108, 7
        %v2110 = vsub.s32 1, %v2109
        %v2111 = vrot.slane %v2084, %v2110
        %v2112 = vlaneseq
        %v2113 = vshrl.u32 %v2112, 7
        %v2114 = vsub.s32 0, %v2113
        %v2115 = vrot.slane %v2092, %v2114
        %v2116 = vlaneseq
        %v2117 = vshrl.u32 %v2116, 7
        %v2118 = vsub.s32 1, %v2117
        %v2119 = vrot.slane %v2092, %v2118
        %v2120 = vlaneseq
        %v2121 = vshrl.u32 %v2120, 7
        %v2122 = vsub.s32 0, %v2121
        %v2123 = vrot.slane %v2094, %v2122
        %v2124 = vlaneseq
        %v2125 = vshrl.u32 %v2124, 7
        %v2126 = vsub.s32 1, %v2125
        %v2127 = vrot.slane %v2094, %v2126
        %v2128 = vlaneseq
        %v2129 = vshrl.u32 %v2128, 7
        %v2130 = vsub.s32 0, %v2129
        %v2131 = vrot.slane %v2077, %v2130
        %v2132 = vlaneseq
        %v2133 = vshrl.u32 %v2132, 7
        %v2134 = vsub.s32 1, %v2133
        %v2135 = vrot.slane %v2077, %v2134
        %v2136 = vlaneseq
        %v2137 = vshrl.u32 %v2136, 7
        %v2138 = vsub.s32 0, %v2137
        %v2139 = vrot.slane %v2091, %v2138
        %v2140 = vlaneseq
        %v2141 = vshrl.u32 %v2140, 7
        %v2142 = vsub.s32 1, %v2141
        %v2143 = vrot.slane %v2091, %v2142
        %v2144 = vlaneseq
        %v2145 = vshrl.u32 %v2144, 7
        %v2146 = vsub.s32 0, %v2145
        %v2147 = vrot.slane %v2093, %v2146
        %v2148 = vlaneseq
        %v2149 = vshrl.u32 %v2148, 7
        %v2150 = vsub.s32 1, %v2149
        %v2151 = vrot.slane %v2093, %v2150
        %v2152 = vlaneseq
        %v2153 = vshrl.u32 %v2152, 7
        %v2154 = vsub.s32 0, %v2153
        %v2155 = vrot.slane %v2095, %v2154
        %v2156 = vlaneseq
        %v2157 = vshrl.u32 %v2156, 7
        %v2158 = vsub.s32 1, %v2157
        %v2159 = vrot.slane %v2095, %v2158
        %v2176 = vmul.f32 %v2099, %v2028
        %v2177 = vmul.f32 %v2103, %v2029
        %v2178 = vmul.f32 %v2099, %v2030
        %v2179 = vmul.f32 %v2103, %v2031
        %v2180 = vmul.f32 %v2099, %v2032
        %v2181 = vmul.f32 %v2103, %v2033
        %v2182 = vmul.f32 %v2099, %v2034
        %v2183 = vmul.f32 %v2103, %v2035
        %v2184 = vmul.f32 %v2099, %v2036
        %v2185 = vmul.f32 %v2103, %v2037
        %v2186 = vmul.f32 %v2099, %v2038
        %v2187 = vmul.f32 %v2103, %v2039
        %v2188 = vmul.f32 %v2099, %v2040
        %v2189 = vmul.f32 %v2103, %v2041
        %v2190 = vmul.f32 %v2099, %v2042
        %v2191 = vmul.f32 %v2103, %v2043
        %v2192 = vmul.f32 %v2107, %v2028
        %v2193 = vmul.f32 %v2111, %v2029
        %v2194 = vmul.f32 %v2107, %v2030
        %v2195 = vmul.f32 %v2111, %v2031
        %v2196 = vmul.f32 %v2107, %v2032
        %v2197 = vmul.f32 %v2111, %v2033
        %v2198 = vmul.f32 %v2107, %v2034
        %v2199 = vmul.f32 %v2111, %v2035
        %v2200 = vmul.f32 %v2107, %v2036
        %v2201 = vmul.f32 %v2111, %v2037
        %v2202 = vmul.f32 %v2107, %v2038
        %v2203 = vmul.f32 %v2111, %v2039
        %v2204 = vmul.f32 %v2107, %v2040
        %v2205 = vmul.f32 %v2111, %v2041
        %v2206 = vmul.f32 %v2107, %v2042
        %v2207 = vmul.f32 %v2111, %v2043
        %v2208 = vmul.f32 %v2115, %v2028
        %v2209 = vmul.f32 %v2119, %v2029
        %v2210 = vmul.f32 %v2115, %v2030
        %v2211 = vmul.f32 %v2119, %v2031
        %v2212 = vmul.f32 %v2115, %v2032
        %v2213 = vmul.f32 %v2119, %v2033
        %v2214 = vmul.f32 %v2115, %v2034
        %v2215 = vmul.f32 %v2119, %v2035
        %v2216 = vmul.f32 %v2115, %v2036
        %v2217 = vmul.f32 %v2119, %v2037
        %v2218 = vmul.f32 %v2115, %v2038
        %v2219 = vmul.f32 %v2119, %v2039
        %v2220 = vmul.f32 %v2115, %v2040
        %v2221 = vmul.f32 %v2119, %v2041
        %v2222 = vmul.f32 %v2115, %v2042
        %v2223 = vmul.f32 %v2119, %v2043
        %v2224 = vmul.f32 %v2123, %v2028
        %v2225 = vmul.f32 %v2127, %v2029
        %v2226 = vmul.f32 %v2123, %v2030
        %v2227 = vmul.f32 %v2127, %v2031
        %v2228 = vmul.f32 %v2123, %v2032
        %v2229 = vmul.f32 %v2127, %v2033
        %v2230 = vmul.f32 %v2123, %v2034
        %v2231 = vmul.f32 %v2127, %v2035
        %v2232 = vmul.f32 %v2123, %v2036
        %v2233 = vmul.f32 %v2127, %v2037
        %v2234 = vmul.f32 %v2123, %v2038
        %v2235 = vmul.f32 %v2127, %v2039
        %v2236 = vmul.f32 %v2123, %v2040
        %v2237 = vmul.f32 %v2127, %v2041
        %v2238 = vmul.f32 %v2123, %v2042
        %v2239 = vmul.f32 %v2127, %v2043
        %v2240 = vmul.f32 %v2131, %v2028
        %v2241 = vmul.f32 %v2135, %v2029
        %v2242 = vmul.f32 %v2131, %v2030
        %v2243 = vmul.f32 %v2135, %v2031
        %v2244 = vmul.f32 %v2131, %v2032
        %v2245 = vmul.f32 %v2135, %v2033
        %v2246 = vmul.f32 %v2131, %v2034
        %v2247 = vmul.f32 %v2135, %v2035
        %v2248 = vmul.f32 %v2131, %v2036
        %v2249 = vmul.f32 %v2135, %v2037
        %v2250 = vmul.f32 %v2131, %v2038
        %v2251 = vmul.f32 %v2135, %v2039
        %v2252 = vmul.f32 %v2131, %v2040
        %v2253 = vmul.f32 %v2135, %v2041
        %v2254 = vmul.f32 %v2131, %v2042
        %v2255 = vmul.f32 %v2135, %v2043
        %v2256 = vmul.f32 %v2139, %v2028
        %v2257 = vmul.f32 %v2143, %v2029
        %v2258 = vmul.f32 %v2139, %v2030
        %v2259 = vmul.f32 %v2143, %v2031
        %v2260 = vmul.f32 %v2139, %v2032
        %v2261 = vmul.f32 %v2143, %v2033
        %v2262 = vmul.f32 %v2139, %v2034
        %v2263 = vmul.f32 %v2143, %v2035
        %v2264 = vmul.f32 %v2139, %v2036
        %v2265 = vmul.f32 %v2143, %v2037
        %v2266 = vmul.f32 %v2139, %v2038
        %v2267 = vmul.f32 %v2143, %v2039
        %v2268 = vmul.f32 %v2139, %v2040
        %v2269 = vmul.f32 %v2143, %v2041
        %v2270 = vmul.f32 %v2139, %v2042
        %v2271 = vmul.f32 %v2143, %v2043
        %v2272 = vmul.f32 %v2147, %v2028
        %v2273 = vmul.f32 %v2151, %v2029
        %v2274 = vmul.f32 %v2147, %v2030
        %v2275 = vmul.f32 %v2151, %v2031
        %v2276 = vmul.f32 %v2147, %v2032
        %v2277 = vmul.f32 %v2151, %v2033
        %v2278 = vmul.f32 %v2147, %v2034
        %v2279 = vmul.f32 %v2151, %v2035
        %v2280 = vmul.f32 %v2147, %v2036
        %v2281 = vmul.f32 %v2151, %v2037
        %v2282 = vmul.f32 %v2147, %v2038
        %v2283 = vmul.f32 %v2151, %v2039
        %v2284 = vmul.f32 %v2147, %v2040
        %v2285 = vmul.f32 %v2151, %v2041
        %v2286 = vmul.f32 %v2147, %v2042
        %v2287 = vmul.f32 %v2151, %v2043
        %v2288 = vmul.f32 %v2155, %v2028
        %v2289 = vmul.f32 %v2159, %v2029
        %v2290 = vmul.f32 %v2155, %v2030
        %v2291 = vmul.f32 %v2159, %v2031
        %v2292 = vmul.f32 %v2155, %v2032
        %v2293 = vmul.f32 %v2159, %v2033
        %v2294 = vmul.f32 %v2155, %v2034
        %v2295 = vmul.f32 %v2159, %v2035
        %v2296 = vmul.f32 %v2155, %v2036
        %v2297 = vmul.f32 %v2159, %v2037
        %v2298 = vmul.f32 %v2155, %v2038
        %v2299 = vmul.f32 %v2159, %v2039
        %v2300 = vmul.f32 %v2155, %v2040
        %v2301 = vmul.f32 %v2159, %v2041
        %v2302 = vmul.f32 %v2155, %v2042
        %v2303 = vmul.f32 %v2159, %v2043
        %s2304 = scalar_lea.vmem [#allocation7], 128
        %v2305 = vld [vmem:[%s2304] sm:$0xff]
        %v2306 = vld [vmem:[%s2304 + $0x8] sm:$0xff]
        %v2307 = vld [vmem:[%s2304 + $0x10] sm:$0xff]
        %v2308 = vld [vmem:[%s2304 + $0x18] sm:$0xff]
        %v2309 = vld [vmem:[%s2304 + $0x20] sm:$0xff]
        %v2310 = vld [vmem:[%s2304 + $0x28] sm:$0xff]
        %v2311 = vld [vmem:[%s2304 + $0x30] sm:$0xff]
        %v2312 = vld [vmem:[%s2304 + $0x38] sm:$0xff]
        %v2313 = vpack.c.bf16 %v2178, %v2176
        %v2314 = vpack.c.bf16 %v2179, %v2177
        %v2315 = vpack.c.bf16 %v2182, %v2180
        %v2316 = vpack.c.bf16 %v2183, %v2181
        %v2317 = vpack.c.bf16 %v2186, %v2184
        %v2318 = vpack.c.bf16 %v2187, %v2185
        %v2319 = vpack.c.bf16 %v2190, %v2188
        %v2320 = vpack.c.bf16 %v2191, %v2189
        %v2321 = vpack.c.bf16 %v2194, %v2192
        %v2322 = vpack.c.bf16 %v2195, %v2193
        %v2323 = vpack.c.bf16 %v2198, %v2196
        %v2324 = vpack.c.bf16 %v2199, %v2197
        %v2325 = vpack.c.bf16 %v2202, %v2200
        %v2326 = vpack.c.bf16 %v2203, %v2201
        %v2327 = vpack.c.bf16 %v2206, %v2204
        %v2328 = vpack.c.bf16 %v2207, %v2205
        %v2329 = vpack.c.bf16 %v2210, %v2208
        %v2330 = vpack.c.bf16 %v2211, %v2209
        %v2331 = vpack.c.bf16 %v2214, %v2212
        %v2332 = vpack.c.bf16 %v2215, %v2213
        %v2333 = vpack.c.bf16 %v2218, %v2216
        %v2334 = vpack.c.bf16 %v2219, %v2217
        %v2335 = vpack.c.bf16 %v2222, %v2220
        %v2336 = vpack.c.bf16 %v2223, %v2221
        %v2337 = vpack.c.bf16 %v2226, %v2224
        %v2338 = vpack.c.bf16 %v2227, %v2225
        %v2339 = vpack.c.bf16 %v2230, %v2228
        %v2340 = vpack.c.bf16 %v2231, %v2229
        %v2341 = vpack.c.bf16 %v2234, %v2232
        %v2342 = vpack.c.bf16 %v2235, %v2233
        %v2343 = vpack.c.bf16 %v2238, %v2236
        %v2344 = vpack.c.bf16 %v2239, %v2237
        %v2345 = vpack.c.bf16 %v2242, %v2240
        %v2346 = vpack.c.bf16 %v2243, %v2241
        %v2347 = vpack.c.bf16 %v2246, %v2244
        %v2348 = vpack.c.bf16 %v2247, %v2245
        %v2349 = vpack.c.bf16 %v2250, %v2248
        %v2350 = vpack.c.bf16 %v2251, %v2249
        %v2351 = vpack.c.bf16 %v2254, %v2252
        %v2352 = vpack.c.bf16 %v2255, %v2253
        %v2353 = vpack.c.bf16 %v2258, %v2256
        %v2354 = vpack.c.bf16 %v2259, %v2257
        %v2355 = vpack.c.bf16 %v2262, %v2260
        %v2356 = vpack.c.bf16 %v2263, %v2261
        %v2357 = vpack.c.bf16 %v2266, %v2264
        %v2358 = vpack.c.bf16 %v2267, %v2265
        %v2359 = vpack.c.bf16 %v2270, %v2268
        %v2360 = vpack.c.bf16 %v2271, %v2269
        %v2361 = vpack.c.bf16 %v2274, %v2272
        %v2362 = vpack.c.bf16 %v2275, %v2273
        %v2363 = vpack.c.bf16 %v2278, %v2276
        %v2364 = vpack.c.bf16 %v2279, %v2277
        %v2365 = vpack.c.bf16 %v2282, %v2280
        %v2366 = vpack.c.bf16 %v2283, %v2281
        %v2367 = vpack.c.bf16 %v2286, %v2284
        %v2368 = vpack.c.bf16 %v2287, %v2285
        %v2369 = vpack.c.bf16 %v2290, %v2288
        %v2370 = vpack.c.bf16 %v2291, %v2289
        %v2371 = vpack.c.bf16 %v2294, %v2292
        %v2372 = vpack.c.bf16 %v2295, %v2293
        %v2373 = vpack.c.bf16 %v2298, %v2296
        %v2374 = vpack.c.bf16 %v2299, %v2297
        %v2375 = vpack.c.bf16 %v2302, %v2300
        %v2376 = vpack.c.bf16 %v2303, %v2301
        %v2385 = vunpack.c.l.b16 %v2305
        %v2386 = vunpack.c.h.b16 %v2305
        %v2387 = vunpack.c.l.b16 %v2306
        %v2388 = vunpack.c.h.b16 %v2306
        %v2389 = vunpack.c.l.b16 %v2307
        %v2390 = vunpack.c.h.b16 %v2307
        %v2391 = vunpack.c.l.b16 %v2308
        %v2392 = vunpack.c.h.b16 %v2308
        %v2393 = vunpack.c.l.b16 %v2309
        %v2394 = vunpack.c.h.b16 %v2309
        %v2395 = vunpack.c.l.b16 %v2310
        %v2396 = vunpack.c.h.b16 %v2310
        %v2397 = vunpack.c.l.b16 %v2311
        %v2398 = vunpack.c.h.b16 %v2311
        %v2399 = vunpack.c.l.b16 %v2312
        %v2400 = vunpack.c.h.b16 %v2312
        %v2401 = vpack.c.b16 %v2389, %v2385
        %v2402 = vpack.c.b16 %v2390, %v2386
        %v2403 = vpack.c.b16 %v2391, %v2387
        %v2404 = vpack.c.b16 %v2392, %v2388
        %v2405 = vpack.c.b16 %v2397, %v2393
        %v2406 = vpack.c.b16 %v2398, %v2394
        %v2407 = vpack.c.b16 %v2399, %v2395
        %v2408 = vpack.c.b16 %v2400, %v2396
        %2417 = vmatprep.subr.bf16.mxu0 %v2314
        %2418 = vmatpush1.bf16.msra.mxu0 %v2313
        %2419 = vmatprep.subr.bf16.mxu0 %v2316
        %2420 = vmatpush1.bf16.msra.mxu0 %v2315
        %2421 = vmatprep.subr.bf16.mxu0 %v2318
        %2422 = vmatpush1.bf16.msra.mxu0 %v2317
        %2423 = vmatprep.subr.bf16.mxu0 %v2320
        %2424 = vmatpush1.bf16.msra.mxu0 %v2319
        %2425 = vmatprep.subr.bf16.mxu0 %v2322
        %2426 = vmatpush1.bf16.msra.mxu0 %v2321
        %2427 = vmatprep.subr.bf16.mxu0 %v2324
        %2428 = vmatpush1.bf16.msra.mxu0 %v2323
        %2429 = vmatprep.subr.bf16.mxu0 %v2326
        %2430 = vmatpush1.bf16.msra.mxu0 %v2325
        %2431 = vmatprep.subr.bf16.mxu0 %v2328
        %2432 = vmatpush1.bf16.msra.mxu0 %v2327
        %2433 = vmatprep.subr.bf16.mxu0 %v2330
        %2434 = vmatpush1.bf16.msra.mxu0 %v2329
        %2435 = vmatprep.subr.bf16.mxu0 %v2332
        %2436 = vmatpush1.bf16.msra.mxu0 %v2331
        %2437 = vmatprep.subr.bf16.mxu0 %v2334
        %2438 = vmatpush1.bf16.msra.mxu0 %v2333
        %2439 = vmatprep.subr.bf16.mxu0 %v2336
        %2440 = vmatpush1.bf16.msra.mxu0 %v2335
        %2441 = vmatprep.subr.bf16.mxu0 %v2338
        %2442 = vmatpush1.bf16.msra.mxu0 %v2337
        %2443 = vmatprep.subr.bf16.mxu0 %v2340
        %2444 = vmatpush1.bf16.msra.mxu0 %v2339
        %2445 = vmatprep.subr.bf16.mxu0 %v2342
        %2446 = vmatpush1.bf16.msra.mxu0 %v2341
        %2447 = vmatprep.subr.bf16.mxu0 %v2344
        %2448 = vmatpush1.bf16.msra.mxu0 %v2343
        %2449 = vmatprep.mubr.bf16.mxu0 %v2402
        %2450 = vmatmul.mubr.bf16.gmra.mrb[0].mxu0 %v2401
        %v2451 = vpop.f32.mrb[0].mxu0
        %v2452 = vadd.f32 0.0, %v2451
        %v2453 = vpop.f32.mrb[0].mxu0
        %v2454 = vadd.f32 0.0, %v2453
        %v2455 = vpop.f32.mrb[0].mxu0
        %v2456 = vadd.f32 0.0, %v2455
        %v2457 = vpop.f32.mrb[0].mxu0
        %v2458 = vadd.f32 0.0, %v2457
        %2459 = vmatprep.mubr.bf16.mxu0 %v2406
        %2460 = vmatmul.mubr.bf16.gmra.mrb[0].mxu0 %v2405
        %v2461 = vpop.f32.mrb[0].mxu0
        %v2462 = vadd.f32 0.0, %v2461
        %v2463 = vpop.f32.mrb[0].mxu0
        %v2464 = vadd.f32 0.0, %v2463
        %v2465 = vpop.f32.mrb[0].mxu0
        %v2466 = vadd.f32 0.0, %v2465
        %v2467 = vpop.f32.mrb[0].mxu0
        %v2468 = vadd.f32 0.0, %v2467
        %2469 = vdwg.mxu0
        %2470 = vmatprep.subr.bf16.mxu0 %v2346
        %2471 = vmatpush1.bf16.msra.mxu0 %v2345
        %2472 = vmatprep.subr.bf16.mxu0 %v2348
        %2473 = vmatpush1.bf16.msra.mxu0 %v2347
        %2474 = vmatprep.subr.bf16.mxu0 %v2350
        %2475 = vmatpush1.bf16.msra.mxu0 %v2349
        %2476 = vmatprep.subr.bf16.mxu0 %v2352
        %2477 = vmatpush1.bf16.msra.mxu0 %v2351
        %2478 = vmatprep.subr.bf16.mxu0 %v2354
        %2479 = vmatpush1.bf16.msra.mxu0 %v2353
        %2480 = vmatprep.subr.bf16.mxu0 %v2356
        %2481 = vmatpush1.bf16.msra.mxu0 %v2355
        %2482 = vmatprep.subr.bf16.mxu0 %v2358
        %2483 = vmatpush1.bf16.msra.mxu0 %v2357
        %2484 = vmatprep.subr.bf16.mxu0 %v2360
        %2485 = vmatpush1.bf16.msra.mxu0 %v2359
        %2486 = vmatprep.subr.bf16.mxu0 %v2362
        %2487 = vmatpush1.bf16.msra.mxu0 %v2361
        %2488 = vmatprep.subr.bf16.mxu0 %v2364
        %2489 = vmatpush1.bf16.msra.mxu0 %v2363
        %2490 = vmatprep.subr.bf16.mxu0 %v2366
        %2491 = vmatpush1.bf16.msra.mxu0 %v2365
        %2492 = vmatprep.subr.bf16.mxu0 %v2368
        %2493 = vmatpush1.bf16.msra.mxu0 %v2367
        %2494 = vmatprep.subr.bf16.mxu0 %v2370
        %2495 = vmatpush1.bf16.msra.mxu0 %v2369
        %2496 = vmatprep.subr.bf16.mxu0 %v2372
        %2497 = vmatpush1.bf16.msra.mxu0 %v2371
        %2498 = vmatprep.subr.bf16.mxu0 %v2374
        %2499 = vmatpush1.bf16.msra.mxu0 %v2373
        %2500 = vmatprep.subr.bf16.mxu0 %v2376
        %2501 = vmatpush1.bf16.msra.mxu0 %v2375
        %2502 = vmatprep.mubr.bf16.mxu0 %v2404
        %2503 = vmatmul.mubr.bf16.gmra.mrb[0].mxu0 %v2403
        %v2504 = vpop.f32.mrb[0].mxu0
        %v2505 = vadd.f32 %v2452, %v2504
        %v2506 = vpop.f32.mrb[0].mxu0
        %v2507 = vadd.f32 %v2454, %v2506
        %v2508 = vpop.f32.mrb[0].mxu0
        %v2509 = vadd.f32 %v2456, %v2508
        %v2510 = vpop.f32.mrb[0].mxu0
        %v2511 = vadd.f32 %v2458, %v2510
        %2512 = vmatprep.mubr.bf16.mxu0 %v2408
        %2513 = vmatmul.mubr.bf16.gmra.mrb[0].mxu0 %v2407
        %v2514 = vpop.f32.mrb[0].mxu0
        %v2515 = vadd.f32 %v2462, %v2514
        %v2516 = vpop.f32.mrb[0].mxu0
        %v2517 = vadd.f32 %v2464, %v2516
        %v2518 = vpop.f32.mrb[0].mxu0
        %v2519 = vadd.f32 %v2466, %v2518
        %v2520 = vpop.f32.mrb[0].mxu0
        %v2521 = vadd.f32 %v2468, %v2520
        %2522 = vdwg.mxu0
        %v2523 = vadd.f32 %v1779, %v2505
        %v2524 = vadd.f32 %v1781, %v2507
        %v2525 = vadd.f32 %v1783, %v2509
        %v2526 = vadd.f32 %v1785, %v2511
        %v2527 = vadd.f32 %v1789, %v2515
        %v2528 = vadd.f32 %v1791, %v2517
        %v2529 = vadd.f32 %v1793, %v2519
        %v2530 = vadd.f32 %v1795, %v2521
        %s2531 = sld [smem:[#allocation3 + $0x24]]
        %v2532 = vstv %s2531
        %v2533 = vmul.f32 %v2532, %v338
        %s2534 = sld [smem:[#allocation3 + $0x25]]
        %v2535 = vstv %s2534
        %v2536 = vmul.f32 %v2535, %v340
        %v2537 = vadd.f32 %v2533, %v2536
        %s2538 = sld [smem:[#allocation3 + $0x26]]
        %v2539 = vstv %s2538
        %v2540 = vmul.f32 %v2539, %v342
        %v2541 = vadd.f32 %v2537, %v2540
        %s2542 = sld [smem:[#allocation3 + $0x27]]
        %v2543 = vstv %s2542
        %v2544 = vadd.f32 %v2541, %v2543
        %s2545 = sld [smem:[#allocation3 + $0x28]]
        %v2546 = vstv %s2545
        %v2547 = vmul.f32 %v2546, %v338
        %s2548 = sld [smem:[#allocation3 + $0x29]]
        %v2549 = vstv %s2548
        %v2550 = vmul.f32 %v2549, %v340
        %v2551 = vadd.f32 %v2547, %v2550
        %s2552 = sld [smem:[#allocation3 + $0x2a]]
        %v2553 = vstv %s2552
        %v2554 = vmul.f32 %v2553, %v342
        %v2555 = vadd.f32 %v2551, %v2554
        %s2556 = sld [smem:[#allocation3 + $0x2b]]
        %v2557 = vstv %s2556
        %v2558 = vadd.f32 %v2555, %v2557
        %s2559 = sld [smem:[#allocation3 + $0x2c]]
        %v2560 = vstv %s2559
        %v2561 = vmul.f32 %v2560, %v338
        %s2562 = sld [smem:[#allocation3 + $0x2d]]
        %v2563 = vstv %s2562
        %v2564 = vmul.f32 %v2563, %v340
        %v2565 = vadd.f32 %v2561, %v2564
        %s2566 = sld [smem:[#allocation3 + $0x2e]]
        %v2567 = vstv %s2566
        %v2568 = vmul.f32 %v2567, %v342
        %v2569 = vadd.f32 %v2565, %v2568
        %s2570 = sld [smem:[#allocation3 + $0x2f]]
        %v2571 = vstv %s2570
        %v2572 = vadd.f32 %v2569, %v2571
        %v2574 = vlaneseq
        %v2575 = vshrl.u32 %v2574, 7
        %v2576 = vsub.s32 0, %v2575
        %v2577 = vrot.slane %v2544, %v2576
        %v2578 = vlaneseq
        %v2579 = vshrl.u32 %v2578, 7
        %v2580 = vsub.s32 1, %v2579
        %v2581 = vrot.slane %v2544, %v2580
        %v2584 = vsub.f32 %v345, %v2577
        %v2585 = vsub.f32 %v345, %v2581
        %v2586 = vand.u32 2147483647, %v2584
        %v2587 = vand.u32 2147483647, %v2585
        %v2588 = vsub.f32 1.0, %v2586
        %v2589 = vsub.f32 1.0, %v2587
        %v2590 = vmax.f32 %v2588, 0.0
        %v2591 = vmax.f32 %v2589, 0.0
        %v2593 = vlaneseq
        %v2594 = vshrl.u32 %v2593, 7
        %v2595 = vsub.s32 0, %v2594
        %v2596 = vrot.slane %v2558, %v2595
        %v2597 = vlaneseq
        %v2598 = vshrl.u32 %v2597, 7
        %v2599 = vsub.s32 1, %v2598
        %v2600 = vrot.slane %v2558, %v2599
        %v2603 = vsub.f32 %v345, %v2596
        %v2604 = vsub.f32 %v345, %v2600
        %v2605 = vand.u32 2147483647, %v2603
        %v2606 = vand.u32 2147483647, %v2604
        %v2607 = vsub.f32 1.0, %v2605
        %v2608 = vsub.f32 1.0, %v2606
        %v2609 = vmax.f32 %v2607, 0.0
        %v2610 = vmax.f32 %v2608, 0.0
        %v2612 = vlaneseq
        %v2613 = vshrl.u32 %v2612, 7
        %v2614 = vsub.s32 0, %v2613
        %v2615 = vrot.slane %v2572, %v2614
        %v2616 = vlaneseq
        %v2617 = vshrl.u32 %v2616, 7
        %v2618 = vsub.s32 1, %v2617
        %v2619 = vrot.slane %v2572, %v2618
        %v2622 = vsub.f32 %v345, %v2615
        %v2623 = vsub.f32 %v345, %v2619
        %v2624 = vand.u32 2147483647, %v2622
        %v2625 = vand.u32 2147483647, %v2623
        %v2626 = vsub.f32 1.0, %v2624
        %v2627 = vsub.f32 1.0, %v2625
        %v2628 = vmax.f32 %v2626, 0.0
        %v2629 = vmax.f32 %v2627, 0.0
        %v2632 = vcombine.low %v2609, %v2610
        %v2633 = vcombine.high %v2609, %v2610
        %v2635 = vunpack.c.l.s4 1966171168
        %v2636 = vunpack.c.0.s8 %v2635
        %v2637 = vlaneseq
        %v2638 = vshrl.u32 %v2637, 7
        %v2639 = vsub.s32 %v2636, %v2638
        %v2640 = vrot.slane %v2632, %v2639
        %v2642 = vunpack.c.l.s4 1966171168
        %v2643 = vunpack.c.0.s8 %v2642
        %v2644 = vlaneseq
        %v2645 = vshrl.u32 %v2644, 7
        %v2646 = vsub.s32 %v2643, %v2645
        %v2647 = vrot.slane %v2633, %v2646
        %v2648 = vcombine.high %v2640, %v2640
        %v2649 = vcombine.high %v2647, %v2647
        %v2651 = vunpack.c.l.s4 1966171168
        %v2652 = vunpack.c.0.s8 %v2651
        %v2653 = vlaneseq
        %v2654 = vshrl.u32 %v2653, 7
        %v2655 = vsub.s32 %v2652, %v2654
        %v2656 = vrot.slane %v2640, %v2655
        %v2658 = vunpack.c.l.s4 1966171168
        %v2659 = vunpack.c.0.s8 %v2658
        %v2660 = vlaneseq
        %v2661 = vshrl.u32 %v2660, 7
        %v2662 = vsub.s32 %v2659, %v2661
        %v2663 = vrot.slane %v2647, %v2662
        %v2665 = vunpack.c.l.s4 1966171168
        %v2666 = vunpack.c.0.s8 %v2665
        %v2667 = vlaneseq
        %v2668 = vshrl.u32 %v2667, 7
        %v2669 = vsub.s32 %v2666, %v2668
        %v2670 = vrot.slane %v2648, %v2669
        %v2672 = vunpack.c.l.s4 1966171168
        %v2673 = vunpack.c.0.s8 %v2672
        %v2674 = vlaneseq
        %v2675 = vshrl.u32 %v2674, 7
        %v2676 = vsub.s32 %v2673, %v2675
        %v2677 = vrot.slane %v2649, %v2676
        %v2678 = vcombine.high %v2656, %v2656
        %v2679 = vcombine.high %v2663, %v2663
        %v2680 = vcombine.high %v2670, %v2670
        %v2681 = vcombine.high %v2677, %v2677
        %v2682 = vlaneseq
        %v2683 = vshrl.u32 %v2682, 7
        %v2684 = vsub.s32 0, %v2683
        %v2685 = vrot.slane %v2656, %v2684
        %v2686 = vlaneseq
        %v2687 = vshrl.u32 %v2686, 7
        %v2688 = vsub.s32 1, %v2687
        %v2689 = vrot.slane %v2656, %v2688
        %v2690 = vlaneseq
        %v2691 = vshrl.u32 %v2690, 7
        %v2692 = vsub.s32 0, %v2691
        %v2693 = vrot.slane %v2670, %v2692
        %v2694 = vlaneseq
        %v2695 = vshrl.u32 %v2694, 7
        %v2696 = vsub.s32 1, %v2695
        %v2697 = vrot.slane %v2670, %v2696
        %v2698 = vlaneseq
        %v2699 = vshrl.u32 %v2698, 7
        %v2700 = vsub.s32 0, %v2699
        %v2701 = vrot.slane %v2678, %v2700
        %v2702 = vlaneseq
        %v2703 = vshrl.u32 %v2702, 7
        %v2704 = vsub.s32 1, %v2703
        %v2705 = vrot.slane %v2678, %v2704
        %v2706 = vlaneseq
        %v2707 = vshrl.u32 %v2706, 7
        %v2708 = vsub.s32 0, %v2707
        %v2709 = vrot.slane %v2680, %v2708
        %v2710 = vlaneseq
        %v2711 = vshrl.u32 %v2710, 7
        %v2712 = vsub.s32 1, %v2711
        %v2713 = vrot.slane %v2680, %v2712
        %v2714 = vlaneseq
        %v2715 = vshrl.u32 %v2714, 7
        %v2716 = vsub.s32 0, %v2715
        %v2717 = vrot.slane %v2663, %v2716
        %v2718 = vlaneseq
        %v2719 = vshrl.u32 %v2718, 7
        %v2720 = vsub.s32 1, %v2719
        %v2721 = vrot.slane %v2663, %v2720
        %v2722 = vlaneseq
        %v2723 = vshrl.u32 %v2722, 7
        %v2724 = vsub.s32 0, %v2723
        %v2725 = vrot.slane %v2677, %v2724
        %v2726 = vlaneseq
        %v2727 = vshrl.u32 %v2726, 7
        %v2728 = vsub.s32 1, %v2727
        %v2729 = vrot.slane %v2677, %v2728
        %v2730 = vlaneseq
        %v2731 = vshrl.u32 %v2730, 7
        %v2732 = vsub.s32 0, %v2731
        %v2733 = vrot.slane %v2679, %v2732
        %v2734 = vlaneseq
        %v2735 = vshrl.u32 %v2734, 7
        %v2736 = vsub.s32 1, %v2735
        %v2737 = vrot.slane %v2679, %v2736
        %v2738 = vlaneseq
        %v2739 = vshrl.u32 %v2738, 7
        %v2740 = vsub.s32 0, %v2739
        %v2741 = vrot.slane %v2681, %v2740
        %v2742 = vlaneseq
        %v2743 = vshrl.u32 %v2742, 7
        %v2744 = vsub.s32 1, %v2743
        %v2745 = vrot.slane %v2681, %v2744
        %v2762 = vmul.f32 %v2685, %v2590
        %v2763 = vmul.f32 %v2689, %v2591
        %v2764 = vmul.f32 %v2693, %v2590
        %v2765 = vmul.f32 %v2697, %v2591
        %v2766 = vmul.f32 %v2701, %v2590
        %v2767 = vmul.f32 %v2705, %v2591
        %v2768 = vmul.f32 %v2709, %v2590
        %v2769 = vmul.f32 %v2713, %v2591
        %v2770 = vmul.f32 %v2717, %v2590
        %v2771 = vmul.f32 %v2721, %v2591
        %v2772 = vmul.f32 %v2725, %v2590
        %v2773 = vmul.f32 %v2729, %v2591
        %v2774 = vmul.f32 %v2733, %v2590
        %v2775 = vmul.f32 %v2737, %v2591
        %v2776 = vmul.f32 %v2741, %v2590
        %v2777 = vmul.f32 %v2745, %v2591
        %v2780 = vcombine.low %v2628, %v2629
        %v2781 = vcombine.high %v2628, %v2629
        %v2783 = vunpack.c.l.s4 1966171168
        %v2784 = vunpack.c.0.s8 %v2783
        %v2785 = vlaneseq
        %v2786 = vshrl.u32 %v2785, 7
        %v2787 = vsub.s32 %v2784, %v2786
        %v2788 = vrot.slane %v2780, %v2787
        %v2790 = vunpack.c.l.s4 1966171168
        %v2791 = vunpack.c.0.s8 %v2790
        %v2792 = vlaneseq
        %v2793 = vshrl.u32 %v2792, 7
        %v2794 = vsub.s32 %v2791, %v2793
        %v2795 = vrot.slane %v2781, %v2794
        %v2796 = vcombine.high %v2788, %v2788
        %v2797 = vcombine.high %v2795, %v2795
        %v2799 = vunpack.c.l.s4 1966171168
        %v2800 = vunpack.c.0.s8 %v2799
        %v2801 = vlaneseq
        %v2802 = vshrl.u32 %v2801, 7
        %v2803 = vsub.s32 %v2800, %v2802
        %v2804 = vrot.slane %v2788, %v2803
        %v2806 = vunpack.c.l.s4 1966171168
        %v2807 = vunpack.c.0.s8 %v2806
        %v2808 = vlaneseq
        %v2809 = vshrl.u32 %v2808, 7
        %v2810 = vsub.s32 %v2807, %v2809
        %v2811 = vrot.slane %v2795, %v2810
        %v2813 = vunpack.c.l.s4 1966171168
        %v2814 = vunpack.c.0.s8 %v2813
        %v2815 = vlaneseq
        %v2816 = vshrl.u32 %v2815, 7
        %v2817 = vsub.s32 %v2814, %v2816
        %v2818 = vrot.slane %v2796, %v2817
        %v2820 = vunpack.c.l.s4 1966171168
        %v2821 = vunpack.c.0.s8 %v2820
        %v2822 = vlaneseq
        %v2823 = vshrl.u32 %v2822, 7
        %v2824 = vsub.s32 %v2821, %v2823
        %v2825 = vrot.slane %v2797, %v2824
        %v2826 = vcombine.high %v2804, %v2804
        %v2827 = vcombine.high %v2811, %v2811
        %v2828 = vcombine.high %v2818, %v2818
        %v2829 = vcombine.high %v2825, %v2825
        %v2830 = vlaneseq
        %v2831 = vshrl.u32 %v2830, 7
        %v2832 = vsub.s32 0, %v2831
        %v2833 = vrot.slane %v2804, %v2832
        %v2834 = vlaneseq
        %v2835 = vshrl.u32 %v2834, 7
        %v2836 = vsub.s32 1, %v2835
        %v2837 = vrot.slane %v2804, %v2836
        %v2838 = vlaneseq
        %v2839 = vshrl.u32 %v2838, 7
        %v2840 = vsub.s32 0, %v2839
        %v2841 = vrot.slane %v2818, %v2840
        %v2842 = vlaneseq
        %v2843 = vshrl.u32 %v2842, 7
        %v2844 = vsub.s32 1, %v2843
        %v2845 = vrot.slane %v2818, %v2844
        %v2846 = vlaneseq
        %v2847 = vshrl.u32 %v2846, 7
        %v2848 = vsub.s32 0, %v2847
        %v2849 = vrot.slane %v2826, %v2848
        %v2850 = vlaneseq
        %v2851 = vshrl.u32 %v2850, 7
        %v2852 = vsub.s32 1, %v2851
        %v2853 = vrot.slane %v2826, %v2852
        %v2854 = vlaneseq
        %v2855 = vshrl.u32 %v2854, 7
        %v2856 = vsub.s32 0, %v2855
        %v2857 = vrot.slane %v2828, %v2856
        %v2858 = vlaneseq
        %v2859 = vshrl.u32 %v2858, 7
        %v2860 = vsub.s32 1, %v2859
        %v2861 = vrot.slane %v2828, %v2860
        %v2862 = vlaneseq
        %v2863 = vshrl.u32 %v2862, 7
        %v2864 = vsub.s32 0, %v2863
        %v2865 = vrot.slane %v2811, %v2864
        %v2866 = vlaneseq
        %v2867 = vshrl.u32 %v2866, 7
        %v2868 = vsub.s32 1, %v2867
        %v2869 = vrot.slane %v2811, %v2868
        %v2870 = vlaneseq
        %v2871 = vshrl.u32 %v2870, 7
        %v2872 = vsub.s32 0, %v2871
        %v2873 = vrot.slane %v2825, %v2872
        %v2874 = vlaneseq
        %v2875 = vshrl.u32 %v2874, 7
        %v2876 = vsub.s32 1, %v2875
        %v2877 = vrot.slane %v2825, %v2876
        %v2878 = vlaneseq
        %v2879 = vshrl.u32 %v2878, 7
        %v2880 = vsub.s32 0, %v2879
        %v2881 = vrot.slane %v2827, %v2880
        %v2882 = vlaneseq
        %v2883 = vshrl.u32 %v2882, 7
        %v2884 = vsub.s32 1, %v2883
        %v2885 = vrot.slane %v2827, %v2884
        %v2886 = vlaneseq
        %v2887 = vshrl.u32 %v2886, 7
        %v2888 = vsub.s32 0, %v2887
        %v2889 = vrot.slane %v2829, %v2888
        %v2890 = vlaneseq
        %v2891 = vshrl.u32 %v2890, 7
        %v2892 = vsub.s32 1, %v2891
        %v2893 = vrot.slane %v2829, %v2892
        %v2910 = vmul.f32 %v2833, %v2762
        %v2911 = vmul.f32 %v2837, %v2763
        %v2912 = vmul.f32 %v2833, %v2764
        %v2913 = vmul.f32 %v2837, %v2765
        %v2914 = vmul.f32 %v2833, %v2766
        %v2915 = vmul.f32 %v2837, %v2767
        %v2916 = vmul.f32 %v2833, %v2768
        %v2917 = vmul.f32 %v2837, %v2769
        %v2918 = vmul.f32 %v2833, %v2770
        %v2919 = vmul.f32 %v2837, %v2771
        %v2920 = vmul.f32 %v2833, %v2772
        %v2921 = vmul.f32 %v2837, %v2773
        %v2922 = vmul.f32 %v2833, %v2774
        %v2923 = vmul.f32 %v2837, %v2775
        %v2924 = vmul.f32 %v2833, %v2776
        %v2925 = vmul.f32 %v2837, %v2777
        %v2926 = vmul.f32 %v2841, %v2762
        %v2927 = vmul.f32 %v2845, %v2763
        %v2928 = vmul.f32 %v2841, %v2764
        %v2929 = vmul.f32 %v2845, %v2765
        %v2930 = vmul.f32 %v2841, %v2766
        %v2931 = vmul.f32 %v2845, %v2767
        %v2932 = vmul.f32 %v2841, %v2768
        %v2933 = vmul.f32 %v2845, %v2769
        %v2934 = vmul.f32 %v2841, %v2770
        %v2935 = vmul.f32 %v2845, %v2771
        %v2936 = vmul.f32 %v2841, %v2772
        %v2937 = vmul.f32 %v2845, %v2773
        %v2938 = vmul.f32 %v2841, %v2774
        %v2939 = vmul.f32 %v2845, %v2775
        %v2940 = vmul.f32 %v2841, %v2776
        %v2941 = vmul.f32 %v2845, %v2777
        %v2942 = vmul.f32 %v2849, %v2762
        %v2943 = vmul.f32 %v2853, %v2763
        %v2944 = vmul.f32 %v2849, %v2764
        %v2945 = vmul.f32 %v2853, %v2765
        %v2946 = vmul.f32 %v2849, %v2766
        %v2947 = vmul.f32 %v2853, %v2767
        %v2948 = vmul.f32 %v2849, %v2768
        %v2949 = vmul.f32 %v2853, %v2769
        %v2950 = vmul.f32 %v2849, %v2770
        %v2951 = vmul.f32 %v2853, %v2771
        %v2952 = vmul.f32 %v2849, %v2772
        %v2953 = vmul.f32 %v2853, %v2773
        %v2954 = vmul.f32 %v2849, %v2774
        %v2955 = vmul.f32 %v2853, %v2775
        %v2956 = vmul.f32 %v2849, %v2776
        %v2957 = vmul.f32 %v2853, %v2777
        %v2958 = vmul.f32 %v2857, %v2762
        %v2959 = vmul.f32 %v2861, %v2763
        %v2960 = vmul.f32 %v2857, %v2764
        %v2961 = vmul.f32 %v2861, %v2765
        %v2962 = vmul.f32 %v2857, %v2766
        %v2963 = vmul.f32 %v2861, %v2767
        %v2964 = vmul.f32 %v2857, %v2768
        %v2965 = vmul.f32 %v2861, %v2769
        %v2966 = vmul.f32 %v2857, %v2770
        %v2967 = vmul.f32 %v2861, %v2771
        %v2968 = vmul.f32 %v2857, %v2772
        %v2969 = vmul.f32 %v2861, %v2773
        %v2970 = vmul.f32 %v2857, %v2774
        %v2971 = vmul.f32 %v2861, %v2775
        %v2972 = vmul.f32 %v2857, %v2776
        %v2973 = vmul.f32 %v2861, %v2777
        %v2974 = vmul.f32 %v2865, %v2762
        %v2975 = vmul.f32 %v2869, %v2763
        %v2976 = vmul.f32 %v2865, %v2764
        %v2977 = vmul.f32 %v2869, %v2765
        %v2978 = vmul.f32 %v2865, %v2766
        %v2979 = vmul.f32 %v2869, %v2767
        %v2980 = vmul.f32 %v2865, %v2768
        %v2981 = vmul.f32 %v2869, %v2769
        %v2982 = vmul.f32 %v2865, %v2770
        %v2983 = vmul.f32 %v2869, %v2771
        %v2984 = vmul.f32 %v2865, %v2772
        %v2985 = vmul.f32 %v2869, %v2773
        %v2986 = vmul.f32 %v2865, %v2774
        %v2987 = vmul.f32 %v2869, %v2775
        %v2988 = vmul.f32 %v2865, %v2776
        %v2989 = vmul.f32 %v2869, %v2777
        %v2990 = vmul.f32 %v2873, %v2762
        %v2991 = vmul.f32 %v2877, %v2763
        %v2992 = vmul.f32 %v2873, %v2764
        %v2993 = vmul.f32 %v2877, %v2765
        %v2994 = vmul.f32 %v2873, %v2766
        %v2995 = vmul.f32 %v2877, %v2767
        %v2996 = vmul.f32 %v2873, %v2768
        %v2997 = vmul.f32 %v2877, %v2769
        %v2998 = vmul.f32 %v2873, %v2770
        %v2999 = vmul.f32 %v2877, %v2771
        %v3000 = vmul.f32 %v2873, %v2772
        %v3001 = vmul.f32 %v2877, %v2773
        %v3002 = vmul.f32 %v2873, %v2774
        %v3003 = vmul.f32 %v2877, %v2775
        %v3004 = vmul.f32 %v2873, %v2776
        %v3005 = vmul.f32 %v2877, %v2777
        %v3006 = vmul.f32 %v2881, %v2762
        %v3007 = vmul.f32 %v2885, %v2763
        %v3008 = vmul.f32 %v2881, %v2764
        %v3009 = vmul.f32 %v2885, %v2765
        %v3010 = vmul.f32 %v2881, %v2766
        %v3011 = vmul.f32 %v2885, %v2767
        %v3012 = vmul.f32 %v2881, %v2768
        %v3013 = vmul.f32 %v2885, %v2769
        %v3014 = vmul.f32 %v2881, %v2770
        %v3015 = vmul.f32 %v2885, %v2771
        %v3016 = vmul.f32 %v2881, %v2772
        %v3017 = vmul.f32 %v2885, %v2773
        %v3018 = vmul.f32 %v2881, %v2774
        %v3019 = vmul.f32 %v2885, %v2775
        %v3020 = vmul.f32 %v2881, %v2776
        %v3021 = vmul.f32 %v2885, %v2777
        %v3022 = vmul.f32 %v2889, %v2762
        %v3023 = vmul.f32 %v2893, %v2763
        %v3024 = vmul.f32 %v2889, %v2764
        %v3025 = vmul.f32 %v2893, %v2765
        %v3026 = vmul.f32 %v2889, %v2766
        %v3027 = vmul.f32 %v2893, %v2767
        %v3028 = vmul.f32 %v2889, %v2768
        %v3029 = vmul.f32 %v2893, %v2769
        %v3030 = vmul.f32 %v2889, %v2770
        %v3031 = vmul.f32 %v2893, %v2771
        %v3032 = vmul.f32 %v2889, %v2772
        %v3033 = vmul.f32 %v2893, %v2773
        %v3034 = vmul.f32 %v2889, %v2774
        %v3035 = vmul.f32 %v2893, %v2775
        %v3036 = vmul.f32 %v2889, %v2776
        %v3037 = vmul.f32 %v2893, %v2777
        %s3038 = scalar_lea.vmem [#allocation7], 192
        %v3039 = vld [vmem:[%s3038] sm:$0xff]
        %v3040 = vld [vmem:[%s3038 + $0x8] sm:$0xff]
        %v3041 = vld [vmem:[%s3038 + $0x10] sm:$0xff]
        %v3042 = vld [vmem:[%s3038 + $0x18] sm:$0xff]
        %v3043 = vld [vmem:[%s3038 + $0x20] sm:$0xff]
        %v3044 = vld [vmem:[%s3038 + $0x28] sm:$0xff]
        %v3045 = vld [vmem:[%s3038 + $0x30] sm:$0xff]
        %v3046 = vld [vmem:[%s3038 + $0x38] sm:$0xff]
        %v3047 = vpack.c.bf16 %v2912, %v2910
        %v3048 = vpack.c.bf16 %v2913, %v2911
        %v3049 = vpack.c.bf16 %v2916, %v2914
        %v3050 = vpack.c.bf16 %v2917, %v2915
        %v3051 = vpack.c.bf16 %v2920, %v2918
        %v3052 = vpack.c.bf16 %v2921, %v2919
        %v3053 = vpack.c.bf16 %v2924, %v2922
        %v3054 = vpack.c.bf16 %v2925, %v2923
        %v3055 = vpack.c.bf16 %v2928, %v2926
        %v3056 = vpack.c.bf16 %v2929, %v2927
        %v3057 = vpack.c.bf16 %v2932, %v2930
        %v3058 = vpack.c.bf16 %v2933, %v2931
        %v3059 = vpack.c.bf16 %v2936, %v2934
        %v3060 = vpack.c.bf16 %v2937, %v2935
        %v3061 = vpack.c.bf16 %v2940, %v2938
        %v3062 = vpack.c.bf16 %v2941, %v2939
        %v3063 = vpack.c.bf16 %v2944, %v2942
        %v3064 = vpack.c.bf16 %v2945, %v2943
        %v3065 = vpack.c.bf16 %v2948, %v2946
        %v3066 = vpack.c.bf16 %v2949, %v2947
        %v3067 = vpack.c.bf16 %v2952, %v2950
        %v3068 = vpack.c.bf16 %v2953, %v2951
        %v3069 = vpack.c.bf16 %v2956, %v2954
        %v3070 = vpack.c.bf16 %v2957, %v2955
        %v3071 = vpack.c.bf16 %v2960, %v2958
        %v3072 = vpack.c.bf16 %v2961, %v2959
        %v3073 = vpack.c.bf16 %v2964, %v2962
        %v3074 = vpack.c.bf16 %v2965, %v2963
        %v3075 = vpack.c.bf16 %v2968, %v2966
        %v3076 = vpack.c.bf16 %v2969, %v2967
        %v3077 = vpack.c.bf16 %v2972, %v2970
        %v3078 = vpack.c.bf16 %v2973, %v2971
        %v3079 = vpack.c.bf16 %v2976, %v2974
        %v3080 = vpack.c.bf16 %v2977, %v2975
        %v3081 = vpack.c.bf16 %v2980, %v2978
        %v3082 = vpack.c.bf16 %v2981, %v2979
        %v3083 = vpack.c.bf16 %v2984, %v2982
        %v3084 = vpack.c.bf16 %v2985, %v2983
        %v3085 = vpack.c.bf16 %v2988, %v2986
        %v3086 = vpack.c.bf16 %v2989, %v2987
        %v3087 = vpack.c.bf16 %v2992, %v2990
        %v3088 = vpack.c.bf16 %v2993, %v2991
        %v3089 = vpack.c.bf16 %v2996, %v2994
        %v3090 = vpack.c.bf16 %v2997, %v2995
        %v3091 = vpack.c.bf16 %v3000, %v2998
        %v3092 = vpack.c.bf16 %v3001, %v2999
        %v3093 = vpack.c.bf16 %v3004, %v3002
        %v3094 = vpack.c.bf16 %v3005, %v3003
        %v3095 = vpack.c.bf16 %v3008, %v3006
        %v3096 = vpack.c.bf16 %v3009, %v3007
        %v3097 = vpack.c.bf16 %v3012, %v3010
        %v3098 = vpack.c.bf16 %v3013, %v3011
        %v3099 = vpack.c.bf16 %v3016, %v3014
        %v3100 = vpack.c.bf16 %v3017, %v3015
        %v3101 = vpack.c.bf16 %v3020, %v3018
        %v3102 = vpack.c.bf16 %v3021, %v3019
        %v3103 = vpack.c.bf16 %v3024, %v3022
        %v3104 = vpack.c.bf16 %v3025, %v3023
        %v3105 = vpack.c.bf16 %v3028, %v3026
        %v3106 = vpack.c.bf16 %v3029, %v3027
        %v3107 = vpack.c.bf16 %v3032, %v3030
        %v3108 = vpack.c.bf16 %v3033, %v3031
        %v3109 = vpack.c.bf16 %v3036, %v3034
        %v3110 = vpack.c.bf16 %v3037, %v3035
        %v3119 = vunpack.c.l.b16 %v3039
        %v3120 = vunpack.c.h.b16 %v3039
        %v3121 = vunpack.c.l.b16 %v3040
        %v3122 = vunpack.c.h.b16 %v3040
        %v3123 = vunpack.c.l.b16 %v3041
        %v3124 = vunpack.c.h.b16 %v3041
        %v3125 = vunpack.c.l.b16 %v3042
        %v3126 = vunpack.c.h.b16 %v3042
        %v3127 = vunpack.c.l.b16 %v3043
        %v3128 = vunpack.c.h.b16 %v3043
        %v3129 = vunpack.c.l.b16 %v3044
        %v3130 = vunpack.c.h.b16 %v3044
        %v3131 = vunpack.c.l.b16 %v3045
        %v3132 = vunpack.c.h.b16 %v3045
        %v3133 = vunpack.c.l.b16 %v3046
        %v3134 = vunpack.c.h.b16 %v3046
        %v3135 = vpack.c.b16 %v3123, %v3119
        %v3136 = vpack.c.b16 %v3124, %v3120
        %v3137 = vpack.c.b16 %v3125, %v3121
        %v3138 = vpack.c.b16 %v3126, %v3122
        %v3139 = vpack.c.b16 %v3131, %v3127
        %v3140 = vpack.c.b16 %v3132, %v3128
        %v3141 = vpack.c.b16 %v3133, %v3129
        %v3142 = vpack.c.b16 %v3134, %v3130
        %3151 = vmatprep.subr.bf16.mxu0 %v3048
        %3152 = vmatpush1.bf16.msra.mxu0 %v3047
        %3153 = vmatprep.subr.bf16.mxu0 %v3050
        %3154 = vmatpush1.bf16.msra.mxu0 %v3049
        %3155 = vmatprep.subr.bf16.mxu0 %v3052
        %3156 = vmatpush1.bf16.msra.mxu0 %v3051
        %3157 = vmatprep.subr.bf16.mxu0 %v3054
        %3158 = vmatpush1.bf16.msra.mxu0 %v3053
        %3159 = vmatprep.subr.bf16.mxu0 %v3056
        %3160 = vmatpush1.bf16.msra.mxu0 %v3055
        %3161 = vmatprep.subr.bf16.mxu0 %v3058
        %3162 = vmatpush1.bf16.msra.mxu0 %v3057
        %3163 = vmatprep.subr.bf16.mxu0 %v3060
        %3164 = vmatpush1.bf16.msra.mxu0 %v3059
        %3165 = vmatprep.subr.bf16.mxu0 %v3062
        %3166 = vmatpush1.bf16.msra.mxu0 %v3061
        %3167 = vmatprep.subr.bf16.mxu0 %v3064
        %3168 = vmatpush1.bf16.msra.mxu0 %v3063
        %3169 = vmatprep.subr.bf16.mxu0 %v3066
        %3170 = vmatpush1.bf16.msra.mxu0 %v3065
        %3171 = vmatprep.subr.bf16.mxu0 %v3068
        %3172 = vmatpush1.bf16.msra.mxu0 %v3067
        %3173 = vmatprep.subr.bf16.mxu0 %v3070
        %3174 = vmatpush1.bf16.msra.mxu0 %v3069
        %3175 = vmatprep.subr.bf16.mxu0 %v3072
        %3176 = vmatpush1.bf16.msra.mxu0 %v3071
        %3177 = vmatprep.subr.bf16.mxu0 %v3074
        %3178 = vmatpush1.bf16.msra.mxu0 %v3073
        %3179 = vmatprep.subr.bf16.mxu0 %v3076
        %3180 = vmatpush1.bf16.msra.mxu0 %v3075
        %3181 = vmatprep.subr.bf16.mxu0 %v3078
        %3182 = vmatpush1.bf16.msra.mxu0 %v3077
        %3183 = vmatprep.mubr.bf16.mxu0 %v3136
        %3184 = vmatmul.mubr.bf16.gmra.mrb[0].mxu0 %v3135
        %v3185 = vpop.f32.mrb[0].mxu0
        %v3186 = vadd.f32 0.0, %v3185
        %v3187 = vpop.f32.mrb[0].mxu0
        %v3188 = vadd.f32 0.0, %v3187
        %v3189 = vpop.f32.mrb[0].mxu0
        %v3190 = vadd.f32 0.0, %v3189
        %v3191 = vpop.f32.mrb[0].mxu0
        %v3192 = vadd.f32 0.0, %v3191
        %3193 = vmatprep.mubr.bf16.mxu0 %v3140
        %3194 = vmatmul.mubr.bf16.gmra.mrb[0].mxu0 %v3139
        %v3195 = vpop.f32.mrb[0].mxu0
        %v3196 = vadd.f32 0.0, %v3195
        %v3197 = vpop.f32.mrb[0].mxu0
        %v3198 = vadd.f32 0.0, %v3197
        %v3199 = vpop.f32.mrb[0].mxu0
        %v3200 = vadd.f32 0.0, %v3199
        %v3201 = vpop.f32.mrb[0].mxu0
        %v3202 = vadd.f32 0.0, %v3201
        %3203 = vdwg.mxu0
        %3204 = vmatprep.subr.bf16.mxu0 %v3080
        %3205 = vmatpush1.bf16.msra.mxu0 %v3079
        %3206 = vmatprep.subr.bf16.mxu0 %v3082
        %3207 = vmatpush1.bf16.msra.mxu0 %v3081
        %3208 = vmatprep.subr.bf16.mxu0 %v3084
        %3209 = vmatpush1.bf16.msra.mxu0 %v3083
        %3210 = vmatprep.subr.bf16.mxu0 %v3086
        %3211 = vmatpush1.bf16.msra.mxu0 %v3085
        %3212 = vmatprep.subr.bf16.mxu0 %v3088
        %3213 = vmatpush1.bf16.msra.mxu0 %v3087
        %3214 = vmatprep.subr.bf16.mxu0 %v3090
        %3215 = vmatpush1.bf16.msra.mxu0 %v3089
        %3216 = vmatprep.subr.bf16.mxu0 %v3092
        %3217 = vmatpush1.bf16.msra.mxu0 %v3091
        %3218 = vmatprep.subr.bf16.mxu0 %v3094
        %3219 = vmatpush1.bf16.msra.mxu0 %v3093
        %3220 = vmatprep.subr.bf16.mxu0 %v3096
        %3221 = vmatpush1.bf16.msra.mxu0 %v3095
        %3222 = vmatprep.subr.bf16.mxu0 %v3098
        %3223 = vmatpush1.bf16.msra.mxu0 %v3097
        %3224 = vmatprep.subr.bf16.mxu0 %v3100
        %3225 = vmatpush1.bf16.msra.mxu0 %v3099
        %3226 = vmatprep.subr.bf16.mxu0 %v3102
        %3227 = vmatpush1.bf16.msra.mxu0 %v3101
        %3228 = vmatprep.subr.bf16.mxu0 %v3104
        %3229 = vmatpush1.bf16.msra.mxu0 %v3103
        %3230 = vmatprep.subr.bf16.mxu0 %v3106
        %3231 = vmatpush1.bf16.msra.mxu0 %v3105
        %3232 = vmatprep.subr.bf16.mxu0 %v3108
        %3233 = vmatpush1.bf16.msra.mxu0 %v3107
        %3234 = vmatprep.subr.bf16.mxu0 %v3110
        %3235 = vmatpush1.bf16.msra.mxu0 %v3109
        %3236 = vmatprep.mubr.bf16.mxu0 %v3138
        %3237 = vmatmul.mubr.bf16.gmra.mrb[0].mxu0 %v3137
        %v3238 = vpop.f32.mrb[0].mxu0
        %v3239 = vadd.f32 %v3186, %v3238
        %v3240 = vpop.f32.mrb[0].mxu0
        %v3241 = vadd.f32 %v3188, %v3240
        %v3242 = vpop.f32.mrb[0].mxu0
        %v3243 = vadd.f32 %v3190, %v3242
        %v3244 = vpop.f32.mrb[0].mxu0
        %v3245 = vadd.f32 %v3192, %v3244
        %3246 = vmatprep.mubr.bf16.mxu0 %v3142
        %3247 = vmatmul.mubr.bf16.gmra.mrb[0].mxu0 %v3141
        %v3248 = vpop.f32.mrb[0].mxu0
        %v3249 = vadd.f32 %v3196, %v3248
        %v3250 = vpop.f32.mrb[0].mxu0
        %v3251 = vadd.f32 %v3198, %v3250
        %v3252 = vpop.f32.mrb[0].mxu0
        %v3253 = vadd.f32 %v3200, %v3252
        %v3254 = vpop.f32.mrb[0].mxu0
        %v3255 = vadd.f32 %v3202, %v3254
        %3256 = vdwg.mxu0
        %v3257 = vadd.f32 %v2523, %v3239
        %v3258 = vadd.f32 %v2524, %v3241
        %v3259 = vadd.f32 %v2525, %v3243
        %v3260 = vadd.f32 %v2526, %v3245
        %v3261 = vadd.f32 %v2527, %v3249
        %v3262 = vadd.f32 %v2528, %v3251
        %v3263 = vadd.f32 %v2529, %v3253
        %v3264 = vadd.f32 %v2530, %v3255
        %v3265 = vld [vmem:[%s3] sm:$0xff]
        %v3266 = vld [vmem:[%s3 + $0x8] sm:$0xff]
        %v3267 = vld [vmem:[%s3 + $0x10] sm:$0xff]
        %v3268 = vld [vmem:[%s3 + $0x18] sm:$0xff]
        %3270 = vset.pattern.permute.xlu0 0
        %3271 = vperm.xlu0 %3270, %v3265
        %v3272 = vpop.permute.xlu0 %3271
        %3275 = vset.pattern.permute.xlu0 0
        %3276 = vperm.xlu0 %3275, %v3266
        %v3277 = vpop.permute.xlu0 %3276
        %3280 = vset.pattern.permute.xlu0 0
        %3281 = vperm.xlu0 %3280, %v3267
        %v3282 = vpop.permute.xlu0 %3281
        %3285 = vset.pattern.permute.xlu0 0
        %3286 = vperm.xlu0 %3285, %v3268
        %v3287 = vpop.permute.xlu0 %3286
        %v3289 = vadd.f32 %v3257, %v3272
        %v3290 = vadd.f32 %v3258, %v3272
        %v3291 = vadd.f32 %v3259, %v3277
        %v3292 = vadd.f32 %v3260, %v3277
        %v3293 = vadd.f32 %v3261, %v3282
        %v3294 = vadd.f32 %v3262, %v3282
        %v3295 = vadd.f32 %v3263, %v3287
        %v3296 = vadd.f32 %v3264, %v3287
        %v3297 = vmax.f32 %v3289, 0.0
        %v3298 = vmax.f32 %v3290, 0.0
        %v3299 = vmax.f32 %v3291, 0.0
        %v3300 = vmax.f32 %v3292, 0.0
        %v3301 = vmax.f32 %v3293, 0.0
        %v3302 = vmax.f32 %v3294, 0.0
        %v3303 = vmax.f32 %v3295, 0.0
        %v3304 = vmax.f32 %v3296, 0.0
        %v3305 = vld [vmem:[%s4] sm:$0xff]
        %v3306 = vld [vmem:[%s4 + $0x8] sm:$0xff]
        %v3307 = vld [vmem:[%s4 + $0x10] sm:$0xff]
        %v3308 = vld [vmem:[%s4 + $0x18] sm:$0xff]
        %v3309 = vld [vmem:[%s5] sm:$0xff]
        %v3310 = vld [vmem:[%s5 + $0x8] sm:$0xff]
        %v3311 = vld [vmem:[%s5 + $0x10] sm:$0xff]
        %v3312 = vld [vmem:[%s5 + $0x18] sm:$0xff]
        %3314 = vset.pattern.permute.xlu0 0
        %3315 = vperm.xlu0 %3314, %v3309
        %v3316 = vpop.permute.xlu0 %3315
        %3319 = vset.pattern.permute.xlu0 0
        %3320 = vperm.xlu0 %3319, %v3310
        %v3321 = vpop.permute.xlu0 %3320
        %3324 = vset.pattern.permute.xlu0 0
        %3325 = vperm.xlu0 %3324, %v3311
        %v3326 = vpop.permute.xlu0 %3325
        %3329 = vset.pattern.permute.xlu0 0
        %3330 = vperm.xlu0 %3329, %v3312
        %v3331 = vpop.permute.xlu0 %3330
        %vm3333 = vcmask 261120
        %v3335 = vsel %vm3333, %v3305, 0
        %v3338 = vsel %vm3333, %v3306, 0
        %v3341 = vsel %vm3333, %v3307, 0
        %v3344 = vsel %vm3333, %v3308, 0
        %3346 = vmatprep.subr.mxu0 %v3298
        %3347 = vmatpush1.msra.mxu0 %v3297
        %3348 = vmatprep.subr.mxu0 %v3300
        %3349 = vmatpush1.msra.mxu0 %v3299
        %3350 = vmatprep.subr.mxu0 %v3302
        %3351 = vmatpush1.msra.mxu0 %v3301
        %3352 = vmatprep.subr.mxu0 %v3304
        %3353 = vmatpush1.msra.mxu0 %v3303
        %3354 = vmatprep.subr.mxu0 0.0
        %3355 = vmatpush1.msra.mxu0 0.0
        %3356 = vmatprep.subr.mxu0 0.0
        %3357 = vmatpush1.msra.mxu0 0.0
        %3358 = vmatprep.subr.mxu0 0.0
        %3359 = vmatpush1.msra.mxu0 0.0
        %3360 = vmatprep.subr.mxu0 0.0
        %3361 = vmatpush1.msra.mxu0 0.0
        %3362 = vmatprep.subr.mxu0 0.0
        %3363 = vmatpush1.msra.mxu0 0.0
        %3364 = vmatprep.subr.mxu0 0.0
        %3365 = vmatpush1.msra.mxu0 0.0
        %3366 = vmatprep.subr.mxu0 0.0
        %3367 = vmatpush1.msra.mxu0 0.0
        %3368 = vmatprep.subr.mxu0 0.0
        %3369 = vmatpush1.msra.mxu0 0.0
        %3370 = vmatprep.subr.mxu0 0.0
        %3371 = vmatpush1.msra.mxu0 0.0
        %3372 = vmatprep.subr.mxu0 0.0
        %3373 = vmatpush1.msra.mxu0 0.0
        %3374 = vmatprep.subr.mxu0 0.0
        %3375 = vmatpush1.msra.mxu0 0.0
        %3376 = vmatprep.subr.mxu0 0.0
        %3377 = vmatpush1.msra.mxu0 0.0
        %3378 = vmatprep.subr.mxu0 0.0
        %3379 = vmatpush1.msra.mxu0 0.0
        %3380 = vmatprep.subr.mxu0 0.0
        %3381 = vmatpush1.msra.mxu0 0.0
        %3382 = vmatprep.subr.mxu0 0.0
        %3383 = vmatpush1.msra.mxu0 0.0
        %3384 = vmatprep.subr.mxu0 0.0
        %3385 = vmatpush1.msra.mxu0 0.0
        %3386 = vmatprep.subr.mxu0 0.0
        %3387 = vmatpush1.msra.mxu0 0.0
        %3388 = vmatprep.subr.mxu0 0.0
        %3389 = vmatpush1.msra.mxu0 0.0
        %3390 = vmatprep.subr.mxu0 0.0
        %3391 = vmatpush1.msra.mxu0 0.0
        %3392 = vmatprep.subr.mxu0 0.0
        %3393 = vmatpush1.msra.mxu0 0.0
        %3394 = vmatprep.subr.mxu0 0.0
        %3395 = vmatpush1.msra.mxu0 0.0
        %3396 = vmatprep.subr.mxu0 0.0
        %3397 = vmatpush1.msra.mxu0 0.0
        %3398 = vmatprep.subr.mxu0 0.0
        %3399 = vmatpush1.msra.mxu0 0.0
        %3400 = vmatprep.subr.mxu0 0.0
        %3401 = vmatpush1.msra.mxu0 0.0
        %3402 = vmatprep.subr.mxu0 0.0
        %3403 = vmatpush1.msra.mxu0 0.0
        %3404 = vmatprep.subr.mxu0 0.0
        %3405 = vmatpush1.msra.mxu0 0.0
        %3406 = vmatprep.subr.mxu0 0.0
        %3407 = vmatpush1.msra.mxu0 0.0
        %3408 = vmatprep.subr.mxu0 0.0
        %3409 = vmatpush1.msra.mxu0 0.0
        %3410 = vmatprep.mubr.f32.mxu0 0.0
        %3411 = vmatmul.mubr.f32.gmra.mrb[0].mxu0 %v3335
        %v3412 = vpop.f32.mrb[0].mxu0
        %v3413 = vadd.f32 %v3316, %v3412
        %v3414 = vpop.f32.mrb[0].mxu0
        %v3415 = vadd.f32 %v3316, %v3414
        %3416 = vmatprep.mubr.f32.mxu0 0.0
        %3417 = vmatmul.mubr.f32.gmra.mrb[0].mxu0 %v3338
        %v3418 = vpop.f32.mrb[0].mxu0
        %v3419 = vadd.f32 %v3321, %v3418
        %v3420 = vpop.f32.mrb[0].mxu0
        %v3421 = vadd.f32 %v3321, %v3420
        %3422 = vmatprep.mubr.f32.mxu0 0.0
        %3423 = vmatmul.mubr.f32.gmra.mrb[0].mxu0 %v3341
        %v3424 = vpop.f32.mrb[0].mxu0
        %v3425 = vadd.f32 %v3326, %v3424
        %v3426 = vpop.f32.mrb[0].mxu0
        %v3427 = vadd.f32 %v3326, %v3426
        %3428 = vmatprep.mubr.f32.mxu0 0.0
        %3429 = vmatmul.mubr.f32.gmra.mrb[0].mxu0 %v3344
        %v3430 = vpop.f32.mrb[0].mxu0
        %v3431 = vadd.f32 %v3331, %v3430
        %v3432 = vpop.f32.mrb[0].mxu0
        %v3433 = vadd.f32 %v3331, %v3432
        %3434 = vdwg.mxu0
        %v3435 = vmax.f32 %v3413, 0.0
        %v3436 = vmax.f32 %v3415, 0.0
        %v3437 = vmax.f32 %v3419, 0.0
        %v3438 = vmax.f32 %v3421, 0.0
        %v3439 = vmax.f32 %v3425, 0.0
        %v3440 = vmax.f32 %v3427, 0.0
        %v3441 = vmax.f32 %v3431, 0.0
        %v3442 = vmax.f32 %v3433, 0.0
        %v3443 = vld [vmem:[%s6] sm:$0x1]
        %v3444 = vld [vmem:[#allocation2] sm:$0x1]
        %3446 = vset.pattern.permute.xlu0 0
        %3447 = vperm.xlu0 %3446, %v3444
        %v3448 = vpop.permute.xlu0 %3447
        %v3450 = vlaneseq
        %v3451 = vshrl.u32 %v3450, 7
        %v3452 = vsub.s32 0, %v3451
        %v3453 = vrot.slane %v3448, %v3452
        %v3455 = vsel %vm3333, %v3443, 0
        %3457 = vmatprep.subr.mxu0 %v3436
        %3458 = vmatpush1.msra.mxu0 %v3435
        %3459 = vmatprep.subr.mxu0 %v3438
        %3460 = vmatpush1.msra.mxu0 %v3437
        %3461 = vmatprep.subr.mxu0 %v3440
        %3462 = vmatpush1.msra.mxu0 %v3439
        %3463 = vmatprep.subr.mxu0 %v3442
        %3464 = vmatpush1.msra.mxu0 %v3441
        %3465 = vmatprep.subr.mxu0 0.0
        %3466 = vmatpush1.msra.mxu0 0.0
        %3467 = vmatprep.subr.mxu0 0.0
        %3468 = vmatpush1.msra.mxu0 0.0
        %3469 = vmatprep.subr.mxu0 0.0
        %3470 = vmatpush1.msra.mxu0 0.0
        %3471 = vmatprep.subr.mxu0 0.0
        %3472 = vmatpush1.msra.mxu0 0.0
        %3473 = vmatprep.subr.mxu0 0.0
        %3474 = vmatpush1.msra.mxu0 0.0
        %3475 = vmatprep.subr.mxu0 0.0
        %3476 = vmatpush1.msra.mxu0 0.0
        %3477 = vmatprep.subr.mxu0 0.0
        %3478 = vmatpush1.msra.mxu0 0.0
        %3479 = vmatprep.subr.mxu0 0.0
        %3480 = vmatpush1.msra.mxu0 0.0
        %3481 = vmatprep.subr.mxu0 0.0
        %3482 = vmatpush1.msra.mxu0 0.0
        %3483 = vmatprep.subr.mxu0 0.0
        %3484 = vmatpush1.msra.mxu0 0.0
        %3485 = vmatprep.subr.mxu0 0.0
        %3486 = vmatpush1.msra.mxu0 0.0
        %3487 = vmatprep.subr.mxu0 0.0
        %3488 = vmatpush1.msra.mxu0 0.0
        %3489 = vmatprep.subr.mxu0 0.0
        %3490 = vmatpush1.msra.mxu0 0.0
        %3491 = vmatprep.subr.mxu0 0.0
        %3492 = vmatpush1.msra.mxu0 0.0
        %3493 = vmatprep.subr.mxu0 0.0
        %3494 = vmatpush1.msra.mxu0 0.0
        %3495 = vmatprep.subr.mxu0 0.0
        %3496 = vmatpush1.msra.mxu0 0.0
        %3497 = vmatprep.subr.mxu0 0.0
        %3498 = vmatpush1.msra.mxu0 0.0
        %3499 = vmatprep.subr.mxu0 0.0
        %3500 = vmatpush1.msra.mxu0 0.0
        %3501 = vmatprep.subr.mxu0 0.0
        %3502 = vmatpush1.msra.mxu0 0.0
        %3503 = vmatprep.subr.mxu0 0.0
        %3504 = vmatpush1.msra.mxu0 0.0
        %3505 = vmatprep.subr.mxu0 0.0
        %3506 = vmatpush1.msra.mxu0 0.0
        %3507 = vmatprep.subr.mxu0 0.0
        %3508 = vmatpush1.msra.mxu0 0.0
        %3509 = vmatprep.subr.mxu0 0.0
        %3510 = vmatpush1.msra.mxu0 0.0
        %3511 = vmatprep.subr.mxu0 0.0
        %3512 = vmatpush1.msra.mxu0 0.0
        %3513 = vmatprep.subr.mxu0 0.0
        %3514 = vmatpush1.msra.mxu0 0.0
        %3515 = vmatprep.subr.mxu0 0.0
        %3516 = vmatpush1.msra.mxu0 0.0
        %3517 = vmatprep.subr.mxu0 0.0
        %3518 = vmatpush1.msra.mxu0 0.0
        %3519 = vmatprep.subr.mxu0 0.0
        %3520 = vmatpush1.msra.mxu0 0.0
        %3521 = vmatprep.mubr.f32.mxu0 0.0
        %3522 = vmatmul.mubr.f32.gmra.mrb[0].mxu0 %v3455
        %v3523 = vpop.f32.mrb[0].mxu0
        %v3524 = vadd.f32 %v3453, %v3523
        %v3525 = vpop.f32.mrb[0].mxu0
        %v3526 = vadd.f32 %v3453, %v3525
        %3527 = vdwg.mxu0
        %v3530 = vcombine.low %v3524, %v3526
        %v3532 = vunpack.c.l.s4 1966171168
        %v3533 = vunpack.c.0.s8 %v3532
        %v3534 = vlaneseq
        %v3535 = vshrl.u32 %v3534, 7
        %v3536 = vsub.s32 %v3533, %v3535
        %v3537 = vrot.slane %v3530, %v3536
        %v3539 = vunpack.c.l.s4 1966171168
        %v3540 = vunpack.c.0.s8 %v3539
        %v3541 = vlaneseq
        %v3542 = vshrl.u32 %v3541, 7
        %v3543 = vsub.s32 %v3540, %v3542
        %v3544 = vrot.slane %v3537, %v3543
        %v3546 = vlaneseq
        %vm3547 = vcmp.ge.s32.totalorder %v3546, 0
        %vm3548 = vcmp.lt.s32.totalorder %v3546, 256
        %vm3549 = vmand %vm3547, %vm3548
        %3550 = vst.msk [vmem:[%s330] sm:$0x3] %vm3549, %v3544
        %s3551 = sand.u32 %s207, 1
        %s3552 = scalar_lea.sflag [#allocation5], %s3551
        %s3553 = sand.u32 %s207, 1
        %s3554 = smul.addr %s3553, 2
        %s3555 = scalar_lea.vmem [#allocation8], %s3554
        // Predicated region
        $region61: #{tpu_custom_call.1} parent=51 // pred_check
          %p3556 = pneg %p217
        $region62: #{tpu_custom_call.1} parent=51 // pred_check_branch
          %3558 = sbr.rel (%p3556) target = $region64
        $region63: #{tpu_custom_call.1} parent=51 // pred_region
          %s3559 = smul.u32 2, %s26
          %s3561 = ssub.s32 32, 32
          %3562 = vsyncadd %s3552, %s3561
          %s3563 = smul.addr %s3559, 16
          %s3564 = scalar_lea.hbm %s8, %s3563
          %s3566 = sshll.u32 %s3555, 4
          %s3567 = int_to_ptr.vmem [resolvable:$true] %s3566
          %3569 = dma.vmem_to_hbm [thread:$0]  %s3567, 32, %s3564, %s3552
        $region64: #{tpu_custom_call.1} parent=51 // pred_fallthru
          _
      $region52: #{tpu_custom_call.1} parent=5 // pred_fallthru
        _
      %p3570 = scmp.le.s32.totalorder 2, %s21
      // Predicated region
      $region65: #{tpu_custom_call.1} parent=5 // pred_check
        %p3571 = pneg %p3570
      $region66: #{tpu_custom_call.1} parent=5 // pred_check_branch
        %3573 = sbr.rel (%p3571) target = $region68
      $region67: #{tpu_custom_call.1} parent=5 // pred_region
        %s3574 = ssub.s32 %s21, 2
        // Predicated region
        $region69: #{tpu_custom_call.1} parent=67 // pred_check
          %p3575 = pneg %p223
        $region70: #{tpu_custom_call.1} parent=67 // pred_check_branch
          %3577 = sbr.rel (%p3575) target = $region72
        $region71: #{tpu_custom_call.1} parent=67 // pred_region
          %s3578 = sand.u32 %s208, 1
          %s3579 = scalar_lea.sflag [#allocation5], %s3578
          %s3580 = sand.u32 %s208, 1
          %s3581 = smul.addr %s3580, 2
          %s3582 = scalar_lea.vmem [#allocation8], %s3581
          %3583 = dma.done %s3579, 32
        $region72: #{tpu_custom_call.1} parent=67 // pred_fallthru
          _
      $region68: #{tpu_custom_call.1} parent=5 // pred_fallthru
        _
    $region6: #{tpu_custom_call.1} parent=1 // loop_footer
      %s25 = sadd.s32 1, %s21
    $region7: #{tpu_custom_call.1} parent=1 // loop_footer_branch
      %20 = sbr.rel target = $region3
    $region8: #{tpu_custom_call.1} parent=1 // loop_exit
      _
    %3584 = vsyncpa [#allocation4], 1
    %s3585 = scalar_lea.sflag [#allocation4], 1
    %3586 = vsyncpa %s3585, 1
    %3587 = vsyncpa [#allocation5], 1
    %s3588 = scalar_lea.sflag [#allocation5], 1
    %3589 = vsyncpa %s3588, 1
    %3590 = vsyncpa [#allocation6], 1
    %s3591 = scalar_lea.sflag [#allocation6], 1
    %3592 = vsyncpa %s3591, 1

</llo_original>
